<compile_context>
chip_gen: v7x
topology: tpu7x:2x2x1
jax: 0.10.0
libtpu: 0.0.40
codegen_flags: <defaults>
</compile_context>

<pallas_src>
import functools

import jax
import jax.numpy as jnp
from jax import lax
from jax.experimental import pallas as pl
from jax.experimental.pallas import tpu as pltpu


def _cdiv(a, b):
    return -(-a // b)


def _round_up(a, b):
    return _cdiv(a, b) * b


def _conv_bn_leaky_kernel(x_cur_ref, x_nxt_ref, w_ref, b_ref, o_ref, xext_ref,
                          *, m, w2, k2):
    # x_cur_ref / x_nxt_ref: (1, m, c2) bf16 -- current / next row-slab of the flattened
    #                        stride-1 input (the next slab supplies the halo rows).
    # w_ref:  (k2*k2, c2, coutp) bf16 -- per-tap weights with BN scale folded in.
    # b_ref:  (1, coutp) f32          -- folded BN bias.
    # o_ref:  (1, m, coutp)           -- output slab (garbage cols sliced off in wrapper).
    # xext_ref: (2*m, c2) f32 scratch -- current slab + halo (f32 so per-tap slices at
    #                                    arbitrary row offsets stay layout-friendly).
    xext_ref[0:m, :] = x_cur_ref[0].astype(jnp.float32)
    xext_ref[m:2 * m, :] = x_nxt_ref[0].astype(jnp.float32)

    coutp = o_ref.shape[-1]
    acc = jnp.zeros((m, coutp), jnp.float32)
    # Direct convolution: sum of k2*k2 shifted-slice matmuls on the MXU
    # (im2col is never materialized in HBM).
    for kh in range(k2):
        for kw in range(k2):
            d = kh * w2 + kw
            patch = xext_ref[d:d + m, :].astype(jnp.bfloat16)      # (m, c2)
            acc = acc + jnp.dot(patch, w_ref[kh * k2 + kw],
                                preferred_element_type=jnp.float32)
    y = acc + b_ref[...]                                           # folded BN bias
    y = jnp.where(y > 0, y, 0.1 * y)                               # LeakyReLU(0.1)
    o_ref[0] = y.astype(o_ref.dtype)


@functools.partial(jax.jit, static_argnames=("ksize", "stride"))
def conv_bn_leaky(x, weight, gamma, beta, running_mean, running_var, *, ksize, stride):
    """x: (N, Cin, H, W) NCHW; weight: (Cout, Cin, k, k). Returns (N, Cout, Ho, Wo)."""
    eps = 1e-5
    n, cin, h, w = x.shape
    cout = weight.shape[0]
    k, s = ksize, stride
    pad = (k - 1) // 2
    ho = (h + 2 * pad - k) // s + 1
    wo = (w + 2 * pad - k) // s + 1

    # ---- NCHW -> NHWC, spatial zero pad --------------------------------------------
    xn = jnp.transpose(x, (0, 2, 3, 1))
    xp = jnp.pad(xn, ((0, 0), (pad, pad), (pad, pad), (0, 0)))
    hp, wp = h + 2 * pad, w + 2 * pad

    # ---- phase (space-to-depth) decomposition: stride-s conv -> stride-1 conv with
    #      cin*s*s channels and ceil(k/s) taps per spatial dim (identity when s == 1) --
    k2 = _cdiv(k, s)
    h2, w2 = _cdiv(hp, s), _cdiv(wp, s)
    c2 = cin * s * s
    xp = jnp.pad(xp, ((0, 0), (0, h2 * s - hp), (0, w2 * s - wp), (0, 0)))
    xph = xp.reshape(n, h2, s, w2, s, cin).transpose(0, 1, 3, 2, 4, 5)
    xph = xph.reshape(n, h2, w2, c2)

    # ---- fold eval-mode BatchNorm into the weights / bias ---------------------------
    scale = gamma * lax.rsqrt(running_var + eps)            # (cout,)
    bias = beta - running_mean * scale                      # (cout,)

    coutp = _round_up(cout, 128)                            # lane-dense output channels
    wt = jnp.pad(weight, ((0, 0), (0, 0), (0, k2 * s - k), (0, k2 * s - k)))
    wt = wt.reshape(cout, cin, k2, s, k2, s).transpose(2, 4, 3, 5, 1, 0)
    wt = wt.reshape(k2 * k2, c2, cout) * scale[None, None, :]
    wt = jnp.pad(wt, ((0, 0), (0, 0), (0, coutp - cout))).astype(jnp.bfloat16)
    bias_p = jnp.pad(bias, (0, coutp - cout)).reshape(1, coutp).astype(jnp.float32)

    # ---- row tiling of the stride-1 output grid (flattened spatially) ---------------
    th = max(k2, min(ho, _cdiv(2048, w2)))      # ~2048 output positions per grid step
    th = _round_up(th, 16)                      # keep block sublane dim tile-aligned
    t = _cdiv(ho, th)
    m = th * w2

    rows_total = max(t + 1, _cdiv(h2, th)) * th  # +1 block so the halo slab always exists
    xph = jnp.pad(xph, ((0, 0), (0, rows_total - h2), (0, 0), (0, 0)))
    xflat = xph.reshape(n, rows_total * w2, c2).astype(jnp.bfloat16)

    out_dtype = x.dtype
    out_bytes = n * t * m * coutp * jnp.dtype(out_dtype).itemsize
    flops = 2 * n * t * m * c2 * coutp * k2 * k2
    bytes_accessed = 2 * xflat.size * 2 + wt.size * 2 + bias_p.size * 4 + out_bytes

    # VMEM budget: double-buffered bf16 input/weight blocks, f32 out block + accumulator,
    # f32 halo scratch, plus headroom; clamped well under every chip's physical VMEM.
    est = (2 * 2 * m * c2 * 2 + 2 * k2 * k2 * c2 * coutp * 2 + 2 * m * coutp * 4
           + 2 * m * c2 * 4 + m * coutp * 4 + 2 * m * c2 * 4 + 2 * coutp * 4)
    vmem_limit = int(min(max(2 * est, 32 * 2**20), 48 * 2**20))

    kernel = functools.partial(_conv_bn_leaky_kernel, m=m, w2=w2, k2=k2)

    out_flat = pl.pallas_call(
        kernel,
        out_shape=jax.ShapeDtypeStruct((n, t * m, coutp), out_dtype),
        grid_spec=pltpu.PrefetchScalarGridSpec(
            num_scalar_prefetch=0,
            grid=(n, t),
            in_specs=[
                pl.BlockSpec((1, m, c2), lambda b, i: (b, i, 0)),        # current slab
                pl.BlockSpec((1, m, c2), lambda b, i: (b, i + 1, 0)),    # halo slab
                pl.BlockSpec((k2 * k2, c2, coutp), lambda b, i: (0, 0, 0)),
                pl.BlockSpec((1, coutp), lambda b, i: (0, 0)),
            ],
            out_specs=pl.BlockSpec((1, m, coutp), lambda b, i: (b, i, 0)),
            scratch_shapes=[pltpu.VMEM((2 * m, c2), jnp.float32)],
        ),
        compiler_params=pltpu.CompilerParams(
            dimension_semantics=("parallel", "parallel"),
            vmem_limit_bytes=vmem_limit,
        ),
        cost_estimate=pl.CostEstimate(
            flops=flops, transcendentals=0, bytes_accessed=bytes_accessed),
    )(xflat, xflat, wt, bias_p)

    # TODO(synk): chained DarkNet blocks could consume NHWC directly; the transpose back
    # to NCHW is kept only to match the PyTorch module's output contract.
    out = out_flat.reshape(n, t * th, w2, coutp)[:, :ho, :wo, :cout]
    return jnp.transpose(out, (0, 3, 1, 2))


def _reference(x, weight, gamma, beta, running_mean, running_var, ksize, stride):
    # Mirrors the kernel numerics: BN scale folded into the weight, operands in bf16,
    # f32 accumulation; independent algorithm (XLA conv) for the cross-check.
    eps = 1e-5
    pad = (ksize - 1) // 2
    scale = gamma * lax.rsqrt(running_var + eps)
    bias = beta - running_mean * scale
    wf = (weight * scale[:, None, None, None]).astype(jnp.bfloat16).astype(jnp.float32)
    xb = x.astype(jnp.bfloat16).astype(jnp.float32)
    conv = lax.conv_general_dilated(
        xb, wf,
        window_strides=(stride, stride),
        padding=((pad, pad), (pad, pad)),
        dimension_numbers=("NCHW", "OIHW", "NCHW"),
        precision=lax.Precision.HIGHEST,
    )
    y = conv + bias.reshape(1, -1, 1, 1)
    return jnp.where(y > 0, y, 0.1 * y)


if __name__ == "__main__":
    key = jax.random.PRNGKey(0)
    k_x, k_w, k_g, k_b, k_m, k_v = jax.random.split(key, 6)

    N, Cin, H, W = 2, 4, 16, 16
    Cout, ksize, stride = 8, 3, 1

    x = jax.random.normal(k_x, (N, Cin, H, W), dtype=jnp.float32)
    weight = 0.1 * jax.random.normal(k_w, (Cout, Cin, ksize, ksize), dtype=jnp.float32)
    gamma = 1.0 + 0.1 * jax.random.normal(k_g, (Cout,), dtype=jnp.float32)
    beta = 0.1 * jax.random.normal(k_b, (Cout,), dtype=jnp.float32)
    running_mean = 0.1 * jax.random.normal(k_m, (Cout,), dtype=jnp.float32)
    running_var = jnp.abs(jax.random.normal(k_v, (Cout,), dtype=jnp.float32)) + 0.5

    out = conv_bn_leaky(
        x, weight, gamma, beta, running_mean, running_var, ksize=ksize, stride=stride
    )
    out = jax.block_until_ready(out)

    ref = _reference(x, weight, gamma, beta, running_mean, running_var, ksize, stride)
    assert out.shape == (N, Cout, H, W), out.shape
    assert jnp.allclose(out, ref, atol=2e-2, rtol=2e-2), float(
        jnp.max(jnp.abs(out - ref)))

    print("KERNEL_OK")
</pallas_src>

<mosaic_0001>
module attributes {stable_mosaic.version = 11 : i64} {
  func.func @_conv_bn_leaky_kernel(%arg0: i32, %arg1: i32, %arg2: memref<1x288x4xbf16, #tpu.memory_space<vmem>>, %arg3: memref<1x288x4xbf16, #tpu.memory_space<vmem>>, %arg4: memref<9x4x128xbf16, #tpu.memory_space<vmem>>, %arg5: memref<1x128xf32, #tpu.memory_space<vmem>>, %arg6: memref<1x288x128xf32, #tpu.memory_space<vmem>>, %arg7: memref<576x4xf32, #tpu.memory_space<vmem>>) attributes {dimension_semantics = [#tpu.dimension_semantics<parallel>, #tpu.dimension_semantics<parallel>], iteration_bounds = array<i64: 2, 1>, scalar_prefetch = 0 : i64, scratch_operands = 1 : i64, tpu.core_type = #tpu.core_type<tc>, window_params = [{transform_indices = @transform_0, window_bounds = array<i64: 1, 288, 4>}, {transform_indices = @transform_1, window_bounds = array<i64: 1, 288, 4>}, {pipeline_mode = #tpu.pipeline_mode<synchronous>, transform_indices = @transform_2, window_bounds = array<i64: 9, 4, 128>}, {pipeline_mode = #tpu.pipeline_mode<synchronous>, transform_indices = @transform_3, window_bounds = array<i64: 1, 128>}, {transform_indices = @transform_4, window_bounds = array<i64: 1, 288, 128>}]} {
    %c0 = arith.constant 0 : index
    %c0_0 = arith.constant 0 : index
    %c0_1 = arith.constant 0 : index
    %0 = vector.load %arg2[%c0, %c0_0, %c0_1] : memref<1x288x4xbf16, #tpu.memory_space<vmem>>, vector<1x288x4xbf16>
    %1 = vector.shape_cast %0 : vector<1x288x4xbf16> to vector<288x4xbf16>
    %2 = arith.extf %1 : vector<288x4xbf16> to vector<288x4xf32>
    %c0_2 = arith.constant 0 : index
    %c0_3 = arith.constant 0 : index
    %3 = vector.load %arg7[%c0_2, %c0_3] : memref<576x4xf32, #tpu.memory_space<vmem>>, vector<288x4xf32>
    tpu.vector_store %arg7[%c0_2, %c0_3], %2 {strides = array<i32>} : memref<576x4xf32, #tpu.memory_space<vmem>>, vector<288x4xf32>,
    %c0_4 = arith.constant 0 : index
    %c0_5 = arith.constant 0 : index
    %c0_6 = arith.constant 0 : index
    %4 = vector.load %arg3[%c0_4, %c0_5, %c0_6] : memref<1x288x4xbf16, #tpu.memory_space<vmem>>, vector<1x288x4xbf16>
    %5 = vector.shape_cast %4 : vector<1x288x4xbf16> to vector<288x4xbf16>
    %6 = arith.extf %5 : vector<288x4xbf16> to vector<288x4xf32>
    %c288 = arith.constant 288 : index
    %c0_7 = arith.constant 0 : index
    %7 = vector.load %arg7[%c288, %c0_7] : memref<576x4xf32, #tpu.memory_space<vmem>>, vector<288x4xf32>
    tpu.vector_store %arg7[%c288, %c0_7], %6 {strides = array<i32>} : memref<576x4xf32, #tpu.memory_space<vmem>>, vector<288x4xf32>,
    %cst = arith.constant 0.000000e+00 : f32
    %8 = vector.broadcast %cst : f32 to vector<288x128xf32>
    %c0_8 = arith.constant 0 : index
    %c0_9 = arith.constant 0 : index
    %9 = vector.load %arg7[%c0_8, %c0_9] : memref<576x4xf32, #tpu.memory_space<vmem>>, vector<288x4xf32>
    %10 = arith.truncf %9 : vector<288x4xf32> to vector<288x4xbf16>
    %c0_10 = arith.constant 0 : index
    %c0_11 = arith.constant 0 : index
    %c0_12 = arith.constant 0 : index
    %11 = vector.load %arg4[%c0_10, %c0_11, %c0_12] : memref<9x4x128xbf16, #tpu.memory_space<vmem>>, vector<1x4x128xbf16>
    %12 = vector.shape_cast %11 : vector<1x4x128xbf16> to vector<4x128xbf16>
    %cst_13 = arith.constant dense<0.000000e+00> : vector<288x128xf32>
    %13 = tpu.matmul %10, %12, %cst_13 {dimension_numbers = #tpu.dot_dimension_numbers<[1], [0], [0], [1], [0, 0, 1, 1], [], []>} : vector<288x4xbf16>, vector<4x128xbf16>, vector<288x128xf32> -> vector<288x128xf32>
    %14 = arith.addf %8, %13 : vector<288x128xf32>
    %c1 = arith.constant 1 : index
    %c0_14 = arith.constant 0 : index
    %15 = vector.load %arg7[%c1, %c0_14] : memref<576x4xf32, #tpu.memory_space<vmem>>, vector<288x4xf32>
    %16 = arith.truncf %15 : vector<288x4xf32> to vector<288x4xbf16>
    %c1_15 = arith.constant 1 : index
    %c0_16 = arith.constant 0 : index
    %c0_17 = arith.constant 0 : index
    %17 = vector.load %arg4[%c1_15, %c0_16, %c0_17] : memref<9x4x128xbf16, #tpu.memory_space<vmem>>, vector<1x4x128xbf16>
    %18 = vector.shape_cast %17 : vector<1x4x128xbf16> to vector<4x128xbf16>
    %cst_18 = arith.constant dense<0.000000e+00> : vector<288x128xf32>
    %19 = tpu.matmul %16, %18, %cst_18 {dimension_numbers = #tpu.dot_dimension_numbers<[1], [0], [0], [1], [0, 0, 1, 1], [], []>} : vector<288x4xbf16>, vector<4x128xbf16>, vector<288x128xf32> -> vector<288x128xf32>
    %20 = arith.addf %14, %19 : vector<288x128xf32>
    %c2 = arith.constant 2 : index
    %c0_19 = arith.constant 0 : index
    %21 = vector.load %arg7[%c2, %c0_19] : memref<576x4xf32, #tpu.memory_space<vmem>>, vector<288x4xf32>
    %22 = arith.truncf %21 : vector<288x4xf32> to vector<288x4xbf16>
    %c2_20 = arith.constant 2 : index
    %c0_21 = arith.constant 0 : index
    %c0_22 = arith.constant 0 : index
    %23 = vector.load %arg4[%c2_20, %c0_21, %c0_22] : memref<9x4x128xbf16, #tpu.memory_space<vmem>>, vector<1x4x128xbf16>
    %24 = vector.shape_cast %23 : vector<1x4x128xbf16> to vector<4x128xbf16>
    %cst_23 = arith.constant dense<0.000000e+00> : vector<288x128xf32>
    %25 = tpu.matmul %22, %24, %cst_23 {dimension_numbers = #tpu.dot_dimension_numbers<[1], [0], [0], [1], [0, 0, 1, 1], [], []>} : vector<288x4xbf16>, vector<4x128xbf16>, vector<288x128xf32> -> vector<288x128xf32>
    %26 = arith.addf %20, %25 : vector<288x128xf32>
    %c18 = arith.constant 18 : index
    %c0_24 = arith.constant 0 : index
    %27 = vector.load %arg7[%c18, %c0_24] : memref<576x4xf32, #tpu.memory_space<vmem>>, vector<288x4xf32>
    %28 = arith.truncf %27 : vector<288x4xf32> to vector<288x4xbf16>
    %c3 = arith.constant 3 : index
    %c0_25 = arith.constant 0 : index
    %c0_26 = arith.constant 0 : index
    %29 = vector.load %arg4[%c3, %c0_25, %c0_26] : memref<9x4x128xbf16, #tpu.memory_space<vmem>>, vector<1x4x128xbf16>
    %30 = vector.shape_cast %29 : vector<1x4x128xbf16> to vector<4x128xbf16>
    %cst_27 = arith.constant dense<0.000000e+00> : vector<288x128xf32>
    %31 = tpu.matmul %28, %30, %cst_27 {dimension_numbers = #tpu.dot_dimension_numbers<[1], [0], [0], [1], [0, 0, 1, 1], [], []>} : vector<288x4xbf16>, vector<4x128xbf16>, vector<288x128xf32> -> vector<288x128xf32>
    %32 = arith.addf %26, %31 : vector<288x128xf32>
    %c19 = arith.constant 19 : index
    %c0_28 = arith.constant 0 : index
    %33 = vector.load %arg7[%c19, %c0_28] : memref<576x4xf32, #tpu.memory_space<vmem>>, vector<288x4xf32>
    %34 = arith.truncf %33 : vector<288x4xf32> to vector<288x4xbf16>
    %c4 = arith.constant 4 : index
    %c0_29 = arith.constant 0 : index
    %c0_30 = arith.constant 0 : index
    %35 = vector.load %arg4[%c4, %c0_29, %c0_30] : memref<9x4x128xbf16, #tpu.memory_space<vmem>>, vector<1x4x128xbf16>
    %36 = vector.shape_cast %35 : vector<1x4x128xbf16> to vector<4x128xbf16>
    %cst_31 = arith.constant dense<0.000000e+00> : vector<288x128xf32>
    %37 = tpu.matmul %34, %36, %cst_31 {dimension_numbers = #tpu.dot_dimension_numbers<[1], [0], [0], [1], [0, 0, 1, 1], [], []>} : vector<288x4xbf16>, vector<4x128xbf16>, vector<288x128xf32> -> vector<288x128xf32>
    %38 = arith.addf %32, %37 : vector<288x128xf32>
    %c20 = arith.constant 20 : index
    %c0_32 = arith.constant 0 : index
    %39 = vector.load %arg7[%c20, %c0_32] : memref<576x4xf32, #tpu.memory_space<vmem>>, vector<288x4xf32>
    %40 = arith.truncf %39 : vector<288x4xf32> to vector<288x4xbf16>
    %c5 = arith.constant 5 : index
    %c0_33 = arith.constant 0 : index
    %c0_34 = arith.constant 0 : index
    %41 = vector.load %arg4[%c5, %c0_33, %c0_34] : memref<9x4x128xbf16, #tpu.memory_space<vmem>>, vector<1x4x128xbf16>
    %42 = vector.shape_cast %41 : vector<1x4x128xbf16> to vector<4x128xbf16>
    %cst_35 = arith.constant dense<0.000000e+00> : vector<288x128xf32>
    %43 = tpu.matmul %40, %42, %cst_35 {dimension_numbers = #tpu.dot_dimension_numbers<[1], [0], [0], [1], [0, 0, 1, 1], [], []>} : vector<288x4xbf16>, vector<4x128xbf16>, vector<288x128xf32> -> vector<288x128xf32>
    %44 = arith.addf %38, %43 : vector<288x128xf32>
    %c36 = arith.constant 36 : index
    %c0_36 = arith.constant 0 : index
    %45 = vector.load %arg7[%c36, %c0_36] : memref<576x4xf32, #tpu.memory_space<vmem>>, vector<288x4xf32>
    %46 = arith.truncf %45 : vector<288x4xf32> to vector<288x4xbf16>
    %c6 = arith.constant 6 : index
    %c0_37 = arith.constant 0 : index
    %c0_38 = arith.constant 0 : index
    %47 = vector.load %arg4[%c6, %c0_37, %c0_38] : memref<9x4x128xbf16, #tpu.memory_space<vmem>>, vector<1x4x128xbf16>
    %48 = vector.shape_cast %47 : vector<1x4x128xbf16> to vector<4x128xbf16>
    %cst_39 = arith.constant dense<0.000000e+00> : vector<288x128xf32>
    %49 = tpu.matmul %46, %48, %cst_39 {dimension_numbers = #tpu.dot_dimension_numbers<[1], [0], [0], [1], [0, 0, 1, 1], [], []>} : vector<288x4xbf16>, vector<4x128xbf16>, vector<288x128xf32> -> vector<288x128xf32>
    %50 = arith.addf %44, %49 : vector<288x128xf32>
    %c37 = arith.constant 37 : index
    %c0_40 = arith.constant 0 : index
    %51 = vector.load %arg7[%c37, %c0_40] : memref<576x4xf32, #tpu.memory_space<vmem>>, vector<288x4xf32>
    %52 = arith.truncf %51 : vector<288x4xf32> to vector<288x4xbf16>
    %c7 = arith.constant 7 : index
    %c0_41 = arith.constant 0 : index
    %c0_42 = arith.constant 0 : index
    %53 = vector.load %arg4[%c7, %c0_41, %c0_42] : memref<9x4x128xbf16, #tpu.memory_space<vmem>>, vector<1x4x128xbf16>
    %54 = vector.shape_cast %53 : vector<1x4x128xbf16> to vector<4x128xbf16>
    %cst_43 = arith.constant dense<0.000000e+00> : vector<288x128xf32>
    %55 = tpu.matmul %52, %54, %cst_43 {dimension_numbers = #tpu.dot_dimension_numbers<[1], [0], [0], [1], [0, 0, 1, 1], [], []>} : vector<288x4xbf16>, vector<4x128xbf16>, vector<288x128xf32> -> vector<288x128xf32>
    %56 = arith.addf %50, %55 : vector<288x128xf32>
    %c38 = arith.constant 38 : index
    %c0_44 = arith.constant 0 : index
    %57 = vector.load %arg7[%c38, %c0_44] : memref<576x4xf32, #tpu.memory_space<vmem>>, vector<288x4xf32>
    %58 = arith.truncf %57 : vector<288x4xf32> to vector<288x4xbf16>
    %c8 = arith.constant 8 : index
    %c0_45 = arith.constant 0 : index
    %c0_46 = arith.constant 0 : index
    %59 = vector.load %arg4[%c8, %c0_45, %c0_46] : memref<9x4x128xbf16, #tpu.memory_space<vmem>>, vector<1x4x128xbf16>
    %60 = vector.shape_cast %59 : vector<1x4x128xbf16> to vector<4x128xbf16>
    %cst_47 = arith.constant dense<0.000000e+00> : vector<288x128xf32>
    %61 = tpu.matmul %58, %60, %cst_47 {dimension_numbers = #tpu.dot_dimension_numbers<[1], [0], [0], [1], [0, 0, 1, 1], [], []>} : vector<288x4xbf16>, vector<4x128xbf16>, vector<288x128xf32> -> vector<288x128xf32>
    %62 = arith.addf %56, %61 : vector<288x128xf32>
    %c0_48 = arith.constant 0 : index
    %c0_49 = arith.constant 0 : index
    %63 = vector.load %arg5[%c0_48, %c0_49] : memref<1x128xf32, #tpu.memory_space<vmem>>, vector<1x128xf32>
    %64 = vector.broadcast %63 : vector<1x128xf32> to vector<288x128xf32>
    %65 = arith.addf %62, %64 : vector<288x128xf32>
    %cst_50 = arith.constant 0.000000e+00 : f32
    %66 = vector.broadcast %cst_50 : f32 to vector<288x128xf32>
    %67 = arith.cmpf ogt, %65, %66 : vector<288x128xf32>
    %cst_51 = arith.constant 1.000000e-01 : f32
    %68 = vector.broadcast %cst_51 : f32 to vector<288x128xf32>
    %69 = arith.mulf %68, %65 : vector<288x128xf32>
    %70 = arith.select %67, %65, %69 : vector<288x128xi1>, vector<288x128xf32>
    %c0_52 = arith.constant 0 : index
    %c0_53 = arith.constant 0 : index
    %c0_54 = arith.constant 0 : index
    %71 = vector.load %arg6[%c0_52, %c0_53, %c0_54] : memref<1x288x128xf32, #tpu.memory_space<vmem>>, vector<1x288x128xf32>
    %72 = vector.shape_cast %71 : vector<1x288x128xf32> to vector<288x128xf32>
    %73 = vector.shape_cast %70 : vector<288x128xf32> to vector<1x288x128xf32>
    tpu.vector_store %arg6[%c0_52, %c0_53, %c0_54], %73 {strides = array<i32>} : memref<1x288x128xf32, #tpu.memory_space<vmem>>, vector<1x288x128xf32>,
    return
  }
  func.func @transform_0(%arg0: i32, %arg1: i32) -> (i32, i32, i32) {
    %c0_i32 = arith.constant 0 : i32
    %c0_i32_0 = arith.constant 0 : i32
    return %arg0, %arg1, %c0_i32 : i32, i32, i32
  }
  func.func @transform_1(%arg0: i32, %arg1: i32) -> (i32, i32, i32) {
    %c1_i32 = arith.constant 1 : i32
    %0 = arith.addi %arg1, %c1_i32 : i32
    %c0_i32 = arith.constant 0 : i32
    %c0_i32_0 = arith.constant 0 : i32
    return %arg0, %0, %c0_i32 : i32, i32, i32
  }
  func.func @transform_2(%arg0: i32, %arg1: i32) -> (i32, i32, i32) {
    %c0_i32 = arith.constant 0 : i32
    %c0_i32_0 = arith.constant 0 : i32
    %c0_i32_1 = arith.constant 0 : i32
    %c0_i32_2 = arith.constant 0 : i32
    return %c0_i32, %c0_i32_0, %c0_i32_1 : i32, i32, i32
  }
  func.func @transform_3(%arg0: i32, %arg1: i32) -> (i32, i32) {
    %c0_i32 = arith.constant 0 : i32
    %c0_i32_0 = arith.constant 0 : i32
    %c0_i32_1 = arith.constant 0 : i32
    return %c0_i32, %c0_i32_0 : i32, i32
  }
  func.func @transform_4(%arg0: i32, %arg1: i32) -> (i32, i32, i32) {
    %c0_i32 = arith.constant 0 : i32
    %c0_i32_0 = arith.constant 0 : i32
    return %arg0, %arg1, %c0_i32 : i32, i32, i32
  }
}

</mosaic_0001>

<llo_original>
// kernel: conv_bn_leaky.1
$region0: #{conv_bn_leaky.1}
  #allocation0 [shape = 'u32[]', space=smem, size = 0x4, offset = 0x4, fixed_abs, tag = 'smem constant byte address 0x4 - core index']
  #allocation1 [shape = 'u32[144,128]{1,0:T(1,128)}', space=vmem, size = 0x12000, scoped, tag = 'internal scratch']
  #allocation2 [shape = 'f32[576,4]{1,0:T(8,128)}', space=vmem, size = 0x48000, scoped, tag = 'scratch operand']
  %s0 = inlined_call_operand.vmem [shape: bf16[2,576,4], index: 0, kind: input, shape index: {}, may-alias: {0,1}]
  %s1 = inlined_call_operand.vmem [shape: bf16[2,576,4], index: 1, kind: input, shape index: {}, may-alias: {0,1}]
  %s2 = inlined_call_operand.vmem [shape: bf16[9,4,128], index: 2, kind: input, shape index: {}]
  %s3 = inlined_call_operand.vmem [shape: f32[1,128], index: 3, kind: input, shape index: {}]
  %s4 = inlined_call_operand.vmem [shape: f32[2,288,128], index: 4, kind: output, shape index: {}]
  %s5 = sld [smem:[#allocation0]]
  $region49: #{conv_bn_leaky.1} parent=0
    _
  %s7 = ssub.s32 1, %s5
  %s8 = scalar_select 0, %s7, %s5
  loop: start=0, step=1, limit=4
  $region2: #{conv_bn_leaky.1} parent=0 // loop_pre_header
    _
  $region3: #{conv_bn_leaky.1} parent=0 // loop_header
    %s10 = sphi 0, %s14
    %p11 = scmp.ge.s32.totalorder %s10, 4
    %s17 = sphi 0, %s29
    %s18 = sphi 0, %s25
    %s19 = sphi 0, %s17
    %s20 = sphi 0, %s18
    %s21 = sphi 0, %s19
    %s22 = sphi 0, %s20
    %s34 = sphi 0, %s36
    %s37 = sphi 0, %s34
    %s38 = sphi 0, %s37
    %s54 = sphi 0, %s38
    %s64 = sphi 0, %s66
    %s67 = sphi 0, %s64
    %s68 = sphi 0, %s67
    %s84 = sphi 0, %s68
    %s88 = sphi 0, %s88
    %s90 = sphi 0, %s88
    %s91 = sphi 0, %s90
    %s105 = sphi 0, %s91
    %s109 = sphi 0, %s109
    %s111 = sphi 0, %s109
    %s112 = sphi 0, %s111
    %s126 = sphi 0, %s112
    %s134 = sphi 0, %s136
    %s137 = sphi 0, %s134
    %s138 = sphi 0, %s137
    %s154 = sphi 0, %s138
  $region4: #{conv_bn_leaky.1} parent=0 // loop_header_branch
    %13 = sbr.rel (%p11) target = $region8
  $region5: #{conv_bn_leaky.1} parent=0 // loop_body
    %s15 = ssub.s32 %s10, 1
    %s16 = ssub.s32 %s10, 2
    %s23 = sadd.s32 1, %s18
    %p24 = scmp.ge.s32.totalorder %s23, 1
    %s25 = scalar_select %p24, 0, %s23
    %s26 = sadd.s32 1, %s17
    %s27 = scalar_select %p24, %s26, %s17
    %p28 = scmp.ge.s32.totalorder %s27, 2
    %s29 = scalar_select %p28, 0, %s27
    %s30 = ssub.s32 %s17, %s29
    %s31 = ssub.s32 %s18, %s25
    %s32 = sor.u32 %s30, %s31
    %p33 = scmp.eq.s32.totalorder %s32, 0
    %s35 = sadd.s32 %s34, 1
    %s36 = scalar_select %p33, %s34, %s35
    %p39 = pneg %p33
    %p40 = scmp.eq.s32.totalorder %s10, 1
    %p41 = por %p39, %p40
    %p42 = scmp.ne.s32.totalorder %s34, %s37
    %p43 = scmp.eq.s32.totalorder %s10, 0
    %p44 = por %p42, %p43
    %p45 = scmp.ne.s32.totalorder %s34, %s37
    %p46 = scmp.eq.s32.totalorder %s15, 1
    %p47 = por %p45, %p46
    %p48 = scmp.ne.s32.totalorder %s37, %s38
    %p49 = scmp.eq.s32.totalorder %s15, 0
    %p50 = por %p48, %p49
    %p51 = scmp.ne.s32.totalorder %s37, %s38
    %p52 = scmp.eq.s32.totalorder %s16, 1
    %p53 = por %p51, %p52
    %p55 = scmp.ne.s32.totalorder %s38, %s54
    %p56 = scmp.eq.s32.totalorder %s16, 0
    %p57 = por %p55, %p56
    %s58 = sadd.s32 %s18, 1
    %s59 = sadd.s32 %s25, 1
    %s60 = ssub.s32 %s17, %s29
    %s61 = ssub.s32 %s58, %s59
    %s62 = sor.u32 %s60, %s61
    %p63 = scmp.eq.s32.totalorder %s62, 0
    %s65 = sadd.s32 %s64, 1
    %s66 = scalar_select %p63, %s64, %s65
    %p69 = pneg %p63
    %p70 = scmp.eq.s32.totalorder %s10, 1
    %p71 = por %p69, %p70
    %p72 = scmp.ne.s32.totalorder %s64, %s67
    %p73 = scmp.eq.s32.totalorder %s10, 0
    %p74 = por %p72, %p73
    %p75 = scmp.ne.s32.totalorder %s64, %s67
    %p76 = scmp.eq.s32.totalorder %s15, 1
    %p77 = por %p75, %p76
    %p78 = scmp.ne.s32.totalorder %s67, %s68
    %p79 = scmp.eq.s32.totalorder %s15, 0
    %p80 = por %p78, %p79
    %p81 = scmp.ne.s32.totalorder %s67, %s68
    %p82 = scmp.eq.s32.totalorder %s16, 1
    %p83 = por %p81, %p82
    %p85 = scmp.ne.s32.totalorder %s68, %s84
    %p86 = scmp.eq.s32.totalorder %s16, 0
    %p87 = por %p85, %p86
    %s89 = sadd.s32 %s88, 1
    %p92 = scmp.eq.s32.totalorder %s10, 1
    %p93 = scmp.ne.s32.totalorder %s88, %s90
    %p94 = scmp.eq.s32.totalorder %s10, 0
    %p95 = por %p93, %p94
    %p96 = scmp.ne.s32.totalorder %s88, %s90
    %p97 = scmp.eq.s32.totalorder %s15, 1
    %p98 = por %p96, %p97
    %p99 = scmp.ne.s32.totalorder %s90, %s91
    %p100 = scmp.eq.s32.totalorder %s15, 0
    %p101 = por %p99, %p100
    %p102 = scmp.ne.s32.totalorder %s90, %s91
    %p103 = scmp.eq.s32.totalorder %s16, 1
    %p104 = por %p102, %p103
    %p106 = scmp.ne.s32.totalorder %s91, %s105
    %p107 = scmp.eq.s32.totalorder %s16, 0
    %p108 = por %p106, %p107
    %s110 = sadd.s32 %s109, 1
    %p113 = scmp.eq.s32.totalorder %s10, 1
    %p114 = scmp.ne.s32.totalorder %s109, %s111
    %p115 = scmp.eq.s32.totalorder %s10, 0
    %p116 = por %p114, %p115
    %p117 = scmp.ne.s32.totalorder %s109, %s111
    %p118 = scmp.eq.s32.totalorder %s15, 1
    %p119 = por %p117, %p118
    %p120 = scmp.ne.s32.totalorder %s111, %s112
    %p121 = scmp.eq.s32.totalorder %s15, 0
    %p122 = por %p120, %p121
    %p123 = scmp.ne.s32.totalorder %s111, %s112
    %p124 = scmp.eq.s32.totalorder %s16, 1
    %p125 = por %p123, %p124
    %p127 = scmp.ne.s32.totalorder %s112, %s126
    %p128 = scmp.eq.s32.totalorder %s16, 0
    %p129 = por %p127, %p128
    %s130 = ssub.s32 %s17, %s29
    %s131 = ssub.s32 %s18, %s25
    %s132 = sor.u32 %s130, %s131
    %p133 = scmp.eq.s32.totalorder %s132, 0
    %s135 = sadd.s32 %s134, 1
    %s136 = scalar_select %p133, %s134, %s135
    %p139 = pneg %p133
    %p140 = scmp.eq.s32.totalorder %s10, 1
    %p141 = por %p139, %p140
    %p142 = scmp.ne.s32.totalorder %s134, %s137
    %p143 = scmp.eq.s32.totalorder %s10, 0
    %p144 = por %p142, %p143
    %p145 = scmp.ne.s32.totalorder %s134, %s137
    %p146 = scmp.eq.s32.totalorder %s15, 1
    %p147 = por %p145, %p146
    %p148 = scmp.ne.s32.totalorder %s137, %s138
    %p149 = scmp.eq.s32.totalorder %s15, 0
    %p150 = por %p148, %p149
    %p151 = scmp.ne.s32.totalorder %s137, %s138
    %p152 = scmp.eq.s32.totalorder %s16, 1
    %p153 = por %p151, %p152
    %p155 = scmp.ne.s32.totalorder %s138, %s154
    %p156 = scmp.eq.s32.totalorder %s16, 0
    %p157 = por %p155, %p156
    %p158 = scmp.le.s32.totalorder 1, %s10
    %p159 = scmp.lt.s32.totalorder %s10, 3
    %p160 = pnand %p158, %p159
    %p161 = pneg %p160
    // Predicated region
    $region9: #{conv_bn_leaky.1} parent=5 // pred_check
      _
    $region10: #{conv_bn_leaky.1} parent=5 // pred_check_branch
      %163 = sbr.rel (%p160) target = $region12
    $region11: #{conv_bn_leaky.1} parent=5 // pred_region
      %s164 = ssub.s32 %s10, 1
      // Predicated region
      $region13: #{conv_bn_leaky.1} parent=11 // pred_check
        %p165 = pneg %p101
      $region14: #{conv_bn_leaky.1} parent=11 // pred_check_branch
        %167 = sbr.rel (%p165) target = $region16
      $region15: #{conv_bn_leaky.1} parent=11 // pred_region
        _
      $region16: #{conv_bn_leaky.1} parent=11 // pred_fallthru
        _
      // Predicated region
      $region17: #{conv_bn_leaky.1} parent=11 // pred_check
        %p168 = pneg %p122
      $region18: #{conv_bn_leaky.1} parent=11 // pred_check_branch
        %170 = sbr.rel (%p168) target = $region20
      $region19: #{conv_bn_leaky.1} parent=11 // pred_region
        _
      $region20: #{conv_bn_leaky.1} parent=11 // pred_fallthru
        _
    $region12: #{conv_bn_leaky.1} parent=5 // pred_fallthru
      _
    %p171 = scmp.lt.s32.totalorder %s10, 2
    // Predicated region
    $region21: #{conv_bn_leaky.1} parent=5 // pred_check
      %p172 = pneg %p171
    $region22: #{conv_bn_leaky.1} parent=5 // pred_check_branch
      %174 = sbr.rel (%p172) target = $region24
    $region23: #{conv_bn_leaky.1} parent=5 // pred_region
      // Predicated region
      $region25: #{conv_bn_leaky.1} parent=23 // pred_check
        %p175 = pneg %p44
      $region26: #{conv_bn_leaky.1} parent=23 // pred_check_branch
        %177 = sbr.rel (%p175) target = $region28
      $region27: #{conv_bn_leaky.1} parent=23 // pred_region
        %s178 = smul.u32 36, %s18
        %p179 = scmp.lt.s32.totalorder %s17, 1
        %s180 = scalar_select %p179, %s17, 1
        %p181 = scmp.lt.s32.totalorder %s178, 71
        %s182 = scalar_select %p181, %s178, 71
        %s183 = smul.addr %s180, 72
        %s184 = sadd.s32 %s182, %s183
        %s185 = smul.addr %s184, 4
        %s186 = scalar_lea.vmem %s0, %s185
        %s187 = smul.u32 36, %s18
      $region28: #{conv_bn_leaky.1} parent=23 // pred_fallthru
        _
      // Predicated region
      $region29: #{conv_bn_leaky.1} parent=23 // pred_check
        %p188 = pneg %p74
      $region30: #{conv_bn_leaky.1} parent=23 // pred_check_branch
        %190 = sbr.rel (%p188) target = $region32
      $region31: #{conv_bn_leaky.1} parent=23 // pred_region
        %s191 = sadd.s32 %s18, 1
        %s192 = smul.u32 36, %s191
        %p193 = scmp.lt.s32.totalorder %s17, 1
        %s194 = scalar_select %p193, %s17, 1
        %p195 = scmp.lt.s32.totalorder %s192, 71
        %s196 = scalar_select %p195, %s192, 71
        %s197 = smul.addr %s194, 72
        %s198 = sadd.s32 %s196, %s197
        %s199 = smul.addr %s198, 4
        %s200 = scalar_lea.vmem %s1, %s199
        %s201 = sadd.s32 %s18, 1
        %s202 = smul.u32 36, %s201
      $region32: #{conv_bn_leaky.1} parent=23 // pred_fallthru
        _
    $region24: #{conv_bn_leaky.1} parent=5 // pred_fallthru
      _
    %p203 = scmp.le.s32.totalorder 1, %s10
    %p204 = scmp.lt.s32.totalorder %s10, 3
    %p205 = pnand %p203, %p204
    %p206 = pneg %p205
    // Predicated region
    $region33: #{conv_bn_leaky.1} parent=5 // pred_check
      _
    $region34: #{conv_bn_leaky.1} parent=5 // pred_check_branch
      %208 = sbr.rel (%p205) target = $region36
    $region35: #{conv_bn_leaky.1} parent=5 // pred_region
      %s209 = ssub.s32 %s10, 1
      %s210 = smul.u32 36, %s20
      %p211 = scmp.lt.s32.totalorder %s19, 1
      %s212 = scalar_select %p211, %s19, 1
      %p213 = scmp.lt.s32.totalorder %s210, 71
      %s214 = scalar_select %p213, %s210, 71
      %s215 = smul.addr %s212, 72
      %s216 = sadd.s32 %s214, %s215
      %s217 = smul.addr %s216, 4
      %s218 = scalar_lea.vmem %s0, %s217
      %p219 = pneg %p50
      %p220 = pneg %p47
      %s221 = sadd.s32 %s20, 1
      %s222 = smul.u32 36, %s221
      %p223 = scmp.lt.s32.totalorder %s19, 1
      %s224 = scalar_select %p223, %s19, 1
      %p225 = scmp.lt.s32.totalorder %s222, 71
      %s226 = scalar_select %p225, %s222, 71
      %s227 = smul.addr %s224, 72
      %s228 = sadd.s32 %s226, %s227
      %s229 = smul.addr %s228, 4
      %s230 = scalar_lea.vmem %s1, %s229
      %p231 = pneg %p80
      %p232 = pneg %p77
      %p233 = pneg %p101
      %p234 = pneg %p98
      %p235 = pneg %p122
      %p236 = pneg %p119
      %p237 = pneg %p150
      %p238 = pneg %p147
      %s239 = smul.u32 36, %s20
      %p240 = scmp.lt.s32.totalorder %s19, 1
      %s241 = scalar_select %p240, %s19, 1
      %p242 = scmp.lt.s32.totalorder %s239, 35
      %s243 = scalar_select %p242, %s239, 35
      %s244 = smul.addr %s241, 36
      %s245 = sadd.s32 %s243, %s244
      %s246 = smul.addr %s245, 8
      %s247 = scalar_lea.vmem %s4, %s246
      %s248 = smul.u32 36, %s20
      %p249 = scmp.lt.s32.totalorder %s19, 1
      %s250 = scalar_select %p249, %s19, 1
      %p251 = scmp.lt.s32.totalorder %s248, 71
      %s252 = scalar_select %p251, %s248, 71
      %s253 = smul.addr %s250, 72
      %s254 = sadd.s32 %s252, %s253
      %s255 = smul.addr %s254, 4
      %s256 = scalar_lea.vmem %s0, %s255
      %s257 = smul.u32 36, %s20
      %s258 = sadd.s32 %s20, 1
      %s259 = smul.u32 36, %s258
      %p260 = scmp.lt.s32.totalorder %s19, 1
      %s261 = scalar_select %p260, %s19, 1
      %p262 = scmp.lt.s32.totalorder %s259, 71
      %s263 = scalar_select %p262, %s259, 71
      %s264 = smul.addr %s261, 72
      %s265 = sadd.s32 %s263, %s264
      %s266 = smul.addr %s265, 4
      %s267 = scalar_lea.vmem %s1, %s266
      %s268 = sadd.s32 %s20, 1
      %s269 = smul.u32 36, %s268
      %s270 = smul.u32 36, %s20
      %p271 = scmp.lt.s32.totalorder %s19, 1
      %s272 = scalar_select %p271, %s19, 1
      %p273 = scmp.lt.s32.totalorder %s270, 35
      %s274 = scalar_select %p273, %s270, 35
      %s275 = smul.addr %s272, 36
      %s276 = sadd.s32 %s274, %s275
      %s277 = smul.addr %s276, 8
      %s278 = scalar_lea.vmem %s4, %s277
      %s279 = smul.u32 36, %s20
      %v281 = vld [vmem:[%s256] sm:$0xf]
      %v282 = vld [vmem:[%s256 + $0x4] sm:$0xf]
      %v283 = vld [vmem:[%s256 + $0x8] sm:$0xf]
      %v284 = vld [vmem:[%s256 + $0xc] sm:$0xf]
      %v285 = vld [vmem:[%s256 + $0x10] sm:$0xf]
      %v286 = vld [vmem:[%s256 + $0x14] sm:$0xf]
      %v287 = vld [vmem:[%s256 + $0x18] sm:$0xf]
      %v288 = vld [vmem:[%s256 + $0x1c] sm:$0xf]
      %v289 = vld [vmem:[%s256 + $0x20] sm:$0xf]
      %v290 = vld [vmem:[%s256 + $0x24] sm:$0xf]
      %v291 = vld [vmem:[%s256 + $0x28] sm:$0xf]
      %v292 = vld [vmem:[%s256 + $0x2c] sm:$0xf]
      %v293 = vld [vmem:[%s256 + $0x30] sm:$0xf]
      %v294 = vld [vmem:[%s256 + $0x34] sm:$0xf]
      %v295 = vld [vmem:[%s256 + $0x38] sm:$0xf]
      %v296 = vld [vmem:[%s256 + $0x3c] sm:$0xf]
      %v297 = vld [vmem:[%s256 + $0x40] sm:$0xf]
      %v298 = vld [vmem:[%s256 + $0x44] sm:$0xf]
      %v299 = vld [vmem:[%s256 + $0x48] sm:$0xf]
      %v300 = vld [vmem:[%s256 + $0x4c] sm:$0xf]
      %v301 = vld [vmem:[%s256 + $0x50] sm:$0xf]
      %v302 = vld [vmem:[%s256 + $0x54] sm:$0xf]
      %v303 = vld [vmem:[%s256 + $0x58] sm:$0xf]
      %v304 = vld [vmem:[%s256 + $0x5c] sm:$0xf]
      %v305 = vld [vmem:[%s256 + $0x60] sm:$0xf]
      %v306 = vld [vmem:[%s256 + $0x64] sm:$0xf]
      %v307 = vld [vmem:[%s256 + $0x68] sm:$0xf]
      %v308 = vld [vmem:[%s256 + $0x6c] sm:$0xf]
      %v309 = vld [vmem:[%s256 + $0x70] sm:$0xf]
      %v310 = vld [vmem:[%s256 + $0x74] sm:$0xf]
      %v311 = vld [vmem:[%s256 + $0x78] sm:$0xf]
      %v312 = vld [vmem:[%s256 + $0x7c] sm:$0xf]
      %v313 = vld [vmem:[%s256 + $0x80] sm:$0xf]
      %v314 = vld [vmem:[%s256 + $0x84] sm:$0xf]
      %v315 = vld [vmem:[%s256 + $0x88] sm:$0xf]
      %v316 = vld [vmem:[%s256 + $0x8c] sm:$0xf]
      %v317 = vunpack.c.l.bf16 %v281
      %v318 = vunpack.c.l.bf16 %v282
      %v319 = vunpack.c.l.bf16 %v283
      %v320 = vunpack.c.l.bf16 %v284
      %v321 = vunpack.c.l.bf16 %v285
      %v322 = vunpack.c.l.bf16 %v286
      %v323 = vunpack.c.l.bf16 %v287
      %v324 = vunpack.c.l.bf16 %v288
      %v325 = vunpack.c.l.bf16 %v289
      %v326 = vunpack.c.l.bf16 %v290
      %v327 = vunpack.c.l.bf16 %v291
      %v328 = vunpack.c.l.bf16 %v292
      %v329 = vunpack.c.l.bf16 %v293
      %v330 = vunpack.c.l.bf16 %v294
      %v331 = vunpack.c.l.bf16 %v295
      %v332 = vunpack.c.l.bf16 %v296
      %v333 = vunpack.c.l.bf16 %v297
      %v334 = vunpack.c.l.bf16 %v298
      %v335 = vunpack.c.l.bf16 %v299
      %v336 = vunpack.c.l.bf16 %v300
      %v337 = vunpack.c.l.bf16 %v301
      %v338 = vunpack.c.l.bf16 %v302
      %v339 = vunpack.c.l.bf16 %v303
      %v340 = vunpack.c.l.bf16 %v304
      %v341 = vunpack.c.l.bf16 %v305
      %v342 = vunpack.c.l.bf16 %v306
      %v343 = vunpack.c.l.bf16 %v307
      %v344 = vunpack.c.l.bf16 %v308
      %v345 = vunpack.c.l.bf16 %v309
      %v346 = vunpack.c.l.bf16 %v310
      %v347 = vunpack.c.l.bf16 %v311
      %v348 = vunpack.c.l.bf16 %v312
      %v349 = vunpack.c.l.bf16 %v313
      %v350 = vunpack.c.l.bf16 %v314
      %v351 = vunpack.c.l.bf16 %v315
      %v352 = vunpack.c.l.bf16 %v316
      %vm353 = vcmask 31744
      %354 = vst.msk [vmem:[#allocation2] sm:$0xff] %vm353, %v317
      %355 = vst.msk [vmem:[#allocation2 + $0x8] sm:$0xff] %vm353, %v318
      %356 = vst.msk [vmem:[#allocation2 + $0x10] sm:$0xff] %vm353, %v319
      %357 = vst.msk [vmem:[#allocation2 + $0x18] sm:$0xff] %vm353, %v320
      %358 = vst.msk [vmem:[#allocation2 + $0x20] sm:$0xff] %vm353, %v321
      %359 = vst.msk [vmem:[#allocation2 + $0x28] sm:$0xff] %vm353, %v322
      %360 = vst.msk [vmem:[#allocation2 + $0x30] sm:$0xff] %vm353, %v323
      %361 = vst.msk [vmem:[#allocation2 + $0x38] sm:$0xff] %vm353, %v324
      %362 = vst.msk [vmem:[#allocation2 + $0x40] sm:$0xff] %vm353, %v325
      %363 = vst.msk [vmem:[#allocation2 + $0x48] sm:$0xff] %vm353, %v326
      %364 = vst.msk [vmem:[#allocation2 + $0x50] sm:$0xff] %vm353, %v327
      %365 = vst.msk [vmem:[#allocation2 + $0x58] sm:$0xff] %vm353, %v328
      %366 = vst.msk [vmem:[#allocation2 + $0x60] sm:$0xff] %vm353, %v329
      %367 = vst.msk [vmem:[#allocation2 + $0x68] sm:$0xff] %vm353, %v330
      %368 = vst.msk [vmem:[#allocation2 + $0x70] sm:$0xff] %vm353, %v331
      %369 = vst.msk [vmem:[#allocation2 + $0x78] sm:$0xff] %vm353, %v332
      %370 = vst.msk [vmem:[#allocation2 + $0x80] sm:$0xff] %vm353, %v333
      %371 = vst.msk [vmem:[#allocation2 + $0x88] sm:$0xff] %vm353, %v334
      %372 = vst.msk [vmem:[#allocation2 + $0x90] sm:$0xff] %vm353, %v335
      %373 = vst.msk [vmem:[#allocation2 + $0x98] sm:$0xff] %vm353, %v336
      %374 = vst.msk [vmem:[#allocation2 + $0xa0] sm:$0xff] %vm353, %v337
      %375 = vst.msk [vmem:[#allocation2 + $0xa8] sm:$0xff] %vm353, %v338
      %376 = vst.msk [vmem:[#allocation2 + $0xb0] sm:$0xff] %vm353, %v339
      %377 = vst.msk [vmem:[#allocation2 + $0xb8] sm:$0xff] %vm353, %v340
      %378 = vst.msk [vmem:[#allocation2 + $0xc0] sm:$0xff] %vm353, %v341
      %379 = vst.msk [vmem:[#allocation2 + $0xc8] sm:$0xff] %vm353, %v342
      %380 = vst.msk [vmem:[#allocation2 + $0xd0] sm:$0xff] %vm353, %v343
      %381 = vst.msk [vmem:[#allocation2 + $0xd8] sm:$0xff] %vm353, %v344
      %382 = vst.msk [vmem:[#allocation2 + $0xe0] sm:$0xff] %vm353, %v345
      %383 = vst.msk [vmem:[#allocation2 + $0xe8] sm:$0xff] %vm353, %v346
      %384 = vst.msk [vmem:[#allocation2 + $0xf0] sm:$0xff] %vm353, %v347
      %385 = vst.msk [vmem:[#allocation2 + $0xf8] sm:$0xff] %vm353, %v348
      %386 = vst.msk [vmem:[#allocation2 + $0x100] sm:$0xff] %vm353, %v349
      %387 = vst.msk [vmem:[#allocation2 + $0x108] sm:$0xff] %vm353, %v350
      %388 = vst.msk [vmem:[#allocation2 + $0x110] sm:$0xff] %vm353, %v351
      %389 = vst.msk [vmem:[#allocation2 + $0x118] sm:$0xff] %vm353, %v352
      %v390 = vld [vmem:[%s267] sm:$0xf]
      %v391 = vld [vmem:[%s267 + $0x4] sm:$0xf]
      %v392 = vld [vmem:[%s267 + $0x8] sm:$0xf]
      %v393 = vld [vmem:[%s267 + $0xc] sm:$0xf]
      %v394 = vld [vmem:[%s267 + $0x10] sm:$0xf]
      %v395 = vld [vmem:[%s267 + $0x14] sm:$0xf]
      %v396 = vld [vmem:[%s267 + $0x18] sm:$0xf]
      %v397 = vld [vmem:[%s267 + $0x1c] sm:$0xf]
      %v398 = vld [vmem:[%s267 + $0x20] sm:$0xf]
      %v399 = vld [vmem:[%s267 + $0x24] sm:$0xf]
      %v400 = vld [vmem:[%s267 + $0x28] sm:$0xf]
      %v401 = vld [vmem:[%s267 + $0x2c] sm:$0xf]
      %v402 = vld [vmem:[%s267 + $0x30] sm:$0xf]
      %v403 = vld [vmem:[%s267 + $0x34] sm:$0xf]
      %v404 = vld [vmem:[%s267 + $0x38] sm:$0xf]
      %v405 = vld [vmem:[%s267 + $0x3c] sm:$0xf]
      %v406 = vld [vmem:[%s267 + $0x40] sm:$0xf]
      %v407 = vld [vmem:[%s267 + $0x44] sm:$0xf]
      %v408 = vld [vmem:[%s267 + $0x48] sm:$0xf]
      %v409 = vld [vmem:[%s267 + $0x4c] sm:$0xf]
      %v410 = vld [vmem:[%s267 + $0x50] sm:$0xf]
      %v411 = vld [vmem:[%s267 + $0x54] sm:$0xf]
      %v412 = vld [vmem:[%s267 + $0x58] sm:$0xf]
      %v413 = vld [vmem:[%s267 + $0x5c] sm:$0xf]
      %v414 = vld [vmem:[%s267 + $0x60] sm:$0xf]
      %v415 = vld [vmem:[%s267 + $0x64] sm:$0xf]
      %v416 = vld [vmem:[%s267 + $0x68] sm:$0xf]
      %v417 = vld [vmem:[%s267 + $0x6c] sm:$0xf]
      %v418 = vld [vmem:[%s267 + $0x70] sm:$0xf]
      %v419 = vld [vmem:[%s267 + $0x74] sm:$0xf]
      %v420 = vld [vmem:[%s267 + $0x78] sm:$0xf]
      %v421 = vld [vmem:[%s267 + $0x7c] sm:$0xf]
      %v422 = vld [vmem:[%s267 + $0x80] sm:$0xf]
      %v423 = vld [vmem:[%s267 + $0x84] sm:$0xf]
      %v424 = vld [vmem:[%s267 + $0x88] sm:$0xf]
      %v425 = vld [vmem:[%s267 + $0x8c] sm:$0xf]
      %v426 = vunpack.c.l.bf16 %v390
      %v427 = vunpack.c.l.bf16 %v391
      %v428 = vunpack.c.l.bf16 %v392
      %v429 = vunpack.c.l.bf16 %v393
      %v430 = vunpack.c.l.bf16 %v394
      %v431 = vunpack.c.l.bf16 %v395
      %v432 = vunpack.c.l.bf16 %v396
      %v433 = vunpack.c.l.bf16 %v397
      %v434 = vunpack.c.l.bf16 %v398
      %v435 = vunpack.c.l.bf16 %v399
      %v436 = vunpack.c.l.bf16 %v400
      %v437 = vunpack.c.l.bf16 %v401
      %v438 = vunpack.c.l.bf16 %v402
      %v439 = vunpack.c.l.bf16 %v403
      %v440 = vunpack.c.l.bf16 %v404
      %v441 = vunpack.c.l.bf16 %v405
      %v442 = vunpack.c.l.bf16 %v406
      %v443 = vunpack.c.l.bf16 %v407
      %v444 = vunpack.c.l.bf16 %v408
      %v445 = vunpack.c.l.bf16 %v409
      %v446 = vunpack.c.l.bf16 %v410
      %v447 = vunpack.c.l.bf16 %v411
      %v448 = vunpack.c.l.bf16 %v412
      %v449 = vunpack.c.l.bf16 %v413
      %v450 = vunpack.c.l.bf16 %v414
      %v451 = vunpack.c.l.bf16 %v415
      %v452 = vunpack.c.l.bf16 %v416
      %v453 = vunpack.c.l.bf16 %v417
      %v454 = vunpack.c.l.bf16 %v418
      %v455 = vunpack.c.l.bf16 %v419
      %v456 = vunpack.c.l.bf16 %v420
      %v457 = vunpack.c.l.bf16 %v421
      %v458 = vunpack.c.l.bf16 %v422
      %v459 = vunpack.c.l.bf16 %v423
      %v460 = vunpack.c.l.bf16 %v424
      %v461 = vunpack.c.l.bf16 %v425
      %462 = vst.msk [vmem:[#allocation2 + $0x120] sm:$0xff] %vm353, %v426
      %463 = vst.msk [vmem:[#allocation2 + $0x128] sm:$0xff] %vm353, %v427
      %464 = vst.msk [vmem:[#allocation2 + $0x130] sm:$0xff] %vm353, %v428
      %465 = vst.msk [vmem:[#allocation2 + $0x138] sm:$0xff] %vm353, %v429
      %466 = vst.msk [vmem:[#allocation2 + $0x140] sm:$0xff] %vm353, %v430
      %467 = vst.msk [vmem:[#allocation2 + $0x148] sm:$0xff] %vm353, %v431
      %468 = vst.msk [vmem:[#allocation2 + $0x150] sm:$0xff] %vm353, %v432
      %469 = vst.msk [vmem:[#allocation2 + $0x158] sm:$0xff] %vm353, %v433
      %470 = vst.msk [vmem:[#allocation2 + $0x160] sm:$0xff] %vm353, %v434
      %471 = vst.msk [vmem:[#allocation2 + $0x168] sm:$0xff] %vm353, %v435
      %472 = vst.msk [vmem:[#allocation2 + $0x170] sm:$0xff] %vm353, %v436
      %473 = vst.msk [vmem:[#allocation2 + $0x178] sm:$0xff] %vm353, %v437
      %474 = vst.msk [vmem:[#allocation2 + $0x180] sm:$0xff] %vm353, %v438
      %475 = vst.msk [vmem:[#allocation2 + $0x188] sm:$0xff] %vm353, %v439
      %476 = vst.msk [vmem:[#allocation2 + $0x190] sm:$0xff] %vm353, %v440
      %477 = vst.msk [vmem:[#allocation2 + $0x198] sm:$0xff] %vm353, %v441
      %478 = vst.msk [vmem:[#allocation2 + $0x1a0] sm:$0xff] %vm353, %v442
      %479 = vst.msk [vmem:[#allocation2 + $0x1a8] sm:$0xff] %vm353, %v443
      %480 = vst.msk [vmem:[#allocation2 + $0x1b0] sm:$0xff] %vm353, %v444
      %481 = vst.msk [vmem:[#allocation2 + $0x1b8] sm:$0xff] %vm353, %v445
      %482 = vst.msk [vmem:[#allocation2 + $0x1c0] sm:$0xff] %vm353, %v446
      %483 = vst.msk [vmem:[#allocation2 + $0x1c8] sm:$0xff] %vm353, %v447
      %484 = vst.msk [vmem:[#allocation2 + $0x1d0] sm:$0xff] %vm353, %v448
      %485 = vst.msk [vmem:[#allocation2 + $0x1d8] sm:$0xff] %vm353, %v449
      %486 = vst.msk [vmem:[#allocation2 + $0x1e0] sm:$0xff] %vm353, %v450
      %487 = vst.msk [vmem:[#allocation2 + $0x1e8] sm:$0xff] %vm353, %v451
      %488 = vst.msk [vmem:[#allocation2 + $0x1f0] sm:$0xff] %vm353, %v452
      %489 = vst.msk [vmem:[#allocation2 + $0x1f8] sm:$0xff] %vm353, %v453
      %490 = vst.msk [vmem:[#allocation2 + $0x200] sm:$0xff] %vm353, %v454
      %491 = vst.msk [vmem:[#allocation2 + $0x208] sm:$0xff] %vm353, %v455
      %492 = vst.msk [vmem:[#allocation2 + $0x210] sm:$0xff] %vm353, %v456
      %493 = vst.msk [vmem:[#allocation2 + $0x218] sm:$0xff] %vm353, %v457
      %494 = vst.msk [vmem:[#allocation2 + $0x220] sm:$0xff] %vm353, %v458
      %495 = vst.msk [vmem:[#allocation2 + $0x228] sm:$0xff] %vm353, %v459
      %496 = vst.msk [vmem:[#allocation2 + $0x230] sm:$0xff] %vm353, %v460
      %497 = vst.msk [vmem:[#allocation2 + $0x238] sm:$0xff] %vm353, %v461
      %v498 = vld [vmem:[#allocation2] sm:$0xff]
      %v499 = vld [vmem:[#allocation2 + $0x8] sm:$0xff]
      %v500 = vld [vmem:[#allocation2 + $0x10] sm:$0xff]
      %v501 = vld [vmem:[#allocation2 + $0x18] sm:$0xff]
      %v502 = vld [vmem:[#allocation2 + $0x20] sm:$0xff]
      %v503 = vld [vmem:[#allocation2 + $0x28] sm:$0xff]
      %v504 = vld [vmem:[#allocation2 + $0x30] sm:$0xff]
      %v505 = vld [vmem:[#allocation2 + $0x38] sm:$0xff]
      %v506 = vld [vmem:[#allocation2 + $0x40] sm:$0xff]
      %v507 = vld [vmem:[#allocation2 + $0x48] sm:$0xff]
      %v508 = vld [vmem:[#allocation2 + $0x50] sm:$0xff]
      %v509 = vld [vmem:[#allocation2 + $0x58] sm:$0xff]
      %v510 = vld [vmem:[#allocation2 + $0x60] sm:$0xff]
      %v511 = vld [vmem:[#allocation2 + $0x68] sm:$0xff]
      %v512 = vld [vmem:[#allocation2 + $0x70] sm:$0xff]
      %v513 = vld [vmem:[#allocation2 + $0x78] sm:$0xff]
      %v514 = vld [vmem:[#allocation2 + $0x80] sm:$0xff]
      %v515 = vld [vmem:[#allocation2 + $0x88] sm:$0xff]
      %v516 = vld [vmem:[#allocation2 + $0x90] sm:$0xff]
      %v517 = vld [vmem:[#allocation2 + $0x98] sm:$0xff]
      %v518 = vld [vmem:[#allocation2 + $0xa0] sm:$0xff]
      %v519 = vld [vmem:[#allocation2 + $0xa8] sm:$0xff]
      %v520 = vld [vmem:[#allocation2 + $0xb0] sm:$0xff]
      %v521 = vld [vmem:[#allocation2 + $0xb8] sm:$0xff]
      %v522 = vld [vmem:[#allocation2 + $0xc0] sm:$0xff]
      %v523 = vld [vmem:[#allocation2 + $0xc8] sm:$0xff]
      %v524 = vld [vmem:[#allocation2 + $0xd0] sm:$0xff]
      %v525 = vld [vmem:[#allocation2 + $0xd8] sm:$0xff]
      %v526 = vld [vmem:[#allocation2 + $0xe0] sm:$0xff]
      %v527 = vld [vmem:[#allocation2 + $0xe8] sm:$0xff]
      %v528 = vld [vmem:[#allocation2 + $0xf0] sm:$0xff]
      %v529 = vld [vmem:[#allocation2 + $0xf8] sm:$0xff]
      %v530 = vld [vmem:[#allocation2 + $0x100] sm:$0xff]
      %v531 = vld [vmem:[#allocation2 + $0x108] sm:$0xff]
      %v532 = vld [vmem:[#allocation2 + $0x110] sm:$0xff]
      %v533 = vld [vmem:[#allocation2 + $0x118] sm:$0xff]
      %v534 = vpack.c.bf16 %v499, %v498
      %v535 = vpack.c.bf16 %v501, %v500
      %v536 = vpack.c.bf16 %v503, %v502
      %v537 = vpack.c.bf16 %v505, %v504
      %v538 = vpack.c.bf16 %v507, %v506
      %v539 = vpack.c.bf16 %v509, %v508
      %v540 = vpack.c.bf16 %v511, %v510
      %v541 = vpack.c.bf16 %v513, %v512
      %v542 = vpack.c.bf16 %v515, %v514
      %v543 = vpack.c.bf16 %v517, %v516
      %v544 = vpack.c.bf16 %v519, %v518
      %v545 = vpack.c.bf16 %v521, %v520
      %v546 = vpack.c.bf16 %v523, %v522
      %v547 = vpack.c.bf16 %v525, %v524
      %v548 = vpack.c.bf16 %v527, %v526
      %v549 = vpack.c.bf16 %v529, %v528
      %v550 = vpack.c.bf16 %v531, %v530
      %v551 = vpack.c.bf16 %v533, %v532
      %v552 = vld [vmem:[%s2] sm:$0x3]
      %v553 = vld [vmem:[#allocation2 + $0x1] sm:$0xff]
      %v554 = vld [vmem:[#allocation2 + $0x9] sm:$0xff]
      %v555 = vld [vmem:[#allocation2 + $0x11] sm:$0xff]
      %v556 = vld [vmem:[#allocation2 + $0x19] sm:$0xff]
      %v557 = vld [vmem:[#allocation2 + $0x21] sm:$0xff]
      %v558 = vld [vmem:[#allocation2 + $0x29] sm:$0xff]
      %v559 = vld [vmem:[#allocation2 + $0x31] sm:$0xff]
      %v560 = vld [vmem:[#allocation2 + $0x39] sm:$0xff]
      %v561 = vld [vmem:[#allocation2 + $0x41] sm:$0xff]
      %v562 = vld [vmem:[#allocation2 + $0x49] sm:$0xff]
      %v563 = vld [vmem:[#allocation2 + $0x51] sm:$0xff]
      %v564 = vld [vmem:[#allocation2 + $0x59] sm:$0xff]
      %v565 = vld [vmem:[#allocation2 + $0x61] sm:$0xff]
      %v566 = vld [vmem:[#allocation2 + $0x69] sm:$0xff]
      %v567 = vld [vmem:[#allocation2 + $0x71] sm:$0xff]
      %v568 = vld [vmem:[#allocation2 + $0x79] sm:$0xff]
      %v569 = vld [vmem:[#allocation2 + $0x81] sm:$0xff]
      %v570 = vld [vmem:[#allocation2 + $0x89] sm:$0xff]
      %v571 = vld [vmem:[#allocation2 + $0x91] sm:$0xff]
      %v572 = vld [vmem:[#allocation2 + $0x99] sm:$0xff]
      %v573 = vld [vmem:[#allocation2 + $0xa1] sm:$0xff]
      %v574 = vld [vmem:[#allocation2 + $0xa9] sm:$0xff]
      %v575 = vld [vmem:[#allocation2 + $0xb1] sm:$0xff]
      %v576 = vld [vmem:[#allocation2 + $0xb9] sm:$0xff]
      %v577 = vld [vmem:[#allocation2 + $0xc1] sm:$0xff]
      %v578 = vld [vmem:[#allocation2 + $0xc9] sm:$0xff]
      %v579 = vld [vmem:[#allocation2 + $0xd1] sm:$0xff]
      %v580 = vld [vmem:[#allocation2 + $0xd9] sm:$0xff]
      %v581 = vld [vmem:[#allocation2 + $0xe1] sm:$0xff]
      %v582 = vld [vmem:[#allocation2 + $0xe9] sm:$0xff]
      %v583 = vld [vmem:[#allocation2 + $0xf1] sm:$0xff]
      %v584 = vld [vmem:[#allocation2 + $0xf9] sm:$0xff]
      %v585 = vld [vmem:[#allocation2 + $0x101] sm:$0xff]
      %v586 = vld [vmem:[#allocation2 + $0x109] sm:$0xff]
      %v587 = vld [vmem:[#allocation2 + $0x111] sm:$0xff]
      %v588 = vld [vmem:[#allocation2 + $0x119] sm:$0xff]
      %v589 = vpack.c.bf16 %v554, %v553
      %v590 = vpack.c.bf16 %v556, %v555
      %v591 = vpack.c.bf16 %v558, %v557
      %v592 = vpack.c.bf16 %v560, %v559
      %v593 = vpack.c.bf16 %v562, %v561
      %v594 = vpack.c.bf16 %v564, %v563
      %v595 = vpack.c.bf16 %v566, %v565
      %v596 = vpack.c.bf16 %v568, %v567
      %v597 = vpack.c.bf16 %v570, %v569
      %v598 = vpack.c.bf16 %v572, %v571
      %v599 = vpack.c.bf16 %v574, %v573
      %v600 = vpack.c.bf16 %v576, %v575
      %v601 = vpack.c.bf16 %v578, %v577
      %v602 = vpack.c.bf16 %v580, %v579
      %v603 = vpack.c.bf16 %v582, %v581
      %v604 = vpack.c.bf16 %v584, %v583
      %v605 = vpack.c.bf16 %v586, %v585
      %v606 = vpack.c.bf16 %v588, %v587
      %s607 = scalar_lea.vmem %s2, 2
      %v608 = vld [vmem:[%s607] sm:$0x3]
      %v610 = vsel %vm353, %v589, 0
      %v613 = vsel %vm353, %v590, 0
      %v616 = vsel %vm353, %v591, 0
      %v619 = vsel %vm353, %v592, 0
      %v622 = vsel %vm353, %v593, 0
      %v625 = vsel %vm353, %v594, 0
      %v628 = vsel %vm353, %v595, 0
      %v631 = vsel %vm353, %v596, 0
      %v634 = vsel %vm353, %v597, 0
      %v637 = vsel %vm353, %v598, 0
      %v640 = vsel %vm353, %v599, 0
      %v643 = vsel %vm353, %v600, 0
      %v646 = vsel %vm353, %v601, 0
      %v649 = vsel %vm353, %v602, 0
      %v652 = vsel %vm353, %v603, 0
      %v655 = vsel %vm353, %v604, 0
      %v658 = vsel %vm353, %v605, 0
      %v661 = vsel %vm353, %v606, 0
      %vm663 = vcmask 1041408
      %v665 = vsel %vm663, %v608, 0
      %667 = vmatprep.subr.bf16.mxu0 0
      %668 = vmatpush1.bf16.msra.mxu0 %v665
      %669 = vmatprep.subr.bf16.mxu0 0
      %670 = vmatpush1.bf16.msra.mxu0 0
      %671 = vmatprep.subr.bf16.mxu0 0
      %672 = vmatpush1.bf16.msra.mxu0 0
      %673 = vmatprep.subr.bf16.mxu0 0
      %674 = vmatpush1.bf16.msra.mxu0 0
      %675 = vmatprep.subr.bf16.mxu0 0
      %676 = vmatpush1.bf16.msra.mxu0 0
      %677 = vmatprep.subr.bf16.mxu0 0
      %678 = vmatpush1.bf16.msra.mxu0 0
      %679 = vmatprep.subr.bf16.mxu0 0
      %680 = vmatpush1.bf16.msra.mxu0 0
      %681 = vmatprep.subr.bf16.mxu0 0
      %682 = vmatpush1.bf16.msra.mxu0 0
      %683 = vmatprep.subr.bf16.mxu0 0
      %684 = vmatpush1.bf16.msra.mxu0 0
      %685 = vmatprep.subr.bf16.mxu0 0
      %686 = vmatpush1.bf16.msra.mxu0 0
      %687 = vmatprep.subr.bf16.mxu0 0
      %688 = vmatpush1.bf16.msra.mxu0 0
      %689 = vmatprep.subr.bf16.mxu0 0
      %690 = vmatpush1.bf16.msra.mxu0 0
      %691 = vmatprep.subr.bf16.mxu0 0
      %692 = vmatpush1.bf16.msra.mxu0 0
      %693 = vmatprep.subr.bf16.mxu0 0
      %694 = vmatpush1.bf16.msra.mxu0 0
      %695 = vmatprep.subr.bf16.mxu0 0
      %696 = vmatpush1.bf16.msra.mxu0 0
      %697 = vmatprep.subr.bf16.mxu0 0
      %698 = vmatpush1.bf16.msra.mxu0 0
      %699 = vmatprep.mubr.bf16.mxu0 0
      %700 = vmatmul.mubr.bf16.gmra.mrb[0].mxu0 %v610
      %v701 = vpop.f32.mrb[0].mxu0
      %v702 = vadd.f32 0.0, %v701
      %v703 = vpop.f32.mrb[0].mxu0
      %v704 = vpop.f32.mrb[0].mxu0
      %v705 = vadd.f32 0.0, %v704
      %v706 = vpop.f32.mrb[0].mxu0
      %707 = vmatprep.mubr.bf16.mxu0 0
      %708 = vmatmul.mubr.bf16.gmra.mrb[0].mxu0 %v613
      %v709 = vpop.f32.mrb[0].mxu0
      %v710 = vadd.f32 0.0, %v709
      %v711 = vpop.f32.mrb[0].mxu0
      %v712 = vpop.f32.mrb[0].mxu0
      %v713 = vadd.f32 0.0, %v712
      %v714 = vpop.f32.mrb[0].mxu0
      %715 = vmatprep.mubr.bf16.mxu0 0
      %716 = vmatmul.mubr.bf16.gmra.mrb[0].mxu0 %v616
      %v717 = vpop.f32.mrb[0].mxu0
      %v718 = vadd.f32 0.0, %v717
      %v719 = vpop.f32.mrb[0].mxu0
      %v720 = vpop.f32.mrb[0].mxu0
      %v721 = vadd.f32 0.0, %v720
      %v722 = vpop.f32.mrb[0].mxu0
      %723 = vmatprep.mubr.bf16.mxu0 0
      %724 = vmatmul.mubr.bf16.gmra.mrb[0].mxu0 %v619
      %v725 = vpop.f32.mrb[0].mxu0
      %v726 = vadd.f32 0.0, %v725
      %v727 = vpop.f32.mrb[0].mxu0
      %v728 = vpop.f32.mrb[0].mxu0
      %v729 = vadd.f32 0.0, %v728
      %v730 = vpop.f32.mrb[0].mxu0
      %731 = vmatprep.mubr.bf16.mxu0 0
      %732 = vmatmul.mubr.bf16.gmra.mrb[0].mxu0 %v622
      %v733 = vpop.f32.mrb[0].mxu0
      %v734 = vadd.f32 0.0, %v733
      %v735 = vpop.f32.mrb[0].mxu0
      %v736 = vpop.f32.mrb[0].mxu0
      %v737 = vadd.f32 0.0, %v736
      %v738 = vpop.f32.mrb[0].mxu0
      %739 = vmatprep.mubr.bf16.mxu0 0
      %740 = vmatmul.mubr.bf16.gmra.mrb[0].mxu0 %v625
      %v741 = vpop.f32.mrb[0].mxu0
      %v742 = vadd.f32 0.0, %v741
      %v743 = vpop.f32.mrb[0].mxu0
      %v744 = vpop.f32.mrb[0].mxu0
      %v745 = vadd.f32 0.0, %v744
      %v746 = vpop.f32.mrb[0].mxu0
      %747 = vmatprep.mubr.bf16.mxu0 0
      %748 = vmatmul.mubr.bf16.gmra.mrb[0].mxu0 %v628
      %v749 = vpop.f32.mrb[0].mxu0
      %v750 = vadd.f32 0.0, %v749
      %v751 = vpop.f32.mrb[0].mxu0
      %v752 = vpop.f32.mrb[0].mxu0
      %v753 = vadd.f32 0.0, %v752
      %v754 = vpop.f32.mrb[0].mxu0
      %755 = vmatprep.mubr.bf16.mxu0 0
      %756 = vmatmul.mubr.bf16.gmra.mrb[0].mxu0 %v631
      %v757 = vpop.f32.mrb[0].mxu0
      %v758 = vadd.f32 0.0, %v757
      %v759 = vpop.f32.mrb[0].mxu0
      %v760 = vpop.f32.mrb[0].mxu0
      %v761 = vadd.f32 0.0, %v760
      %v762 = vpop.f32.mrb[0].mxu0
      %763 = vmatprep.mubr.bf16.mxu0 0
      %764 = vmatmul.mubr.bf16.gmra.mrb[0].mxu0 %v634
      %v765 = vpop.f32.mrb[0].mxu0
      %v766 = vadd.f32 0.0, %v765
      %v767 = vpop.f32.mrb[0].mxu0
      %v768 = vpop.f32.mrb[0].mxu0
      %v769 = vadd.f32 0.0, %v768
      %v770 = vpop.f32.mrb[0].mxu0
      %771 = vmatprep.mubr.bf16.mxu0 0
      %772 = vmatmul.mubr.bf16.gmra.mrb[0].mxu0 %v637
      %v773 = vpop.f32.mrb[0].mxu0
      %v774 = vadd.f32 0.0, %v773
      %v775 = vpop.f32.mrb[0].mxu0
      %v776 = vpop.f32.mrb[0].mxu0
      %v777 = vadd.f32 0.0, %v776
      %v778 = vpop.f32.mrb[0].mxu0
      %779 = vmatprep.mubr.bf16.mxu0 0
      %780 = vmatmul.mubr.bf16.gmra.mrb[0].mxu0 %v640
      %v781 = vpop.f32.mrb[0].mxu0
      %v782 = vadd.f32 0.0, %v781
      %v783 = vpop.f32.mrb[0].mxu0
      %v784 = vpop.f32.mrb[0].mxu0
      %v785 = vadd.f32 0.0, %v784
      %v786 = vpop.f32.mrb[0].mxu0
      %787 = vmatprep.mubr.bf16.mxu0 0
      %788 = vmatmul.mubr.bf16.gmra.mrb[0].mxu0 %v643
      %v789 = vpop.f32.mrb[0].mxu0
      %v790 = vadd.f32 0.0, %v789
      %v791 = vpop.f32.mrb[0].mxu0
      %v792 = vpop.f32.mrb[0].mxu0
      %v793 = vadd.f32 0.0, %v792
      %v794 = vpop.f32.mrb[0].mxu0
      %795 = vmatprep.mubr.bf16.mxu0 0
      %796 = vmatmul.mubr.bf16.gmra.mrb[0].mxu0 %v646
      %v797 = vpop.f32.mrb[0].mxu0
      %v798 = vadd.f32 0.0, %v797
      %v799 = vpop.f32.mrb[0].mxu0
      %v800 = vpop.f32.mrb[0].mxu0
      %v801 = vadd.f32 0.0, %v800
      %v802 = vpop.f32.mrb[0].mxu0
      %803 = vmatprep.mubr.bf16.mxu0 0
      %804 = vmatmul.mubr.bf16.gmra.mrb[0].mxu0 %v649
      %v805 = vpop.f32.mrb[0].mxu0
      %v806 = vadd.f32 0.0, %v805
      %v807 = vpop.f32.mrb[0].mxu0
      %v808 = vpop.f32.mrb[0].mxu0
      %v809 = vadd.f32 0.0, %v808
      %v810 = vpop.f32.mrb[0].mxu0
      %811 = vmatprep.mubr.bf16.mxu0 0
      %812 = vmatmul.mubr.bf16.gmra.mrb[0].mxu0 %v652
      %v813 = vpop.f32.mrb[0].mxu0
      %v814 = vadd.f32 0.0, %v813
      %v815 = vpop.f32.mrb[0].mxu0
      %v816 = vpop.f32.mrb[0].mxu0
      %v817 = vadd.f32 0.0, %v816
      %v818 = vpop.f32.mrb[0].mxu0
      %819 = vmatprep.mubr.bf16.mxu0 0
      %820 = vmatmul.mubr.bf16.gmra.mrb[0].mxu0 %v655
      %v821 = vpop.f32.mrb[0].mxu0
      %v822 = vadd.f32 0.0, %v821
      %v823 = vpop.f32.mrb[0].mxu0
      %v824 = vpop.f32.mrb[0].mxu0
      %v825 = vadd.f32 0.0, %v824
      %v826 = vpop.f32.mrb[0].mxu0
      %827 = vmatprep.mubr.bf16.mxu0 0
      %828 = vmatmul.mubr.bf16.gmra.mrb[0].mxu0 %v658
      %v829 = vpop.f32.mrb[0].mxu0
      %v830 = vadd.f32 0.0, %v829
      %v831 = vpop.f32.mrb[0].mxu0
      %v832 = vpop.f32.mrb[0].mxu0
      %v833 = vadd.f32 0.0, %v832
      %v834 = vpop.f32.mrb[0].mxu0
      %835 = vmatprep.mubr.bf16.mxu0 0
      %836 = vmatmul.mubr.bf16.gmra.mrb[0].mxu0 %v661
      %v837 = vpop.f32.mrb[0].mxu0
      %v838 = vadd.f32 0.0, %v837
      %v839 = vpop.f32.mrb[0].mxu0
      %v840 = vpop.f32.mrb[0].mxu0
      %v841 = vadd.f32 0.0, %v840
      %v842 = vpop.f32.mrb[0].mxu0
      %843 = vdwg.mxu0
      %v845 = vsel %vm353, %v534, 0
      %v848 = vsel %vm353, %v535, 0
      %v851 = vsel %vm353, %v536, 0
      %v854 = vsel %vm353, %v537, 0
      %v857 = vsel %vm353, %v538, 0
      %v860 = vsel %vm353, %v539, 0
      %v863 = vsel %vm353, %v540, 0
      %v866 = vsel %vm353, %v541, 0
      %v869 = vsel %vm353, %v542, 0
      %v872 = vsel %vm353, %v543, 0
      %v875 = vsel %vm353, %v544, 0
      %v878 = vsel %vm353, %v545, 0
      %v881 = vsel %vm353, %v546, 0
      %v884 = vsel %vm353, %v547, 0
      %v887 = vsel %vm353, %v548, 0
      %v890 = vsel %vm353, %v549, 0
      %v893 = vsel %vm353, %v550, 0
      %v896 = vsel %vm353, %v551, 0
      %v899 = vsel %vm663, %v552, 0
      %901 = vmatprep.subr.bf16.mxu0 0
      %902 = vmatpush1.bf16.msra.mxu0 %v899
      %903 = vmatprep.subr.bf16.mxu0 0
      %904 = vmatpush1.bf16.msra.mxu0 0
      %905 = vmatprep.subr.bf16.mxu0 0
      %906 = vmatpush1.bf16.msra.mxu0 0
      %907 = vmatprep.subr.bf16.mxu0 0
      %908 = vmatpush1.bf16.msra.mxu0 0
      %909 = vmatprep.subr.bf16.mxu0 0
      %910 = vmatpush1.bf16.msra.mxu0 0
      %911 = vmatprep.subr.bf16.mxu0 0
      %912 = vmatpush1.bf16.msra.mxu0 0
      %913 = vmatprep.subr.bf16.mxu0 0
      %914 = vmatpush1.bf16.msra.mxu0 0
      %915 = vmatprep.subr.bf16.mxu0 0
      %916 = vmatpush1.bf16.msra.mxu0 0
      %917 = vmatprep.subr.bf16.mxu0 0
      %918 = vmatpush1.bf16.msra.mxu0 0
      %919 = vmatprep.subr.bf16.mxu0 0
      %920 = vmatpush1.bf16.msra.mxu0 0
      %921 = vmatprep.subr.bf16.mxu0 0
      %922 = vmatpush1.bf16.msra.mxu0 0
      %923 = vmatprep.subr.bf16.mxu0 0
      %924 = vmatpush1.bf16.msra.mxu0 0
      %925 = vmatprep.subr.bf16.mxu0 0
      %926 = vmatpush1.bf16.msra.mxu0 0
      %927 = vmatprep.subr.bf16.mxu0 0
      %928 = vmatpush1.bf16.msra.mxu0 0
      %929 = vmatprep.subr.bf16.mxu0 0
      %930 = vmatpush1.bf16.msra.mxu0 0
      %931 = vmatprep.subr.bf16.mxu0 0
      %932 = vmatpush1.bf16.msra.mxu0 0
      %933 = vmatprep.mubr.bf16.mxu0 0
      %934 = vmatmul.mubr.bf16.gmra.mrb[0].mxu0 %v845
      %v935 = vpop.f32.mrb[0].mxu0
      %v936 = vadd.f32 %v702, %v935
      %v937 = vpop.f32.mrb[0].mxu0
      %v938 = vpop.f32.mrb[0].mxu0
      %v939 = vadd.f32 %v705, %v938
      %v940 = vpop.f32.mrb[0].mxu0
      %941 = vmatprep.mubr.bf16.mxu0 0
      %942 = vmatmul.mubr.bf16.gmra.mrb[0].mxu0 %v848
      %v943 = vpop.f32.mrb[0].mxu0
      %v944 = vadd.f32 %v710, %v943
      %v945 = vpop.f32.mrb[0].mxu0
      %v946 = vpop.f32.mrb[0].mxu0
      %v947 = vadd.f32 %v713, %v946
      %v948 = vpop.f32.mrb[0].mxu0
      %949 = vmatprep.mubr.bf16.mxu0 0
      %950 = vmatmul.mubr.bf16.gmra.mrb[0].mxu0 %v851
      %v951 = vpop.f32.mrb[0].mxu0
      %v952 = vadd.f32 %v718, %v951
      %v953 = vpop.f32.mrb[0].mxu0
      %v954 = vpop.f32.mrb[0].mxu0
      %v955 = vadd.f32 %v721, %v954
      %v956 = vpop.f32.mrb[0].mxu0
      %957 = vmatprep.mubr.bf16.mxu0 0
      %958 = vmatmul.mubr.bf16.gmra.mrb[0].mxu0 %v854
      %v959 = vpop.f32.mrb[0].mxu0
      %v960 = vadd.f32 %v726, %v959
      %v961 = vpop.f32.mrb[0].mxu0
      %v962 = vpop.f32.mrb[0].mxu0
      %v963 = vadd.f32 %v729, %v962
      %v964 = vpop.f32.mrb[0].mxu0
      %965 = vmatprep.mubr.bf16.mxu0 0
      %966 = vmatmul.mubr.bf16.gmra.mrb[0].mxu0 %v857
      %v967 = vpop.f32.mrb[0].mxu0
      %v968 = vadd.f32 %v734, %v967
      %v969 = vpop.f32.mrb[0].mxu0
      %v970 = vpop.f32.mrb[0].mxu0
      %v971 = vadd.f32 %v737, %v970
      %v972 = vpop.f32.mrb[0].mxu0
      %973 = vmatprep.mubr.bf16.mxu0 0
      %974 = vmatmul.mubr.bf16.gmra.mrb[0].mxu0 %v860
      %v975 = vpop.f32.mrb[0].mxu0
      %v976 = vadd.f32 %v742, %v975
      %v977 = vpop.f32.mrb[0].mxu0
      %v978 = vpop.f32.mrb[0].mxu0
      %v979 = vadd.f32 %v745, %v978
      %v980 = vpop.f32.mrb[0].mxu0
      %981 = vmatprep.mubr.bf16.mxu0 0
      %982 = vmatmul.mubr.bf16.gmra.mrb[0].mxu0 %v863
      %v983 = vpop.f32.mrb[0].mxu0
      %v984 = vadd.f32 %v750, %v983
      %v985 = vpop.f32.mrb[0].mxu0
      %v986 = vpop.f32.mrb[0].mxu0
      %v987 = vadd.f32 %v753, %v986
      %v988 = vpop.f32.mrb[0].mxu0
      %989 = vmatprep.mubr.bf16.mxu0 0
      %990 = vmatmul.mubr.bf16.gmra.mrb[0].mxu0 %v866
      %v991 = vpop.f32.mrb[0].mxu0
      %v992 = vadd.f32 %v758, %v991
      %v993 = vpop.f32.mrb[0].mxu0
      %v994 = vpop.f32.mrb[0].mxu0
      %v995 = vadd.f32 %v761, %v994
      %v996 = vpop.f32.mrb[0].mxu0
      %997 = vmatprep.mubr.bf16.mxu0 0
      %998 = vmatmul.mubr.bf16.gmra.mrb[0].mxu0 %v869
      %v999 = vpop.f32.mrb[0].mxu0
      %v1000 = vadd.f32 %v766, %v999
      %v1001 = vpop.f32.mrb[0].mxu0
      %v1002 = vpop.f32.mrb[0].mxu0
      %v1003 = vadd.f32 %v769, %v1002
      %v1004 = vpop.f32.mrb[0].mxu0
      %1005 = vmatprep.mubr.bf16.mxu0 0
      %1006 = vmatmul.mubr.bf16.gmra.mrb[0].mxu0 %v872
      %v1007 = vpop.f32.mrb[0].mxu0
      %v1008 = vadd.f32 %v774, %v1007
      %v1009 = vpop.f32.mrb[0].mxu0
      %v1010 = vpop.f32.mrb[0].mxu0
      %v1011 = vadd.f32 %v777, %v1010
      %v1012 = vpop.f32.mrb[0].mxu0
      %1013 = vmatprep.mubr.bf16.mxu0 0
      %1014 = vmatmul.mubr.bf16.gmra.mrb[0].mxu0 %v875
      %v1015 = vpop.f32.mrb[0].mxu0
      %v1016 = vadd.f32 %v782, %v1015
      %v1017 = vpop.f32.mrb[0].mxu0
      %v1018 = vpop.f32.mrb[0].mxu0
      %v1019 = vadd.f32 %v785, %v1018
      %v1020 = vpop.f32.mrb[0].mxu0
      %1021 = vmatprep.mubr.bf16.mxu0 0
      %1022 = vmatmul.mubr.bf16.gmra.mrb[0].mxu0 %v878
      %v1023 = vpop.f32.mrb[0].mxu0
      %v1024 = vadd.f32 %v790, %v1023
      %v1025 = vpop.f32.mrb[0].mxu0
      %v1026 = vpop.f32.mrb[0].mxu0
      %v1027 = vadd.f32 %v793, %v1026
      %v1028 = vpop.f32.mrb[0].mxu0
      %1029 = vmatprep.mubr.bf16.mxu0 0
      %1030 = vmatmul.mubr.bf16.gmra.mrb[0].mxu0 %v881
      %v1031 = vpop.f32.mrb[0].mxu0
      %v1032 = vadd.f32 %v798, %v1031
      %v1033 = vpop.f32.mrb[0].mxu0
      %v1034 = vpop.f32.mrb[0].mxu0
      %v1035 = vadd.f32 %v801, %v1034
      %v1036 = vpop.f32.mrb[0].mxu0
      %1037 = vmatprep.mubr.bf16.mxu0 0
      %1038 = vmatmul.mubr.bf16.gmra.mrb[0].mxu0 %v884
      %v1039 = vpop.f32.mrb[0].mxu0
      %v1040 = vadd.f32 %v806, %v1039
      %v1041 = vpop.f32.mrb[0].mxu0
      %v1042 = vpop.f32.mrb[0].mxu0
      %v1043 = vadd.f32 %v809, %v1042
      %v1044 = vpop.f32.mrb[0].mxu0
      %1045 = vmatprep.mubr.bf16.mxu0 0
      %1046 = vmatmul.mubr.bf16.gmra.mrb[0].mxu0 %v887
      %v1047 = vpop.f32.mrb[0].mxu0
      %v1048 = vadd.f32 %v814, %v1047
      %v1049 = vpop.f32.mrb[0].mxu0
      %v1050 = vpop.f32.mrb[0].mxu0
      %v1051 = vadd.f32 %v817, %v1050
      %v1052 = vpop.f32.mrb[0].mxu0
      %1053 = vmatprep.mubr.bf16.mxu0 0
      %1054 = vmatmul.mubr.bf16.gmra.mrb[0].mxu0 %v890
      %v1055 = vpop.f32.mrb[0].mxu0
      %v1056 = vadd.f32 %v822, %v1055
      %v1057 = vpop.f32.mrb[0].mxu0
      %v1058 = vpop.f32.mrb[0].mxu0
      %v1059 = vadd.f32 %v825, %v1058
      %v1060 = vpop.f32.mrb[0].mxu0
      %1061 = vmatprep.mubr.bf16.mxu0 0
      %1062 = vmatmul.mubr.bf16.gmra.mrb[0].mxu0 %v893
      %v1063 = vpop.f32.mrb[0].mxu0
      %v1064 = vadd.f32 %v830, %v1063
      %v1065 = vpop.f32.mrb[0].mxu0
      %v1066 = vpop.f32.mrb[0].mxu0
      %v1067 = vadd.f32 %v833, %v1066
      %v1068 = vpop.f32.mrb[0].mxu0
      %1069 = vmatprep.mubr.bf16.mxu0 0
      %1070 = vmatmul.mubr.bf16.gmra.mrb[0].mxu0 %v896
      %v1071 = vpop.f32.mrb[0].mxu0
      %v1072 = vadd.f32 %v838, %v1071
      %v1073 = vpop.f32.mrb[0].mxu0
      %v1074 = vpop.f32.mrb[0].mxu0
      %v1075 = vadd.f32 %v841, %v1074
      %v1076 = vpop.f32.mrb[0].mxu0
      %1077 = vdwg.mxu0
      %v1078 = vld [vmem:[#allocation2 + $0x2] sm:$0xff]
      %v1079 = vld [vmem:[#allocation2 + $0xa] sm:$0xff]
      %v1080 = vld [vmem:[#allocation2 + $0x12] sm:$0xff]
      %v1081 = vld [vmem:[#allocation2 + $0x1a] sm:$0xff]
      %v1082 = vld [vmem:[#allocation2 + $0x22] sm:$0xff]
      %v1083 = vld [vmem:[#allocation2 + $0x2a] sm:$0xff]
      %v1084 = vld [vmem:[#allocation2 + $0x32] sm:$0xff]
      %v1085 = vld [vmem:[#allocation2 + $0x3a] sm:$0xff]
      %v1086 = vld [vmem:[#allocation2 + $0x42] sm:$0xff]
      %v1087 = vld [vmem:[#allocation2 + $0x4a] sm:$0xff]
      %v1088 = vld [vmem:[#allocation2 + $0x52] sm:$0xff]
      %v1089 = vld [vmem:[#allocation2 + $0x5a] sm:$0xff]
      %v1090 = vld [vmem:[#allocation2 + $0x62] sm:$0xff]
      %v1091 = vld [vmem:[#allocation2 + $0x6a] sm:$0xff]
      %v1092 = vld [vmem:[#allocation2 + $0x72] sm:$0xff]
      %v1093 = vld [vmem:[#allocation2 + $0x7a] sm:$0xff]
      %v1094 = vld [vmem:[#allocation2 + $0x82] sm:$0xff]
      %v1095 = vld [vmem:[#allocation2 + $0x8a] sm:$0xff]
      %v1096 = vld [vmem:[#allocation2 + $0x92] sm:$0xff]
      %v1097 = vld [vmem:[#allocation2 + $0x9a] sm:$0xff]
      %v1098 = vld [vmem:[#allocation2 + $0xa2] sm:$0xff]
      %v1099 = vld [vmem:[#allocation2 + $0xaa] sm:$0xff]
      %v1100 = vld [vmem:[#allocation2 + $0xb2] sm:$0xff]
      %v1101 = vld [vmem:[#allocation2 + $0xba] sm:$0xff]
      %v1102 = vld [vmem:[#allocation2 + $0xc2] sm:$0xff]
      %v1103 = vld [vmem:[#allocation2 + $0xca] sm:$0xff]
      %v1104 = vld [vmem:[#allocation2 + $0xd2] sm:$0xff]
      %v1105 = vld [vmem:[#allocation2 + $0xda] sm:$0xff]
      %v1106 = vld [vmem:[#allocation2 + $0xe2] sm:$0xff]
      %v1107 = vld [vmem:[#allocation2 + $0xea] sm:$0xff]
      %v1108 = vld [vmem:[#allocation2 + $0xf2] sm:$0xff]
      %v1109 = vld [vmem:[#allocation2 + $0xfa] sm:$0xff]
      %v1110 = vld [vmem:[#allocation2 + $0x102] sm:$0xff]
      %v1111 = vld [vmem:[#allocation2 + $0x10a] sm:$0xff]
      %v1112 = vld [vmem:[#allocation2 + $0x112] sm:$0xff]
      %v1113 = vld [vmem:[#allocation2 + $0x11a] sm:$0xff]
      %v1114 = vpack.c.bf16 %v1079, %v1078
      %v1115 = vpack.c.bf16 %v1081, %v1080
      %v1116 = vpack.c.bf16 %v1083, %v1082
      %v1117 = vpack.c.bf16 %v1085, %v1084
      %v1118 = vpack.c.bf16 %v1087, %v1086
      %v1119 = vpack.c.bf16 %v1089, %v1088
      %v1120 = vpack.c.bf16 %v1091, %v1090
      %v1121 = vpack.c.bf16 %v1093, %v1092
      %v1122 = vpack.c.bf16 %v1095, %v1094
      %v1123 = vpack.c.bf16 %v1097, %v1096
      %v1124 = vpack.c.bf16 %v1099, %v1098
      %v1125 = vpack.c.bf16 %v1101, %v1100
      %v1126 = vpack.c.bf16 %v1103, %v1102
      %v1127 = vpack.c.bf16 %v1105, %v1104
      %v1128 = vpack.c.bf16 %v1107, %v1106
      %v1129 = vpack.c.bf16 %v1109, %v1108
      %v1130 = vpack.c.bf16 %v1111, %v1110
      %v1131 = vpack.c.bf16 %v1113, %v1112
      %s1132 = scalar_lea.vmem %s2, 4
      %v1133 = vld [vmem:[%s1132] sm:$0x3]
      %v1135 = vsel %vm353, %v1114, 0
      %v1138 = vsel %vm353, %v1115, 0
      %v1141 = vsel %vm353, %v1116, 0
      %v1144 = vsel %vm353, %v1117, 0
      %v1147 = vsel %vm353, %v1118, 0
      %v1150 = vsel %vm353, %v1119, 0
      %v1153 = vsel %vm353, %v1120, 0
      %v1156 = vsel %vm353, %v1121, 0
      %v1159 = vsel %vm353, %v1122, 0
      %v1162 = vsel %vm353, %v1123, 0
      %v1165 = vsel %vm353, %v1124, 0
      %v1168 = vsel %vm353, %v1125, 0
      %v1171 = vsel %vm353, %v1126, 0
      %v1174 = vsel %vm353, %v1127, 0
      %v1177 = vsel %vm353, %v1128, 0
      %v1180 = vsel %vm353, %v1129, 0
      %v1183 = vsel %vm353, %v1130, 0
      %v1186 = vsel %vm353, %v1131, 0
      %v1189 = vsel %vm663, %v1133, 0
      %1191 = vmatprep.subr.bf16.mxu0 0
      %1192 = vmatpush1.bf16.msra.mxu0 %v1189
      %1193 = vmatprep.subr.bf16.mxu0 0
      %1194 = vmatpush1.bf16.msra.mxu0 0
      %1195 = vmatprep.subr.bf16.mxu0 0
      %1196 = vmatpush1.bf16.msra.mxu0 0
      %1197 = vmatprep.subr.bf16.mxu0 0
      %1198 = vmatpush1.bf16.msra.mxu0 0
      %1199 = vmatprep.subr.bf16.mxu0 0
      %1200 = vmatpush1.bf16.msra.mxu0 0
      %1201 = vmatprep.subr.bf16.mxu0 0
      %1202 = vmatpush1.bf16.msra.mxu0 0
      %1203 = vmatprep.subr.bf16.mxu0 0
      %1204 = vmatpush1.bf16.msra.mxu0 0
      %1205 = vmatprep.subr.bf16.mxu0 0
      %1206 = vmatpush1.bf16.msra.mxu0 0
      %1207 = vmatprep.subr.bf16.mxu0 0
      %1208 = vmatpush1.bf16.msra.mxu0 0
      %1209 = vmatprep.subr.bf16.mxu0 0
      %1210 = vmatpush1.bf16.msra.mxu0 0
      %1211 = vmatprep.subr.bf16.mxu0 0
      %1212 = vmatpush1.bf16.msra.mxu0 0
      %1213 = vmatprep.subr.bf16.mxu0 0
      %1214 = vmatpush1.bf16.msra.mxu0 0
      %1215 = vmatprep.subr.bf16.mxu0 0
      %1216 = vmatpush1.bf16.msra.mxu0 0
      %1217 = vmatprep.subr.bf16.mxu0 0
      %1218 = vmatpush1.bf16.msra.mxu0 0
      %1219 = vmatprep.subr.bf16.mxu0 0
      %1220 = vmatpush1.bf16.msra.mxu0 0
      %1221 = vmatprep.subr.bf16.mxu0 0
      %1222 = vmatpush1.bf16.msra.mxu0 0
      %1223 = vmatprep.mubr.bf16.mxu0 0
      %1224 = vmatmul.mubr.bf16.gmra.mrb[0].mxu0 %v1135
      %v1225 = vpop.f32.mrb[0].mxu0
      %v1226 = vadd.f32 0.0, %v1225
      %v1227 = vpop.f32.mrb[0].mxu0
      %v1228 = vpop.f32.mrb[0].mxu0
      %v1229 = vadd.f32 0.0, %v1228
      %v1230 = vpop.f32.mrb[0].mxu0
      %1231 = vmatprep.mubr.bf16.mxu0 0
      %1232 = vmatmul.mubr.bf16.gmra.mrb[0].mxu0 %v1138
      %v1233 = vpop.f32.mrb[0].mxu0
      %v1234 = vadd.f32 0.0, %v1233
      %v1235 = vpop.f32.mrb[0].mxu0
      %v1236 = vpop.f32.mrb[0].mxu0
      %v1237 = vadd.f32 0.0, %v1236
      %v1238 = vpop.f32.mrb[0].mxu0
      %1239 = vmatprep.mubr.bf16.mxu0 0
      %1240 = vmatmul.mubr.bf16.gmra.mrb[0].mxu0 %v1141
      %v1241 = vpop.f32.mrb[0].mxu0
      %v1242 = vadd.f32 0.0, %v1241
      %v1243 = vpop.f32.mrb[0].mxu0
      %v1244 = vpop.f32.mrb[0].mxu0
      %v1245 = vadd.f32 0.0, %v1244
      %v1246 = vpop.f32.mrb[0].mxu0
      %1247 = vmatprep.mubr.bf16.mxu0 0
      %1248 = vmatmul.mubr.bf16.gmra.mrb[0].mxu0 %v1144
      %v1249 = vpop.f32.mrb[0].mxu0
      %v1250 = vadd.f32 0.0, %v1249
      %v1251 = vpop.f32.mrb[0].mxu0
      %v1252 = vpop.f32.mrb[0].mxu0
      %v1253 = vadd.f32 0.0, %v1252
      %v1254 = vpop.f32.mrb[0].mxu0
      %1255 = vmatprep.mubr.bf16.mxu0 0
      %1256 = vmatmul.mubr.bf16.gmra.mrb[0].mxu0 %v1147
      %v1257 = vpop.f32.mrb[0].mxu0
      %v1258 = vadd.f32 0.0, %v1257
      %v1259 = vpop.f32.mrb[0].mxu0
      %v1260 = vpop.f32.mrb[0].mxu0
      %v1261 = vadd.f32 0.0, %v1260
      %v1262 = vpop.f32.mrb[0].mxu0
      %1263 = vmatprep.mubr.bf16.mxu0 0
      %1264 = vmatmul.mubr.bf16.gmra.mrb[0].mxu0 %v1150
      %v1265 = vpop.f32.mrb[0].mxu0
      %v1266 = vadd.f32 0.0, %v1265
      %v1267 = vpop.f32.mrb[0].mxu0
      %v1268 = vpop.f32.mrb[0].mxu0
      %v1269 = vadd.f32 0.0, %v1268
      %v1270 = vpop.f32.mrb[0].mxu0
      %1271 = vmatprep.mubr.bf16.mxu0 0
      %1272 = vmatmul.mubr.bf16.gmra.mrb[0].mxu0 %v1153
      %v1273 = vpop.f32.mrb[0].mxu0
      %v1274 = vadd.f32 0.0, %v1273
      %v1275 = vpop.f32.mrb[0].mxu0
      %v1276 = vpop.f32.mrb[0].mxu0
      %v1277 = vadd.f32 0.0, %v1276
      %v1278 = vpop.f32.mrb[0].mxu0
      %1279 = vmatprep.mubr.bf16.mxu0 0
      %1280 = vmatmul.mubr.bf16.gmra.mrb[0].mxu0 %v1156
      %v1281 = vpop.f32.mrb[0].mxu0
      %v1282 = vadd.f32 0.0, %v1281
      %v1283 = vpop.f32.mrb[0].mxu0
      %v1284 = vpop.f32.mrb[0].mxu0
      %v1285 = vadd.f32 0.0, %v1284
      %v1286 = vpop.f32.mrb[0].mxu0
      %1287 = vmatprep.mubr.bf16.mxu0 0
      %1288 = vmatmul.mubr.bf16.gmra.mrb[0].mxu0 %v1159
      %v1289 = vpop.f32.mrb[0].mxu0
      %v1290 = vadd.f32 0.0, %v1289
      %v1291 = vpop.f32.mrb[0].mxu0
      %v1292 = vpop.f32.mrb[0].mxu0
      %v1293 = vadd.f32 0.0, %v1292
      %v1294 = vpop.f32.mrb[0].mxu0
      %1295 = vmatprep.mubr.bf16.mxu0 0
      %1296 = vmatmul.mubr.bf16.gmra.mrb[0].mxu0 %v1162
      %v1297 = vpop.f32.mrb[0].mxu0
      %v1298 = vadd.f32 0.0, %v1297
      %v1299 = vpop.f32.mrb[0].mxu0
      %v1300 = vpop.f32.mrb[0].mxu0
      %v1301 = vadd.f32 0.0, %v1300
      %v1302 = vpop.f32.mrb[0].mxu0
      %1303 = vmatprep.mubr.bf16.mxu0 0
      %1304 = vmatmul.mubr.bf16.gmra.mrb[0].mxu0 %v1165
      %v1305 = vpop.f32.mrb[0].mxu0
      %v1306 = vadd.f32 0.0, %v1305
      %v1307 = vpop.f32.mrb[0].mxu0
      %v1308 = vpop.f32.mrb[0].mxu0
      %v1309 = vadd.f32 0.0, %v1308
      %v1310 = vpop.f32.mrb[0].mxu0
      %1311 = vmatprep.mubr.bf16.mxu0 0
      %1312 = vmatmul.mubr.bf16.gmra.mrb[0].mxu0 %v1168
      %v1313 = vpop.f32.mrb[0].mxu0
      %v1314 = vadd.f32 0.0, %v1313
      %v1315 = vpop.f32.mrb[0].mxu0
      %v1316 = vpop.f32.mrb[0].mxu0
      %v1317 = vadd.f32 0.0, %v1316
      %v1318 = vpop.f32.mrb[0].mxu0
      %1319 = vmatprep.mubr.bf16.mxu0 0
      %1320 = vmatmul.mubr.bf16.gmra.mrb[0].mxu0 %v1171
      %v1321 = vpop.f32.mrb[0].mxu0
      %v1322 = vadd.f32 0.0, %v1321
      %v1323 = vpop.f32.mrb[0].mxu0
      %v1324 = vpop.f32.mrb[0].mxu0
      %v1325 = vadd.f32 0.0, %v1324
      %v1326 = vpop.f32.mrb[0].mxu0
      %1327 = vmatprep.mubr.bf16.mxu0 0
      %1328 = vmatmul.mubr.bf16.gmra.mrb[0].mxu0 %v1174
      %v1329 = vpop.f32.mrb[0].mxu0
      %v1330 = vadd.f32 0.0, %v1329
      %v1331 = vpop.f32.mrb[0].mxu0
      %v1332 = vpop.f32.mrb[0].mxu0
      %v1333 = vadd.f32 0.0, %v1332
      %v1334 = vpop.f32.mrb[0].mxu0
      %1335 = vmatprep.mubr.bf16.mxu0 0
      %1336 = vmatmul.mubr.bf16.gmra.mrb[0].mxu0 %v1177
      %v1337 = vpop.f32.mrb[0].mxu0
      %v1338 = vadd.f32 0.0, %v1337
      %v1339 = vpop.f32.mrb[0].mxu0
      %v1340 = vpop.f32.mrb[0].mxu0
      %v1341 = vadd.f32 0.0, %v1340
      %v1342 = vpop.f32.mrb[0].mxu0
      %1343 = vmatprep.mubr.bf16.mxu0 0
      %1344 = vmatmul.mubr.bf16.gmra.mrb[0].mxu0 %v1180
      %v1345 = vpop.f32.mrb[0].mxu0
      %v1346 = vadd.f32 0.0, %v1345
      %v1347 = vpop.f32.mrb[0].mxu0
      %v1348 = vpop.f32.mrb[0].mxu0
      %v1349 = vadd.f32 0.0, %v1348
      %v1350 = vpop.f32.mrb[0].mxu0
      %1351 = vmatprep.mubr.bf16.mxu0 0
      %1352 = vmatmul.mubr.bf16.gmra.mrb[0].mxu0 %v1183
      %v1353 = vpop.f32.mrb[0].mxu0
      %v1354 = vadd.f32 0.0, %v1353
      %v1355 = vpop.f32.mrb[0].mxu0
      %v1356 = vpop.f32.mrb[0].mxu0
      %v1357 = vadd.f32 0.0, %v1356
      %v1358 = vpop.f32.mrb[0].mxu0
      %1359 = vmatprep.mubr.bf16.mxu0 0
      %1360 = vmatmul.mubr.bf16.gmra.mrb[0].mxu0 %v1186
      %v1361 = vpop.f32.mrb[0].mxu0
      %v1362 = vadd.f32 0.0, %v1361
      %v1363 = vpop.f32.mrb[0].mxu0
      %v1364 = vpop.f32.mrb[0].mxu0
      %v1365 = vadd.f32 0.0, %v1364
      %v1366 = vpop.f32.mrb[0].mxu0
      %1367 = vdwg.mxu0
      %v1368 = vadd.f32 %v936, %v1226
      %v1369 = vadd.f32 %v939, %v1229
      %v1370 = vadd.f32 %v944, %v1234
      %v1371 = vadd.f32 %v947, %v1237
      %v1372 = vadd.f32 %v952, %v1242
      %v1373 = vadd.f32 %v955, %v1245
      %v1374 = vadd.f32 %v960, %v1250
      %v1375 = vadd.f32 %v963, %v1253
      %v1376 = vadd.f32 %v968, %v1258
      %v1377 = vadd.f32 %v971, %v1261
      %v1378 = vadd.f32 %v976, %v1266
      %v1379 = vadd.f32 %v979, %v1269
      %v1380 = vadd.f32 %v984, %v1274
      %v1381 = vadd.f32 %v987, %v1277
      %v1382 = vadd.f32 %v992, %v1282
      %v1383 = vadd.f32 %v995, %v1285
      %v1384 = vadd.f32 %v1000, %v1290
      %v1385 = vadd.f32 %v1003, %v1293
      %v1386 = vadd.f32 %v1008, %v1298
      %v1387 = vadd.f32 %v1011, %v1301
      %v1388 = vadd.f32 %v1016, %v1306
      %v1389 = vadd.f32 %v1019, %v1309
      %v1390 = vadd.f32 %v1024, %v1314
      %v1391 = vadd.f32 %v1027, %v1317
      %v1392 = vadd.f32 %v1032, %v1322
      %v1393 = vadd.f32 %v1035, %v1325
      %v1394 = vadd.f32 %v1040, %v1330
      %v1395 = vadd.f32 %v1043, %v1333
      %v1396 = vadd.f32 %v1048, %v1338
      %v1397 = vadd.f32 %v1051, %v1341
      %v1398 = vadd.f32 %v1056, %v1346
      %v1399 = vadd.f32 %v1059, %v1349
      %v1400 = vadd.f32 %v1064, %v1354
      %v1401 = vadd.f32 %v1067, %v1357
      %v1402 = vadd.f32 %v1072, %v1362
      %v1403 = vadd.f32 %v1075, %v1365
      %v1404 = vld [vmem:[#allocation2 + $0x12] sm:$0xff]
      %v1405 = vld [vmem:[#allocation2 + $0x1a] sm:$0xff]
      %v1406 = vld [vmem:[#allocation2 + $0x22] sm:$0xff]
      %v1407 = vld [vmem:[#allocation2 + $0x2a] sm:$0xff]
      %v1408 = vld [vmem:[#allocation2 + $0x32] sm:$0xff]
      %v1409 = vld [vmem:[#allocation2 + $0x3a] sm:$0xff]
      %v1410 = vld [vmem:[#allocation2 + $0x42] sm:$0xff]
      %v1411 = vld [vmem:[#allocation2 + $0x4a] sm:$0xff]
      %v1412 = vld [vmem:[#allocation2 + $0x52] sm:$0xff]
      %v1413 = vld [vmem:[#allocation2 + $0x5a] sm:$0xff]
      %v1414 = vld [vmem:[#allocation2 + $0x62] sm:$0xff]
      %v1415 = vld [vmem:[#allocation2 + $0x6a] sm:$0xff]
      %v1416 = vld [vmem:[#allocation2 + $0x72] sm:$0xff]
      %v1417 = vld [vmem:[#allocation2 + $0x7a] sm:$0xff]
      %v1418 = vld [vmem:[#allocation2 + $0x82] sm:$0xff]
      %v1419 = vld [vmem:[#allocation2 + $0x8a] sm:$0xff]
      %v1420 = vld [vmem:[#allocation2 + $0x92] sm:$0xff]
      %v1421 = vld [vmem:[#allocation2 + $0x9a] sm:$0xff]
      %v1422 = vld [vmem:[#allocation2 + $0xa2] sm:$0xff]
      %v1423 = vld [vmem:[#allocation2 + $0xaa] sm:$0xff]
      %v1424 = vld [vmem:[#allocation2 + $0xb2] sm:$0xff]
      %v1425 = vld [vmem:[#allocation2 + $0xba] sm:$0xff]
      %v1426 = vld [vmem:[#allocation2 + $0xc2] sm:$0xff]
      %v1427 = vld [vmem:[#allocation2 + $0xca] sm:$0xff]
      %v1428 = vld [vmem:[#allocation2 + $0xd2] sm:$0xff]
      %v1429 = vld [vmem:[#allocation2 + $0xda] sm:$0xff]
      %v1430 = vld [vmem:[#allocation2 + $0xe2] sm:$0xff]
      %v1431 = vld [vmem:[#allocation2 + $0xea] sm:$0xff]
      %v1432 = vld [vmem:[#allocation2 + $0xf2] sm:$0xff]
      %v1433 = vld [vmem:[#allocation2 + $0xfa] sm:$0xff]
      %v1434 = vld [vmem:[#allocation2 + $0x102] sm:$0xff]
      %v1435 = vld [vmem:[#allocation2 + $0x10a] sm:$0xff]
      %v1436 = vld [vmem:[#allocation2 + $0x112] sm:$0xff]
      %v1437 = vld [vmem:[#allocation2 + $0x11a] sm:$0xff]
      %v1438 = vld [vmem:[#allocation2 + $0x122] sm:$0xff]
      %v1439 = vld [vmem:[#allocation2 + $0x12a] sm:$0xff]
      %v1440 = vpack.c.bf16 %v1405, %v1404
      %v1441 = vpack.c.bf16 %v1407, %v1406
      %v1442 = vpack.c.bf16 %v1409, %v1408
      %v1443 = vpack.c.bf16 %v1411, %v1410
      %v1444 = vpack.c.bf16 %v1413, %v1412
      %v1445 = vpack.c.bf16 %v1415, %v1414
      %v1446 = vpack.c.bf16 %v1417, %v1416
      %v1447 = vpack.c.bf16 %v1419, %v1418
      %v1448 = vpack.c.bf16 %v1421, %v1420
      %v1449 = vpack.c.bf16 %v1423, %v1422
      %v1450 = vpack.c.bf16 %v1425, %v1424
      %v1451 = vpack.c.bf16 %v1427, %v1426
      %v1452 = vpack.c.bf16 %v1429, %v1428
      %v1453 = vpack.c.bf16 %v1431, %v1430
      %v1454 = vpack.c.bf16 %v1433, %v1432
      %v1455 = vpack.c.bf16 %v1435, %v1434
      %v1456 = vpack.c.bf16 %v1437, %v1436
      %v1457 = vpack.c.bf16 %v1439, %v1438
      %s1458 = scalar_lea.vmem %s2, 6
      %v1459 = vld [vmem:[%s1458] sm:$0x3]
      %v1461 = vsel %vm353, %v1440, 0
      %v1464 = vsel %vm353, %v1441, 0
      %v1467 = vsel %vm353, %v1442, 0
      %v1470 = vsel %vm353, %v1443, 0
      %v1473 = vsel %vm353, %v1444, 0
      %v1476 = vsel %vm353, %v1445, 0
      %v1479 = vsel %vm353, %v1446, 0
      %v1482 = vsel %vm353, %v1447, 0
      %v1485 = vsel %vm353, %v1448, 0
      %v1488 = vsel %vm353, %v1449, 0
      %v1491 = vsel %vm353, %v1450, 0
      %v1494 = vsel %vm353, %v1451, 0
      %v1497 = vsel %vm353, %v1452, 0
      %v1500 = vsel %vm353, %v1453, 0
      %v1503 = vsel %vm353, %v1454, 0
      %v1506 = vsel %vm353, %v1455, 0
      %v1509 = vsel %vm353, %v1456, 0
      %v1512 = vsel %vm353, %v1457, 0
      %v1515 = vsel %vm663, %v1459, 0
      %1517 = vmatprep.subr.bf16.mxu0 0
      %1518 = vmatpush1.bf16.msra.mxu0 %v1515
      %1519 = vmatprep.subr.bf16.mxu0 0
      %1520 = vmatpush1.bf16.msra.mxu0 0
      %1521 = vmatprep.subr.bf16.mxu0 0
      %1522 = vmatpush1.bf16.msra.mxu0 0
      %1523 = vmatprep.subr.bf16.mxu0 0
      %1524 = vmatpush1.bf16.msra.mxu0 0
      %1525 = vmatprep.subr.bf16.mxu0 0
      %1526 = vmatpush1.bf16.msra.mxu0 0
      %1527 = vmatprep.subr.bf16.mxu0 0
      %1528 = vmatpush1.bf16.msra.mxu0 0
      %1529 = vmatprep.subr.bf16.mxu0 0
      %1530 = vmatpush1.bf16.msra.mxu0 0
      %1531 = vmatprep.subr.bf16.mxu0 0
      %1532 = vmatpush1.bf16.msra.mxu0 0
      %1533 = vmatprep.subr.bf16.mxu0 0
      %1534 = vmatpush1.bf16.msra.mxu0 0
      %1535 = vmatprep.subr.bf16.mxu0 0
      %1536 = vmatpush1.bf16.msra.mxu0 0
      %1537 = vmatprep.subr.bf16.mxu0 0
      %1538 = vmatpush1.bf16.msra.mxu0 0
      %1539 = vmatprep.subr.bf16.mxu0 0
      %1540 = vmatpush1.bf16.msra.mxu0 0
      %1541 = vmatprep.subr.bf16.mxu0 0
      %1542 = vmatpush1.bf16.msra.mxu0 0
      %1543 = vmatprep.subr.bf16.mxu0 0
      %1544 = vmatpush1.bf16.msra.mxu0 0
      %1545 = vmatprep.subr.bf16.mxu0 0
      %1546 = vmatpush1.bf16.msra.mxu0 0
      %1547 = vmatprep.subr.bf16.mxu0 0
      %1548 = vmatpush1.bf16.msra.mxu0 0
      %1549 = vmatprep.mubr.bf16.mxu0 0
      %1550 = vmatmul.mubr.bf16.gmra.mrb[0].mxu0 %v1461
      %v1551 = vpop.f32.mrb[0].mxu0
      %v1552 = vadd.f32 0.0, %v1551
      %v1553 = vpop.f32.mrb[0].mxu0
      %v1554 = vpop.f32.mrb[0].mxu0
      %v1555 = vadd.f32 0.0, %v1554
      %v1556 = vpop.f32.mrb[0].mxu0
      %1557 = vmatprep.mubr.bf16.mxu0 0
      %1558 = vmatmul.mubr.bf16.gmra.mrb[0].mxu0 %v1464
      %v1559 = vpop.f32.mrb[0].mxu0
      %v1560 = vadd.f32 0.0, %v1559
      %v1561 = vpop.f32.mrb[0].mxu0
      %v1562 = vpop.f32.mrb[0].mxu0
      %v1563 = vadd.f32 0.0, %v1562
      %v1564 = vpop.f32.mrb[0].mxu0
      %1565 = vmatprep.mubr.bf16.mxu0 0
      %1566 = vmatmul.mubr.bf16.gmra.mrb[0].mxu0 %v1467
      %v1567 = vpop.f32.mrb[0].mxu0
      %v1568 = vadd.f32 0.0, %v1567
      %v1569 = vpop.f32.mrb[0].mxu0
      %v1570 = vpop.f32.mrb[0].mxu0
      %v1571 = vadd.f32 0.0, %v1570
      %v1572 = vpop.f32.mrb[0].mxu0
      %1573 = vmatprep.mubr.bf16.mxu0 0
      %1574 = vmatmul.mubr.bf16.gmra.mrb[0].mxu0 %v1470
      %v1575 = vpop.f32.mrb[0].mxu0
      %v1576 = vadd.f32 0.0, %v1575
      %v1577 = vpop.f32.mrb[0].mxu0
      %v1578 = vpop.f32.mrb[0].mxu0
      %v1579 = vadd.f32 0.0, %v1578
      %v1580 = vpop.f32.mrb[0].mxu0
      %1581 = vmatprep.mubr.bf16.mxu0 0
      %1582 = vmatmul.mubr.bf16.gmra.mrb[0].mxu0 %v1473
      %v1583 = vpop.f32.mrb[0].mxu0
      %v1584 = vadd.f32 0.0, %v1583
      %v1585 = vpop.f32.mrb[0].mxu0
      %v1586 = vpop.f32.mrb[0].mxu0
      %v1587 = vadd.f32 0.0, %v1586
      %v1588 = vpop.f32.mrb[0].mxu0
      %1589 = vmatprep.mubr.bf16.mxu0 0
      %1590 = vmatmul.mubr.bf16.gmra.mrb[0].mxu0 %v1476
      %v1591 = vpop.f32.mrb[0].mxu0
      %v1592 = vadd.f32 0.0, %v1591
      %v1593 = vpop.f32.mrb[0].mxu0
      %v1594 = vpop.f32.mrb[0].mxu0
      %v1595 = vadd.f32 0.0, %v1594
      %v1596 = vpop.f32.mrb[0].mxu0
      %1597 = vmatprep.mubr.bf16.mxu0 0
      %1598 = vmatmul.mubr.bf16.gmra.mrb[0].mxu0 %v1479
      %v1599 = vpop.f32.mrb[0].mxu0
      %v1600 = vadd.f32 0.0, %v1599
      %v1601 = vpop.f32.mrb[0].mxu0
      %v1602 = vpop.f32.mrb[0].mxu0
      %v1603 = vadd.f32 0.0, %v1602
      %v1604 = vpop.f32.mrb[0].mxu0
      %1605 = vmatprep.mubr.bf16.mxu0 0
      %1606 = vmatmul.mubr.bf16.gmra.mrb[0].mxu0 %v1482
      %v1607 = vpop.f32.mrb[0].mxu0
      %v1608 = vadd.f32 0.0, %v1607
      %v1609 = vpop.f32.mrb[0].mxu0
      %v1610 = vpop.f32.mrb[0].mxu0
      %v1611 = vadd.f32 0.0, %v1610
      %v1612 = vpop.f32.mrb[0].mxu0
      %1613 = vmatprep.mubr.bf16.mxu0 0
      %1614 = vmatmul.mubr.bf16.gmra.mrb[0].mxu0 %v1485
      %v1615 = vpop.f32.mrb[0].mxu0
      %v1616 = vadd.f32 0.0, %v1615
      %v1617 = vpop.f32.mrb[0].mxu0
      %v1618 = vpop.f32.mrb[0].mxu0
      %v1619 = vadd.f32 0.0, %v1618
      %v1620 = vpop.f32.mrb[0].mxu0
      %1621 = vmatprep.mubr.bf16.mxu0 0
      %1622 = vmatmul.mubr.bf16.gmra.mrb[0].mxu0 %v1488
      %v1623 = vpop.f32.mrb[0].mxu0
      %v1624 = vadd.f32 0.0, %v1623
      %v1625 = vpop.f32.mrb[0].mxu0
      %v1626 = vpop.f32.mrb[0].mxu0
      %v1627 = vadd.f32 0.0, %v1626
      %v1628 = vpop.f32.mrb[0].mxu0
      %1629 = vmatprep.mubr.bf16.mxu0 0
      %1630 = vmatmul.mubr.bf16.gmra.mrb[0].mxu0 %v1491
      %v1631 = vpop.f32.mrb[0].mxu0
      %v1632 = vadd.f32 0.0, %v1631
      %v1633 = vpop.f32.mrb[0].mxu0
      %v1634 = vpop.f32.mrb[0].mxu0
      %v1635 = vadd.f32 0.0, %v1634
      %v1636 = vpop.f32.mrb[0].mxu0
      %1637 = vmatprep.mubr.bf16.mxu0 0
      %1638 = vmatmul.mubr.bf16.gmra.mrb[0].mxu0 %v1494
      %v1639 = vpop.f32.mrb[0].mxu0
      %v1640 = vadd.f32 0.0, %v1639
      %v1641 = vpop.f32.mrb[0].mxu0
      %v1642 = vpop.f32.mrb[0].mxu0
      %v1643 = vadd.f32 0.0, %v1642
      %v1644 = vpop.f32.mrb[0].mxu0
      %1645 = vmatprep.mubr.bf16.mxu0 0
      %1646 = vmatmul.mubr.bf16.gmra.mrb[0].mxu0 %v1497
      %v1647 = vpop.f32.mrb[0].mxu0
      %v1648 = vadd.f32 0.0, %v1647
      %v1649 = vpop.f32.mrb[0].mxu0
      %v1650 = vpop.f32.mrb[0].mxu0
      %v1651 = vadd.f32 0.0, %v1650
      %v1652 = vpop.f32.mrb[0].mxu0
      %1653 = vmatprep.mubr.bf16.mxu0 0
      %1654 = vmatmul.mubr.bf16.gmra.mrb[0].mxu0 %v1500
      %v1655 = vpop.f32.mrb[0].mxu0
      %v1656 = vadd.f32 0.0, %v1655
      %v1657 = vpop.f32.mrb[0].mxu0
      %v1658 = vpop.f32.mrb[0].mxu0
      %v1659 = vadd.f32 0.0, %v1658
      %v1660 = vpop.f32.mrb[0].mxu0
      %1661 = vmatprep.mubr.bf16.mxu0 0
      %1662 = vmatmul.mubr.bf16.gmra.mrb[0].mxu0 %v1503
      %v1663 = vpop.f32.mrb[0].mxu0
      %v1664 = vadd.f32 0.0, %v1663
      %v1665 = vpop.f32.mrb[0].mxu0
      %v1666 = vpop.f32.mrb[0].mxu0
      %v1667 = vadd.f32 0.0, %v1666
      %v1668 = vpop.f32.mrb[0].mxu0
      %1669 = vmatprep.mubr.bf16.mxu0 0
      %1670 = vmatmul.mubr.bf16.gmra.mrb[0].mxu0 %v1506
      %v1671 = vpop.f32.mrb[0].mxu0
      %v1672 = vadd.f32 0.0, %v1671
      %v1673 = vpop.f32.mrb[0].mxu0
      %v1674 = vpop.f32.mrb[0].mxu0
      %v1675 = vadd.f32 0.0, %v1674
      %v1676 = vpop.f32.mrb[0].mxu0
      %1677 = vmatprep.mubr.bf16.mxu0 0
      %1678 = vmatmul.mubr.bf16.gmra.mrb[0].mxu0 %v1509
      %v1679 = vpop.f32.mrb[0].mxu0
      %v1680 = vadd.f32 0.0, %v1679
      %v1681 = vpop.f32.mrb[0].mxu0
      %v1682 = vpop.f32.mrb[0].mxu0
      %v1683 = vadd.f32 0.0, %v1682
      %v1684 = vpop.f32.mrb[0].mxu0
      %1685 = vmatprep.mubr.bf16.mxu0 0
      %1686 = vmatmul.mubr.bf16.gmra.mrb[0].mxu0 %v1512
      %v1687 = vpop.f32.mrb[0].mxu0
      %v1688 = vadd.f32 0.0, %v1687
      %v1689 = vpop.f32.mrb[0].mxu0
      %v1690 = vpop.f32.mrb[0].mxu0
      %v1691 = vadd.f32 0.0, %v1690
      %v1692 = vpop.f32.mrb[0].mxu0
      %1693 = vdwg.mxu0
      %v1694 = vadd.f32 %v1368, %v1552
      %v1695 = vadd.f32 %v1369, %v1555
      %v1696 = vadd.f32 %v1370, %v1560
      %v1697 = vadd.f32 %v1371, %v1563
      %v1698 = vadd.f32 %v1372, %v1568
      %v1699 = vadd.f32 %v1373, %v1571
      %v1700 = vadd.f32 %v1374, %v1576
      %v1701 = vadd.f32 %v1375, %v1579
      %v1702 = vadd.f32 %v1376, %v1584
      %v1703 = vadd.f32 %v1377, %v1587
      %v1704 = vadd.f32 %v1378, %v1592
      %v1705 = vadd.f32 %v1379, %v1595
      %v1706 = vadd.f32 %v1380, %v1600
      %v1707 = vadd.f32 %v1381, %v1603
      %v1708 = vadd.f32 %v1382, %v1608
      %v1709 = vadd.f32 %v1383, %v1611
      %v1710 = vadd.f32 %v1384, %v1616
      %v1711 = vadd.f32 %v1385, %v1619
      %v1712 = vadd.f32 %v1386, %v1624
      %v1713 = vadd.f32 %v1387, %v1627
      %v1714 = vadd.f32 %v1388, %v1632
      %v1715 = vadd.f32 %v1389, %v1635
      %v1716 = vadd.f32 %v1390, %v1640
      %v1717 = vadd.f32 %v1391, %v1643
      %v1718 = vadd.f32 %v1392, %v1648
      %v1719 = vadd.f32 %v1393, %v1651
      %v1720 = vadd.f32 %v1394, %v1656
      %v1721 = vadd.f32 %v1395, %v1659
      %v1722 = vadd.f32 %v1396, %v1664
      %v1723 = vadd.f32 %v1397, %v1667
      %v1724 = vadd.f32 %v1398, %v1672
      %v1725 = vadd.f32 %v1399, %v1675
      %v1726 = vadd.f32 %v1400, %v1680
      %v1727 = vadd.f32 %v1401, %v1683
      %v1728 = vadd.f32 %v1402, %v1688
      %v1729 = vadd.f32 %v1403, %v1691
      %v1730 = vld [vmem:[#allocation2 + $0x13] sm:$0xff]
      %v1731 = vld [vmem:[#allocation2 + $0x1b] sm:$0xff]
      %v1732 = vld [vmem:[#allocation2 + $0x23] sm:$0xff]
      %v1733 = vld [vmem:[#allocation2 + $0x2b] sm:$0xff]
      %v1734 = vld [vmem:[#allocation2 + $0x33] sm:$0xff]
      %v1735 = vld [vmem:[#allocation2 + $0x3b] sm:$0xff]
      %v1736 = vld [vmem:[#allocation2 + $0x43] sm:$0xff]
      %v1737 = vld [vmem:[#allocation2 + $0x4b] sm:$0xff]
      %v1738 = vld [vmem:[#allocation2 + $0x53] sm:$0xff]
      %v1739 = vld [vmem:[#allocation2 + $0x5b] sm:$0xff]
      %v1740 = vld [vmem:[#allocation2 + $0x63] sm:$0xff]
      %v1741 = vld [vmem:[#allocation2 + $0x6b] sm:$0xff]
      %v1742 = vld [vmem:[#allocation2 + $0x73] sm:$0xff]
      %v1743 = vld [vmem:[#allocation2 + $0x7b] sm:$0xff]
      %v1744 = vld [vmem:[#allocation2 + $0x83] sm:$0xff]
      %v1745 = vld [vmem:[#allocation2 + $0x8b] sm:$0xff]
      %v1746 = vld [vmem:[#allocation2 + $0x93] sm:$0xff]
      %v1747 = vld [vmem:[#allocation2 + $0x9b] sm:$0xff]
      %v1748 = vld [vmem:[#allocation2 + $0xa3] sm:$0xff]
      %v1749 = vld [vmem:[#allocation2 + $0xab] sm:$0xff]
      %v1750 = vld [vmem:[#allocation2 + $0xb3] sm:$0xff]
      %v1751 = vld [vmem:[#allocation2 + $0xbb] sm:$0xff]
      %v1752 = vld [vmem:[#allocation2 + $0xc3] sm:$0xff]
      %v1753 = vld [vmem:[#allocation2 + $0xcb] sm:$0xff]
      %v1754 = vld [vmem:[#allocation2 + $0xd3] sm:$0xff]
      %v1755 = vld [vmem:[#allocation2 + $0xdb] sm:$0xff]
      %v1756 = vld [vmem:[#allocation2 + $0xe3] sm:$0xff]
      %v1757 = vld [vmem:[#allocation2 + $0xeb] sm:$0xff]
      %v1758 = vld [vmem:[#allocation2 + $0xf3] sm:$0xff]
      %v1759 = vld [vmem:[#allocation2 + $0xfb] sm:$0xff]
      %v1760 = vld [vmem:[#allocation2 + $0x103] sm:$0xff]
      %v1761 = vld [vmem:[#allocation2 + $0x10b] sm:$0xff]
      %v1762 = vld [vmem:[#allocation2 + $0x113] sm:$0xff]
      %v1763 = vld [vmem:[#allocation2 + $0x11b] sm:$0xff]
      %v1764 = vld [vmem:[#allocation2 + $0x123] sm:$0xff]
      %v1765 = vld [vmem:[#allocation2 + $0x12b] sm:$0xff]
      %v1766 = vpack.c.bf16 %v1731, %v1730
      %v1767 = vpack.c.bf16 %v1733, %v1732
      %v1768 = vpack.c.bf16 %v1735, %v1734
      %v1769 = vpack.c.bf16 %v1737, %v1736
      %v1770 = vpack.c.bf16 %v1739, %v1738
      %v1771 = vpack.c.bf16 %v1741, %v1740
      %v1772 = vpack.c.bf16 %v1743, %v1742
      %v1773 = vpack.c.bf16 %v1745, %v1744
      %v1774 = vpack.c.bf16 %v1747, %v1746
      %v1775 = vpack.c.bf16 %v1749, %v1748
      %v1776 = vpack.c.bf16 %v1751, %v1750
      %v1777 = vpack.c.bf16 %v1753, %v1752
      %v1778 = vpack.c.bf16 %v1755, %v1754
      %v1779 = vpack.c.bf16 %v1757, %v1756
      %v1780 = vpack.c.bf16 %v1759, %v1758
      %v1781 = vpack.c.bf16 %v1761, %v1760
      %v1782 = vpack.c.bf16 %v1763, %v1762
      %v1783 = vpack.c.bf16 %v1765, %v1764
      %s1784 = scalar_lea.vmem %s2, 8
      %v1785 = vld [vmem:[%s1784] sm:$0x3]
      %v1787 = vsel %vm353, %v1766, 0
      %v1790 = vsel %vm353, %v1767, 0
      %v1793 = vsel %vm353, %v1768, 0
      %v1796 = vsel %vm353, %v1769, 0
      %v1799 = vsel %vm353, %v1770, 0
      %v1802 = vsel %vm353, %v1771, 0
      %v1805 = vsel %vm353, %v1772, 0
      %v1808 = vsel %vm353, %v1773, 0
      %v1811 = vsel %vm353, %v1774, 0
      %v1814 = vsel %vm353, %v1775, 0
      %v1817 = vsel %vm353, %v1776, 0
      %v1820 = vsel %vm353, %v1777, 0
      %v1823 = vsel %vm353, %v1778, 0
      %v1826 = vsel %vm353, %v1779, 0
      %v1829 = vsel %vm353, %v1780, 0
      %v1832 = vsel %vm353, %v1781, 0
      %v1835 = vsel %vm353, %v1782, 0
      %v1838 = vsel %vm353, %v1783, 0
      %v1841 = vsel %vm663, %v1785, 0
      %1843 = vmatprep.subr.bf16.mxu0 0
      %1844 = vmatpush1.bf16.msra.mxu0 %v1841
      %1845 = vmatprep.subr.bf16.mxu0 0
      %1846 = vmatpush1.bf16.msra.mxu0 0
      %1847 = vmatprep.subr.bf16.mxu0 0
      %1848 = vmatpush1.bf16.msra.mxu0 0
      %1849 = vmatprep.subr.bf16.mxu0 0
      %1850 = vmatpush1.bf16.msra.mxu0 0
      %1851 = vmatprep.subr.bf16.mxu0 0
      %1852 = vmatpush1.bf16.msra.mxu0 0
      %1853 = vmatprep.subr.bf16.mxu0 0
      %1854 = vmatpush1.bf16.msra.mxu0 0
      %1855 = vmatprep.subr.bf16.mxu0 0
      %1856 = vmatpush1.bf16.msra.mxu0 0
      %1857 = vmatprep.subr.bf16.mxu0 0
      %1858 = vmatpush1.bf16.msra.mxu0 0
      %1859 = vmatprep.subr.bf16.mxu0 0
      %1860 = vmatpush1.bf16.msra.mxu0 0
      %1861 = vmatprep.subr.bf16.mxu0 0
      %1862 = vmatpush1.bf16.msra.mxu0 0
      %1863 = vmatprep.subr.bf16.mxu0 0
      %1864 = vmatpush1.bf16.msra.mxu0 0
      %1865 = vmatprep.subr.bf16.mxu0 0
      %1866 = vmatpush1.bf16.msra.mxu0 0
      %1867 = vmatprep.subr.bf16.mxu0 0
      %1868 = vmatpush1.bf16.msra.mxu0 0
      %1869 = vmatprep.subr.bf16.mxu0 0
      %1870 = vmatpush1.bf16.msra.mxu0 0
      %1871 = vmatprep.subr.bf16.mxu0 0
      %1872 = vmatpush1.bf16.msra.mxu0 0
      %1873 = vmatprep.subr.bf16.mxu0 0
      %1874 = vmatpush1.bf16.msra.mxu0 0
      %1875 = vmatprep.mubr.bf16.mxu0 0
      %1876 = vmatmul.mubr.bf16.gmra.mrb[0].mxu0 %v1787
      %v1877 = vpop.f32.mrb[0].mxu0
      %v1878 = vadd.f32 0.0, %v1877
      %v1879 = vpop.f32.mrb[0].mxu0
      %v1880 = vpop.f32.mrb[0].mxu0
      %v1881 = vadd.f32 0.0, %v1880
      %v1882 = vpop.f32.mrb[0].mxu0
      %1883 = vmatprep.mubr.bf16.mxu0 0
      %1884 = vmatmul.mubr.bf16.gmra.mrb[0].mxu0 %v1790
      %v1885 = vpop.f32.mrb[0].mxu0
      %v1886 = vadd.f32 0.0, %v1885
      %v1887 = vpop.f32.mrb[0].mxu0
      %v1888 = vpop.f32.mrb[0].mxu0
      %v1889 = vadd.f32 0.0, %v1888
      %v1890 = vpop.f32.mrb[0].mxu0
      %1891 = vmatprep.mubr.bf16.mxu0 0
      %1892 = vmatmul.mubr.bf16.gmra.mrb[0].mxu0 %v1793
      %v1893 = vpop.f32.mrb[0].mxu0
      %v1894 = vadd.f32 0.0, %v1893
      %v1895 = vpop.f32.mrb[0].mxu0
      %v1896 = vpop.f32.mrb[0].mxu0
      %v1897 = vadd.f32 0.0, %v1896
      %v1898 = vpop.f32.mrb[0].mxu0
      %1899 = vmatprep.mubr.bf16.mxu0 0
      %1900 = vmatmul.mubr.bf16.gmra.mrb[0].mxu0 %v1796
      %v1901 = vpop.f32.mrb[0].mxu0
      %v1902 = vadd.f32 0.0, %v1901
      %v1903 = vpop.f32.mrb[0].mxu0
      %v1904 = vpop.f32.mrb[0].mxu0
      %v1905 = vadd.f32 0.0, %v1904
      %v1906 = vpop.f32.mrb[0].mxu0
      %1907 = vmatprep.mubr.bf16.mxu0 0
      %1908 = vmatmul.mubr.bf16.gmra.mrb[0].mxu0 %v1799
      %v1909 = vpop.f32.mrb[0].mxu0
      %v1910 = vadd.f32 0.0, %v1909
      %v1911 = vpop.f32.mrb[0].mxu0
      %v1912 = vpop.f32.mrb[0].mxu0
      %v1913 = vadd.f32 0.0, %v1912
      %v1914 = vpop.f32.mrb[0].mxu0
      %1915 = vmatprep.mubr.bf16.mxu0 0
      %1916 = vmatmul.mubr.bf16.gmra.mrb[0].mxu0 %v1802
      %v1917 = vpop.f32.mrb[0].mxu0
      %v1918 = vadd.f32 0.0, %v1917
      %v1919 = vpop.f32.mrb[0].mxu0
      %v1920 = vpop.f32.mrb[0].mxu0
      %v1921 = vadd.f32 0.0, %v1920
      %v1922 = vpop.f32.mrb[0].mxu0
      %1923 = vmatprep.mubr.bf16.mxu0 0
      %1924 = vmatmul.mubr.bf16.gmra.mrb[0].mxu0 %v1805
      %v1925 = vpop.f32.mrb[0].mxu0
      %v1926 = vadd.f32 0.0, %v1925
      %v1927 = vpop.f32.mrb[0].mxu0
      %v1928 = vpop.f32.mrb[0].mxu0
      %v1929 = vadd.f32 0.0, %v1928
      %v1930 = vpop.f32.mrb[0].mxu0
      %1931 = vmatprep.mubr.bf16.mxu0 0
      %1932 = vmatmul.mubr.bf16.gmra.mrb[0].mxu0 %v1808
      %v1933 = vpop.f32.mrb[0].mxu0
      %v1934 = vadd.f32 0.0, %v1933
      %v1935 = vpop.f32.mrb[0].mxu0
      %v1936 = vpop.f32.mrb[0].mxu0
      %v1937 = vadd.f32 0.0, %v1936
      %v1938 = vpop.f32.mrb[0].mxu0
      %1939 = vmatprep.mubr.bf16.mxu0 0
      %1940 = vmatmul.mubr.bf16.gmra.mrb[0].mxu0 %v1811
      %v1941 = vpop.f32.mrb[0].mxu0
      %v1942 = vadd.f32 0.0, %v1941
      %v1943 = vpop.f32.mrb[0].mxu0
      %v1944 = vpop.f32.mrb[0].mxu0
      %v1945 = vadd.f32 0.0, %v1944
      %v1946 = vpop.f32.mrb[0].mxu0
      %1947 = vmatprep.mubr.bf16.mxu0 0
      %1948 = vmatmul.mubr.bf16.gmra.mrb[0].mxu0 %v1814
      %v1949 = vpop.f32.mrb[0].mxu0
      %v1950 = vadd.f32 0.0, %v1949
      %v1951 = vpop.f32.mrb[0].mxu0
      %v1952 = vpop.f32.mrb[0].mxu0
      %v1953 = vadd.f32 0.0, %v1952
      %v1954 = vpop.f32.mrb[0].mxu0
      %1955 = vmatprep.mubr.bf16.mxu0 0
      %1956 = vmatmul.mubr.bf16.gmra.mrb[0].mxu0 %v1817
      %v1957 = vpop.f32.mrb[0].mxu0
      %v1958 = vadd.f32 0.0, %v1957
      %v1959 = vpop.f32.mrb[0].mxu0
      %v1960 = vpop.f32.mrb[0].mxu0
      %v1961 = vadd.f32 0.0, %v1960
      %v1962 = vpop.f32.mrb[0].mxu0
      %1963 = vmatprep.mubr.bf16.mxu0 0
      %1964 = vmatmul.mubr.bf16.gmra.mrb[0].mxu0 %v1820
      %v1965 = vpop.f32.mrb[0].mxu0
      %v1966 = vadd.f32 0.0, %v1965
      %v1967 = vpop.f32.mrb[0].mxu0
      %v1968 = vpop.f32.mrb[0].mxu0
      %v1969 = vadd.f32 0.0, %v1968
      %v1970 = vpop.f32.mrb[0].mxu0
      %1971 = vmatprep.mubr.bf16.mxu0 0
      %1972 = vmatmul.mubr.bf16.gmra.mrb[0].mxu0 %v1823
      %v1973 = vpop.f32.mrb[0].mxu0
      %v1974 = vadd.f32 0.0, %v1973
      %v1975 = vpop.f32.mrb[0].mxu0
      %v1976 = vpop.f32.mrb[0].mxu0
      %v1977 = vadd.f32 0.0, %v1976
      %v1978 = vpop.f32.mrb[0].mxu0
      %1979 = vmatprep.mubr.bf16.mxu0 0
      %1980 = vmatmul.mubr.bf16.gmra.mrb[0].mxu0 %v1826
      %v1981 = vpop.f32.mrb[0].mxu0
      %v1982 = vadd.f32 0.0, %v1981
      %v1983 = vpop.f32.mrb[0].mxu0
      %v1984 = vpop.f32.mrb[0].mxu0
      %v1985 = vadd.f32 0.0, %v1984
      %v1986 = vpop.f32.mrb[0].mxu0
      %1987 = vmatprep.mubr.bf16.mxu0 0
      %1988 = vmatmul.mubr.bf16.gmra.mrb[0].mxu0 %v1829
      %v1989 = vpop.f32.mrb[0].mxu0
      %v1990 = vadd.f32 0.0, %v1989
      %v1991 = vpop.f32.mrb[0].mxu0
      %v1992 = vpop.f32.mrb[0].mxu0
      %v1993 = vadd.f32 0.0, %v1992
      %v1994 = vpop.f32.mrb[0].mxu0
      %1995 = vmatprep.mubr.bf16.mxu0 0
      %1996 = vmatmul.mubr.bf16.gmra.mrb[0].mxu0 %v1832
      %v1997 = vpop.f32.mrb[0].mxu0
      %v1998 = vadd.f32 0.0, %v1997
      %v1999 = vpop.f32.mrb[0].mxu0
      %v2000 = vpop.f32.mrb[0].mxu0
      %v2001 = vadd.f32 0.0, %v2000
      %v2002 = vpop.f32.mrb[0].mxu0
      %2003 = vmatprep.mubr.bf16.mxu0 0
      %2004 = vmatmul.mubr.bf16.gmra.mrb[0].mxu0 %v1835
      %v2005 = vpop.f32.mrb[0].mxu0
      %v2006 = vadd.f32 0.0, %v2005
      %v2007 = vpop.f32.mrb[0].mxu0
      %v2008 = vpop.f32.mrb[0].mxu0
      %v2009 = vadd.f32 0.0, %v2008
      %v2010 = vpop.f32.mrb[0].mxu0
      %2011 = vmatprep.mubr.bf16.mxu0 0
      %2012 = vmatmul.mubr.bf16.gmra.mrb[0].mxu0 %v1838
      %v2013 = vpop.f32.mrb[0].mxu0
      %v2014 = vadd.f32 0.0, %v2013
      %v2015 = vpop.f32.mrb[0].mxu0
      %v2016 = vpop.f32.mrb[0].mxu0
      %v2017 = vadd.f32 0.0, %v2016
      %v2018 = vpop.f32.mrb[0].mxu0
      %2019 = vdwg.mxu0
      %v2020 = vadd.f32 %v1694, %v1878
      %v2021 = vadd.f32 %v1695, %v1881
      %v2022 = vadd.f32 %v1696, %v1886
      %v2023 = vadd.f32 %v1697, %v1889
      %v2024 = vadd.f32 %v1698, %v1894
      %v2025 = vadd.f32 %v1699, %v1897
      %v2026 = vadd.f32 %v1700, %v1902
      %v2027 = vadd.f32 %v1701, %v1905
      %v2028 = vadd.f32 %v1702, %v1910
      %v2029 = vadd.f32 %v1703, %v1913
      %v2030 = vadd.f32 %v1704, %v1918
      %v2031 = vadd.f32 %v1705, %v1921
      %v2032 = vadd.f32 %v1706, %v1926
      %v2033 = vadd.f32 %v1707, %v1929
      %v2034 = vadd.f32 %v1708, %v1934
      %v2035 = vadd.f32 %v1709, %v1937
      %v2036 = vadd.f32 %v1710, %v1942
      %v2037 = vadd.f32 %v1711, %v1945
      %v2038 = vadd.f32 %v1712, %v1950
      %v2039 = vadd.f32 %v1713, %v1953
      %v2040 = vadd.f32 %v1714, %v1958
      %v2041 = vadd.f32 %v1715, %v1961
      %v2042 = vadd.f32 %v1716, %v1966
      %v2043 = vadd.f32 %v1717, %v1969
      %v2044 = vadd.f32 %v1718, %v1974
      %v2045 = vadd.f32 %v1719, %v1977
      %v2046 = vadd.f32 %v1720, %v1982
      %v2047 = vadd.f32 %v1721, %v1985
      %v2048 = vadd.f32 %v1722, %v1990
      %v2049 = vadd.f32 %v1723, %v1993
      %v2050 = vadd.f32 %v1724, %v1998
      %v2051 = vadd.f32 %v1725, %v2001
      %v2052 = vadd.f32 %v1726, %v2006
      %v2053 = vadd.f32 %v1727, %v2009
      %v2054 = vadd.f32 %v1728, %v2014
      %v2055 = vadd.f32 %v1729, %v2017
      %v2056 = vld [vmem:[#allocation2 + $0x14] sm:$0xff]
      %v2057 = vld [vmem:[#allocation2 + $0x1c] sm:$0xff]
      %v2058 = vld [vmem:[#allocation2 + $0x24] sm:$0xff]
      %v2059 = vld [vmem:[#allocation2 + $0x2c] sm:$0xff]
      %v2060 = vld [vmem:[#allocation2 + $0x34] sm:$0xff]
      %v2061 = vld [vmem:[#allocation2 + $0x3c] sm:$0xff]
      %v2062 = vld [vmem:[#allocation2 + $0x44] sm:$0xff]
      %v2063 = vld [vmem:[#allocation2 + $0x4c] sm:$0xff]
      %v2064 = vld [vmem:[#allocation2 + $0x54] sm:$0xff]
      %v2065 = vld [vmem:[#allocation2 + $0x5c] sm:$0xff]
      %v2066 = vld [vmem:[#allocation2 + $0x64] sm:$0xff]
      %v2067 = vld [vmem:[#allocation2 + $0x6c] sm:$0xff]
      %v2068 = vld [vmem:[#allocation2 + $0x74] sm:$0xff]
      %v2069 = vld [vmem:[#allocation2 + $0x7c] sm:$0xff]
      %v2070 = vld [vmem:[#allocation2 + $0x84] sm:$0xff]
      %v2071 = vld [vmem:[#allocation2 + $0x8c] sm:$0xff]
      %v2072 = vld [vmem:[#allocation2 + $0x94] sm:$0xff]
      %v2073 = vld [vmem:[#allocation2 + $0x9c] sm:$0xff]
      %v2074 = vld [vmem:[#allocation2 + $0xa4] sm:$0xff]
      %v2075 = vld [vmem:[#allocation2 + $0xac] sm:$0xff]
      %v2076 = vld [vmem:[#allocation2 + $0xb4] sm:$0xff]
      %v2077 = vld [vmem:[#allocation2 + $0xbc] sm:$0xff]
      %v2078 = vld [vmem:[#allocation2 + $0xc4] sm:$0xff]
      %v2079 = vld [vmem:[#allocation2 + $0xcc] sm:$0xff]
      %v2080 = vld [vmem:[#allocation2 + $0xd4] sm:$0xff]
      %v2081 = vld [vmem:[#allocation2 + $0xdc] sm:$0xff]
      %v2082 = vld [vmem:[#allocation2 + $0xe4] sm:$0xff]
      %v2083 = vld [vmem:[#allocation2 + $0xec] sm:$0xff]
      %v2084 = vld [vmem:[#allocation2 + $0xf4] sm:$0xff]
      %v2085 = vld [vmem:[#allocation2 + $0xfc] sm:$0xff]
      %v2086 = vld [vmem:[#allocation2 + $0x104] sm:$0xff]
      %v2087 = vld [vmem:[#allocation2 + $0x10c] sm:$0xff]
      %v2088 = vld [vmem:[#allocation2 + $0x114] sm:$0xff]
      %v2089 = vld [vmem:[#allocation2 + $0x11c] sm:$0xff]
      %v2090 = vld [vmem:[#allocation2 + $0x124] sm:$0xff]
      %v2091 = vld [vmem:[#allocation2 + $0x12c] sm:$0xff]
      %v2092 = vpack.c.bf16 %v2057, %v2056
      %v2093 = vpack.c.bf16 %v2059, %v2058
      %v2094 = vpack.c.bf16 %v2061, %v2060
      %v2095 = vpack.c.bf16 %v2063, %v2062
      %v2096 = vpack.c.bf16 %v2065, %v2064
      %v2097 = vpack.c.bf16 %v2067, %v2066
      %v2098 = vpack.c.bf16 %v2069, %v2068
      %v2099 = vpack.c.bf16 %v2071, %v2070
      %v2100 = vpack.c.bf16 %v2073, %v2072
      %v2101 = vpack.c.bf16 %v2075, %v2074
      %v2102 = vpack.c.bf16 %v2077, %v2076
      %v2103 = vpack.c.bf16 %v2079, %v2078
      %v2104 = vpack.c.bf16 %v2081, %v2080
      %v2105 = vpack.c.bf16 %v2083, %v2082
      %v2106 = vpack.c.bf16 %v2085, %v2084
      %v2107 = vpack.c.bf16 %v2087, %v2086
      %v2108 = vpack.c.bf16 %v2089, %v2088
      %v2109 = vpack.c.bf16 %v2091, %v2090
      %s2110 = scalar_lea.vmem %s2, 10
      %v2111 = vld [vmem:[%s2110] sm:$0x3]
      %v2113 = vsel %vm353, %v2092, 0
      %v2116 = vsel %vm353, %v2093, 0
      %v2119 = vsel %vm353, %v2094, 0
      %v2122 = vsel %vm353, %v2095, 0
      %v2125 = vsel %vm353, %v2096, 0
      %v2128 = vsel %vm353, %v2097, 0
      %v2131 = vsel %vm353, %v2098, 0
      %v2134 = vsel %vm353, %v2099, 0
      %v2137 = vsel %vm353, %v2100, 0
      %v2140 = vsel %vm353, %v2101, 0
      %v2143 = vsel %vm353, %v2102, 0
      %v2146 = vsel %vm353, %v2103, 0
      %v2149 = vsel %vm353, %v2104, 0
      %v2152 = vsel %vm353, %v2105, 0
      %v2155 = vsel %vm353, %v2106, 0
      %v2158 = vsel %vm353, %v2107, 0
      %v2161 = vsel %vm353, %v2108, 0
      %v2164 = vsel %vm353, %v2109, 0
      %v2167 = vsel %vm663, %v2111, 0
      %2169 = vmatprep.subr.bf16.mxu0 0
      %2170 = vmatpush1.bf16.msra.mxu0 %v2167
      %2171 = vmatprep.subr.bf16.mxu0 0
      %2172 = vmatpush1.bf16.msra.mxu0 0
      %2173 = vmatprep.subr.bf16.mxu0 0
      %2174 = vmatpush1.bf16.msra.mxu0 0
      %2175 = vmatprep.subr.bf16.mxu0 0
      %2176 = vmatpush1.bf16.msra.mxu0 0
      %2177 = vmatprep.subr.bf16.mxu0 0
      %2178 = vmatpush1.bf16.msra.mxu0 0
      %2179 = vmatprep.subr.bf16.mxu0 0
      %2180 = vmatpush1.bf16.msra.mxu0 0
      %2181 = vmatprep.subr.bf16.mxu0 0
      %2182 = vmatpush1.bf16.msra.mxu0 0
      %2183 = vmatprep.subr.bf16.mxu0 0
      %2184 = vmatpush1.bf16.msra.mxu0 0
      %2185 = vmatprep.subr.bf16.mxu0 0
      %2186 = vmatpush1.bf16.msra.mxu0 0
      %2187 = vmatprep.subr.bf16.mxu0 0
      %2188 = vmatpush1.bf16.msra.mxu0 0
      %2189 = vmatprep.subr.bf16.mxu0 0
      %2190 = vmatpush1.bf16.msra.mxu0 0
      %2191 = vmatprep.subr.bf16.mxu0 0
      %2192 = vmatpush1.bf16.msra.mxu0 0
      %2193 = vmatprep.subr.bf16.mxu0 0
      %2194 = vmatpush1.bf16.msra.mxu0 0
      %2195 = vmatprep.subr.bf16.mxu0 0
      %2196 = vmatpush1.bf16.msra.mxu0 0
      %2197 = vmatprep.subr.bf16.mxu0 0
      %2198 = vmatpush1.bf16.msra.mxu0 0
      %2199 = vmatprep.subr.bf16.mxu0 0
      %2200 = vmatpush1.bf16.msra.mxu0 0
      %2201 = vmatprep.mubr.bf16.mxu0 0
      %2202 = vmatmul.mubr.bf16.gmra.mrb[0].mxu0 %v2113
      %v2203 = vpop.f32.mrb[0].mxu0
      %v2204 = vadd.f32 0.0, %v2203
      %v2205 = vpop.f32.mrb[0].mxu0
      %v2206 = vpop.f32.mrb[0].mxu0
      %v2207 = vadd.f32 0.0, %v2206
      %v2208 = vpop.f32.mrb[0].mxu0
      %2209 = vmatprep.mubr.bf16.mxu0 0
      %2210 = vmatmul.mubr.bf16.gmra.mrb[0].mxu0 %v2116
      %v2211 = vpop.f32.mrb[0].mxu0
      %v2212 = vadd.f32 0.0, %v2211
      %v2213 = vpop.f32.mrb[0].mxu0
      %v2214 = vpop.f32.mrb[0].mxu0
      %v2215 = vadd.f32 0.0, %v2214
      %v2216 = vpop.f32.mrb[0].mxu0
      %2217 = vmatprep.mubr.bf16.mxu0 0
      %2218 = vmatmul.mubr.bf16.gmra.mrb[0].mxu0 %v2119
      %v2219 = vpop.f32.mrb[0].mxu0
      %v2220 = vadd.f32 0.0, %v2219
      %v2221 = vpop.f32.mrb[0].mxu0
      %v2222 = vpop.f32.mrb[0].mxu0
      %v2223 = vadd.f32 0.0, %v2222
      %v2224 = vpop.f32.mrb[0].mxu0
      %2225 = vmatprep.mubr.bf16.mxu0 0
      %2226 = vmatmul.mubr.bf16.gmra.mrb[0].mxu0 %v2122
      %v2227 = vpop.f32.mrb[0].mxu0
      %v2228 = vadd.f32 0.0, %v2227
      %v2229 = vpop.f32.mrb[0].mxu0
      %v2230 = vpop.f32.mrb[0].mxu0
      %v2231 = vadd.f32 0.0, %v2230
      %v2232 = vpop.f32.mrb[0].mxu0
      %2233 = vmatprep.mubr.bf16.mxu0 0
      %2234 = vmatmul.mubr.bf16.gmra.mrb[0].mxu0 %v2125
      %v2235 = vpop.f32.mrb[0].mxu0
      %v2236 = vadd.f32 0.0, %v2235
      %v2237 = vpop.f32.mrb[0].mxu0
      %v2238 = vpop.f32.mrb[0].mxu0
      %v2239 = vadd.f32 0.0, %v2238
      %v2240 = vpop.f32.mrb[0].mxu0
      %2241 = vmatprep.mubr.bf16.mxu0 0
      %2242 = vmatmul.mubr.bf16.gmra.mrb[0].mxu0 %v2128
      %v2243 = vpop.f32.mrb[0].mxu0
      %v2244 = vadd.f32 0.0, %v2243
      %v2245 = vpop.f32.mrb[0].mxu0
      %v2246 = vpop.f32.mrb[0].mxu0
      %v2247 = vadd.f32 0.0, %v2246
      %v2248 = vpop.f32.mrb[0].mxu0
      %2249 = vmatprep.mubr.bf16.mxu0 0
      %2250 = vmatmul.mubr.bf16.gmra.mrb[0].mxu0 %v2131
      %v2251 = vpop.f32.mrb[0].mxu0
      %v2252 = vadd.f32 0.0, %v2251
      %v2253 = vpop.f32.mrb[0].mxu0
      %v2254 = vpop.f32.mrb[0].mxu0
      %v2255 = vadd.f32 0.0, %v2254
      %v2256 = vpop.f32.mrb[0].mxu0
      %2257 = vmatprep.mubr.bf16.mxu0 0
      %2258 = vmatmul.mubr.bf16.gmra.mrb[0].mxu0 %v2134
      %v2259 = vpop.f32.mrb[0].mxu0
      %v2260 = vadd.f32 0.0, %v2259
      %v2261 = vpop.f32.mrb[0].mxu0
      %v2262 = vpop.f32.mrb[0].mxu0
      %v2263 = vadd.f32 0.0, %v2262
      %v2264 = vpop.f32.mrb[0].mxu0
      %2265 = vmatprep.mubr.bf16.mxu0 0
      %2266 = vmatmul.mubr.bf16.gmra.mrb[0].mxu0 %v2137
      %v2267 = vpop.f32.mrb[0].mxu0
      %v2268 = vadd.f32 0.0, %v2267
      %v2269 = vpop.f32.mrb[0].mxu0
      %v2270 = vpop.f32.mrb[0].mxu0
      %v2271 = vadd.f32 0.0, %v2270
      %v2272 = vpop.f32.mrb[0].mxu0
      %2273 = vmatprep.mubr.bf16.mxu0 0
      %2274 = vmatmul.mubr.bf16.gmra.mrb[0].mxu0 %v2140
      %v2275 = vpop.f32.mrb[0].mxu0
      %v2276 = vadd.f32 0.0, %v2275
      %v2277 = vpop.f32.mrb[0].mxu0
      %v2278 = vpop.f32.mrb[0].mxu0
      %v2279 = vadd.f32 0.0, %v2278
      %v2280 = vpop.f32.mrb[0].mxu0
      %2281 = vmatprep.mubr.bf16.mxu0 0
      %2282 = vmatmul.mubr.bf16.gmra.mrb[0].mxu0 %v2143
      %v2283 = vpop.f32.mrb[0].mxu0
      %v2284 = vadd.f32 0.0, %v2283
      %v2285 = vpop.f32.mrb[0].mxu0
      %v2286 = vpop.f32.mrb[0].mxu0
      %v2287 = vadd.f32 0.0, %v2286
      %v2288 = vpop.f32.mrb[0].mxu0
      %2289 = vmatprep.mubr.bf16.mxu0 0
      %2290 = vmatmul.mubr.bf16.gmra.mrb[0].mxu0 %v2146
      %v2291 = vpop.f32.mrb[0].mxu0
      %v2292 = vadd.f32 0.0, %v2291
      %v2293 = vpop.f32.mrb[0].mxu0
      %v2294 = vpop.f32.mrb[0].mxu0
      %v2295 = vadd.f32 0.0, %v2294
      %v2296 = vpop.f32.mrb[0].mxu0
      %2297 = vmatprep.mubr.bf16.mxu0 0
      %2298 = vmatmul.mubr.bf16.gmra.mrb[0].mxu0 %v2149
      %v2299 = vpop.f32.mrb[0].mxu0
      %v2300 = vadd.f32 0.0, %v2299
      %v2301 = vpop.f32.mrb[0].mxu0
      %v2302 = vpop.f32.mrb[0].mxu0
      %v2303 = vadd.f32 0.0, %v2302
      %v2304 = vpop.f32.mrb[0].mxu0
      %2305 = vmatprep.mubr.bf16.mxu0 0
      %2306 = vmatmul.mubr.bf16.gmra.mrb[0].mxu0 %v2152
      %v2307 = vpop.f32.mrb[0].mxu0
      %v2308 = vadd.f32 0.0, %v2307
      %v2309 = vpop.f32.mrb[0].mxu0
      %v2310 = vpop.f32.mrb[0].mxu0
      %v2311 = vadd.f32 0.0, %v2310
      %v2312 = vpop.f32.mrb[0].mxu0
      %2313 = vmatprep.mubr.bf16.mxu0 0
      %2314 = vmatmul.mubr.bf16.gmra.mrb[0].mxu0 %v2155
      %v2315 = vpop.f32.mrb[0].mxu0
      %v2316 = vadd.f32 0.0, %v2315
      %v2317 = vpop.f32.mrb[0].mxu0
      %v2318 = vpop.f32.mrb[0].mxu0
      %v2319 = vadd.f32 0.0, %v2318
      %v2320 = vpop.f32.mrb[0].mxu0
      %2321 = vmatprep.mubr.bf16.mxu0 0
      %2322 = vmatmul.mubr.bf16.gmra.mrb[0].mxu0 %v2158
      %v2323 = vpop.f32.mrb[0].mxu0
      %v2324 = vadd.f32 0.0, %v2323
      %v2325 = vpop.f32.mrb[0].mxu0
      %v2326 = vpop.f32.mrb[0].mxu0
      %v2327 = vadd.f32 0.0, %v2326
      %v2328 = vpop.f32.mrb[0].mxu0
      %2329 = vmatprep.mubr.bf16.mxu0 0
      %2330 = vmatmul.mubr.bf16.gmra.mrb[0].mxu0 %v2161
      %v2331 = vpop.f32.mrb[0].mxu0
      %v2332 = vadd.f32 0.0, %v2331
      %v2333 = vpop.f32.mrb[0].mxu0
      %v2334 = vpop.f32.mrb[0].mxu0
      %v2335 = vadd.f32 0.0, %v2334
      %v2336 = vpop.f32.mrb[0].mxu0
      %2337 = vmatprep.mubr.bf16.mxu0 0
      %2338 = vmatmul.mubr.bf16.gmra.mrb[0].mxu0 %v2164
      %v2339 = vpop.f32.mrb[0].mxu0
      %v2340 = vadd.f32 0.0, %v2339
      %v2341 = vpop.f32.mrb[0].mxu0
      %v2342 = vpop.f32.mrb[0].mxu0
      %v2343 = vadd.f32 0.0, %v2342
      %v2344 = vpop.f32.mrb[0].mxu0
      %2345 = vdwg.mxu0
      %v2346 = vadd.f32 %v2020, %v2204
      %v2347 = vadd.f32 %v2021, %v2207
      %v2348 = vadd.f32 %v2022, %v2212
      %v2349 = vadd.f32 %v2023, %v2215
      %v2350 = vadd.f32 %v2024, %v2220
      %v2351 = vadd.f32 %v2025, %v2223
      %v2352 = vadd.f32 %v2026, %v2228
      %v2353 = vadd.f32 %v2027, %v2231
      %v2354 = vadd.f32 %v2028, %v2236
      %v2355 = vadd.f32 %v2029, %v2239
      %v2356 = vadd.f32 %v2030, %v2244
      %v2357 = vadd.f32 %v2031, %v2247
      %v2358 = vadd.f32 %v2032, %v2252
      %v2359 = vadd.f32 %v2033, %v2255
      %v2360 = vadd.f32 %v2034, %v2260
      %v2361 = vadd.f32 %v2035, %v2263
      %v2362 = vadd.f32 %v2036, %v2268
      %v2363 = vadd.f32 %v2037, %v2271
      %v2364 = vadd.f32 %v2038, %v2276
      %v2365 = vadd.f32 %v2039, %v2279
      %v2366 = vadd.f32 %v2040, %v2284
      %v2367 = vadd.f32 %v2041, %v2287
      %v2368 = vadd.f32 %v2042, %v2292
      %v2369 = vadd.f32 %v2043, %v2295
      %v2370 = vadd.f32 %v2044, %v2300
      %v2371 = vadd.f32 %v2045, %v2303
      %v2372 = vadd.f32 %v2046, %v2308
      %v2373 = vadd.f32 %v2047, %v2311
      %v2374 = vadd.f32 %v2048, %v2316
      %v2375 = vadd.f32 %v2049, %v2319
      %v2376 = vadd.f32 %v2050, %v2324
      %v2377 = vadd.f32 %v2051, %v2327
      %v2378 = vadd.f32 %v2052, %v2332
      %v2379 = vadd.f32 %v2053, %v2335
      %v2380 = vadd.f32 %v2054, %v2340
      %v2381 = vadd.f32 %v2055, %v2343
      %v2382 = vld [vmem:[#allocation2 + $0x24] sm:$0xff]
      %v2383 = vld [vmem:[#allocation2 + $0x2c] sm:$0xff]
      %v2384 = vld [vmem:[#allocation2 + $0x34] sm:$0xff]
      %v2385 = vld [vmem:[#allocation2 + $0x3c] sm:$0xff]
      %v2386 = vld [vmem:[#allocation2 + $0x44] sm:$0xff]
      %v2387 = vld [vmem:[#allocation2 + $0x4c] sm:$0xff]
      %v2388 = vld [vmem:[#allocation2 + $0x54] sm:$0xff]
      %v2389 = vld [vmem:[#allocation2 + $0x5c] sm:$0xff]
      %v2390 = vld [vmem:[#allocation2 + $0x64] sm:$0xff]
      %v2391 = vld [vmem:[#allocation2 + $0x6c] sm:$0xff]
      %v2392 = vld [vmem:[#allocation2 + $0x74] sm:$0xff]
      %v2393 = vld [vmem:[#allocation2 + $0x7c] sm:$0xff]
      %v2394 = vld [vmem:[#allocation2 + $0x84] sm:$0xff]
      %v2395 = vld [vmem:[#allocation2 + $0x8c] sm:$0xff]
      %v2396 = vld [vmem:[#allocation2 + $0x94] sm:$0xff]
      %v2397 = vld [vmem:[#allocation2 + $0x9c] sm:$0xff]
      %v2398 = vld [vmem:[#allocation2 + $0xa4] sm:$0xff]
      %v2399 = vld [vmem:[#allocation2 + $0xac] sm:$0xff]
      %v2400 = vld [vmem:[#allocation2 + $0xb4] sm:$0xff]
      %v2401 = vld [vmem:[#allocation2 + $0xbc] sm:$0xff]
      %v2402 = vld [vmem:[#allocation2 + $0xc4] sm:$0xff]
      %v2403 = vld [vmem:[#allocation2 + $0xcc] sm:$0xff]
      %v2404 = vld [vmem:[#allocation2 + $0xd4] sm:$0xff]
      %v2405 = vld [vmem:[#allocation2 + $0xdc] sm:$0xff]
      %v2406 = vld [vmem:[#allocation2 + $0xe4] sm:$0xff]
      %v2407 = vld [vmem:[#allocation2 + $0xec] sm:$0xff]
      %v2408 = vld [vmem:[#allocation2 + $0xf4] sm:$0xff]
      %v2409 = vld [vmem:[#allocation2 + $0xfc] sm:$0xff]
      %v2410 = vld [vmem:[#allocation2 + $0x104] sm:$0xff]
      %v2411 = vld [vmem:[#allocation2 + $0x10c] sm:$0xff]
      %v2412 = vld [vmem:[#allocation2 + $0x114] sm:$0xff]
      %v2413 = vld [vmem:[#allocation2 + $0x11c] sm:$0xff]
      %v2414 = vld [vmem:[#allocation2 + $0x124] sm:$0xff]
      %v2415 = vld [vmem:[#allocation2 + $0x12c] sm:$0xff]
      %v2416 = vld [vmem:[#allocation2 + $0x134] sm:$0xff]
      %v2417 = vld [vmem:[#allocation2 + $0x13c] sm:$0xff]
      %v2418 = vpack.c.bf16 %v2383, %v2382
      %v2419 = vpack.c.bf16 %v2385, %v2384
      %v2420 = vpack.c.bf16 %v2387, %v2386
      %v2421 = vpack.c.bf16 %v2389, %v2388
      %v2422 = vpack.c.bf16 %v2391, %v2390
      %v2423 = vpack.c.bf16 %v2393, %v2392
      %v2424 = vpack.c.bf16 %v2395, %v2394
      %v2425 = vpack.c.bf16 %v2397, %v2396
      %v2426 = vpack.c.bf16 %v2399, %v2398
      %v2427 = vpack.c.bf16 %v2401, %v2400
      %v2428 = vpack.c.bf16 %v2403, %v2402
      %v2429 = vpack.c.bf16 %v2405, %v2404
      %v2430 = vpack.c.bf16 %v2407, %v2406
      %v2431 = vpack.c.bf16 %v2409, %v2408
      %v2432 = vpack.c.bf16 %v2411, %v2410
      %v2433 = vpack.c.bf16 %v2413, %v2412
      %v2434 = vpack.c.bf16 %v2415, %v2414
      %v2435 = vpack.c.bf16 %v2417, %v2416
      %s2436 = scalar_lea.vmem %s2, 12
      %v2437 = vld [vmem:[%s2436] sm:$0x3]
      %v2439 = vsel %vm353, %v2418, 0
      %v2442 = vsel %vm353, %v2419, 0
      %v2445 = vsel %vm353, %v2420, 0
      %v2448 = vsel %vm353, %v2421, 0
      %v2451 = vsel %vm353, %v2422, 0
      %v2454 = vsel %vm353, %v2423, 0
      %v2457 = vsel %vm353, %v2424, 0
      %v2460 = vsel %vm353, %v2425, 0
      %v2463 = vsel %vm353, %v2426, 0
      %v2466 = vsel %vm353, %v2427, 0
      %v2469 = vsel %vm353, %v2428, 0
      %v2472 = vsel %vm353, %v2429, 0
      %v2475 = vsel %vm353, %v2430, 0
      %v2478 = vsel %vm353, %v2431, 0
      %v2481 = vsel %vm353, %v2432, 0
      %v2484 = vsel %vm353, %v2433, 0
      %v2487 = vsel %vm353, %v2434, 0
      %v2490 = vsel %vm353, %v2435, 0
      %v2493 = vsel %vm663, %v2437, 0
      %2495 = vmatprep.subr.bf16.mxu0 0
      %2496 = vmatpush1.bf16.msra.mxu0 %v2493
      %2497 = vmatprep.subr.bf16.mxu0 0
      %2498 = vmatpush1.bf16.msra.mxu0 0
      %2499 = vmatprep.subr.bf16.mxu0 0
      %2500 = vmatpush1.bf16.msra.mxu0 0
      %2501 = vmatprep.subr.bf16.mxu0 0
      %2502 = vmatpush1.bf16.msra.mxu0 0
      %2503 = vmatprep.subr.bf16.mxu0 0
      %2504 = vmatpush1.bf16.msra.mxu0 0
      %2505 = vmatprep.subr.bf16.mxu0 0
      %2506 = vmatpush1.bf16.msra.mxu0 0
      %2507 = vmatprep.subr.bf16.mxu0 0
      %2508 = vmatpush1.bf16.msra.mxu0 0
      %2509 = vmatprep.subr.bf16.mxu0 0
      %2510 = vmatpush1.bf16.msra.mxu0 0
      %2511 = vmatprep.subr.bf16.mxu0 0
      %2512 = vmatpush1.bf16.msra.mxu0 0
      %2513 = vmatprep.subr.bf16.mxu0 0
      %2514 = vmatpush1.bf16.msra.mxu0 0
      %2515 = vmatprep.subr.bf16.mxu0 0
      %2516 = vmatpush1.bf16.msra.mxu0 0
      %2517 = vmatprep.subr.bf16.mxu0 0
      %2518 = vmatpush1.bf16.msra.mxu0 0
      %2519 = vmatprep.subr.bf16.mxu0 0
      %2520 = vmatpush1.bf16.msra.mxu0 0
      %2521 = vmatprep.subr.bf16.mxu0 0
      %2522 = vmatpush1.bf16.msra.mxu0 0
      %2523 = vmatprep.subr.bf16.mxu0 0
      %2524 = vmatpush1.bf16.msra.mxu0 0
      %2525 = vmatprep.subr.bf16.mxu0 0
      %2526 = vmatpush1.bf16.msra.mxu0 0
      %2527 = vmatprep.mubr.bf16.mxu0 0
      %2528 = vmatmul.mubr.bf16.gmra.mrb[0].mxu0 %v2439
      %v2529 = vpop.f32.mrb[0].mxu0
      %v2530 = vadd.f32 0.0, %v2529
      %v2531 = vpop.f32.mrb[0].mxu0
      %v2532 = vpop.f32.mrb[0].mxu0
      %v2533 = vadd.f32 0.0, %v2532
      %v2534 = vpop.f32.mrb[0].mxu0
      %2535 = vmatprep.mubr.bf16.mxu0 0
      %2536 = vmatmul.mubr.bf16.gmra.mrb[0].mxu0 %v2442
      %v2537 = vpop.f32.mrb[0].mxu0
      %v2538 = vadd.f32 0.0, %v2537
      %v2539 = vpop.f32.mrb[0].mxu0
      %v2540 = vpop.f32.mrb[0].mxu0
      %v2541 = vadd.f32 0.0, %v2540
      %v2542 = vpop.f32.mrb[0].mxu0
      %2543 = vmatprep.mubr.bf16.mxu0 0
      %2544 = vmatmul.mubr.bf16.gmra.mrb[0].mxu0 %v2445
      %v2545 = vpop.f32.mrb[0].mxu0
      %v2546 = vadd.f32 0.0, %v2545
      %v2547 = vpop.f32.mrb[0].mxu0
      %v2548 = vpop.f32.mrb[0].mxu0
      %v2549 = vadd.f32 0.0, %v2548
      %v2550 = vpop.f32.mrb[0].mxu0
      %2551 = vmatprep.mubr.bf16.mxu0 0
      %2552 = vmatmul.mubr.bf16.gmra.mrb[0].mxu0 %v2448
      %v2553 = vpop.f32.mrb[0].mxu0
      %v2554 = vadd.f32 0.0, %v2553
      %v2555 = vpop.f32.mrb[0].mxu0
      %v2556 = vpop.f32.mrb[0].mxu0
      %v2557 = vadd.f32 0.0, %v2556
      %v2558 = vpop.f32.mrb[0].mxu0
      %2559 = vmatprep.mubr.bf16.mxu0 0
      %2560 = vmatmul.mubr.bf16.gmra.mrb[0].mxu0 %v2451
      %v2561 = vpop.f32.mrb[0].mxu0
      %v2562 = vadd.f32 0.0, %v2561
      %v2563 = vpop.f32.mrb[0].mxu0
      %v2564 = vpop.f32.mrb[0].mxu0
      %v2565 = vadd.f32 0.0, %v2564
      %v2566 = vpop.f32.mrb[0].mxu0
      %2567 = vmatprep.mubr.bf16.mxu0 0
      %2568 = vmatmul.mubr.bf16.gmra.mrb[0].mxu0 %v2454
      %v2569 = vpop.f32.mrb[0].mxu0
      %v2570 = vadd.f32 0.0, %v2569
      %v2571 = vpop.f32.mrb[0].mxu0
      %v2572 = vpop.f32.mrb[0].mxu0
      %v2573 = vadd.f32 0.0, %v2572
      %v2574 = vpop.f32.mrb[0].mxu0
      %2575 = vmatprep.mubr.bf16.mxu0 0
      %2576 = vmatmul.mubr.bf16.gmra.mrb[0].mxu0 %v2457
      %v2577 = vpop.f32.mrb[0].mxu0
      %v2578 = vadd.f32 0.0, %v2577
      %v2579 = vpop.f32.mrb[0].mxu0
      %v2580 = vpop.f32.mrb[0].mxu0
      %v2581 = vadd.f32 0.0, %v2580
      %v2582 = vpop.f32.mrb[0].mxu0
      %2583 = vmatprep.mubr.bf16.mxu0 0
      %2584 = vmatmul.mubr.bf16.gmra.mrb[0].mxu0 %v2460
      %v2585 = vpop.f32.mrb[0].mxu0
      %v2586 = vadd.f32 0.0, %v2585
      %v2587 = vpop.f32.mrb[0].mxu0
      %v2588 = vpop.f32.mrb[0].mxu0
      %v2589 = vadd.f32 0.0, %v2588
      %v2590 = vpop.f32.mrb[0].mxu0
      %2591 = vmatprep.mubr.bf16.mxu0 0
      %2592 = vmatmul.mubr.bf16.gmra.mrb[0].mxu0 %v2463
      %v2593 = vpop.f32.mrb[0].mxu0
      %v2594 = vadd.f32 0.0, %v2593
      %v2595 = vpop.f32.mrb[0].mxu0
      %v2596 = vpop.f32.mrb[0].mxu0
      %v2597 = vadd.f32 0.0, %v2596
      %v2598 = vpop.f32.mrb[0].mxu0
      %2599 = vmatprep.mubr.bf16.mxu0 0
      %2600 = vmatmul.mubr.bf16.gmra.mrb[0].mxu0 %v2466
      %v2601 = vpop.f32.mrb[0].mxu0
      %v2602 = vadd.f32 0.0, %v2601
      %v2603 = vpop.f32.mrb[0].mxu0
      %v2604 = vpop.f32.mrb[0].mxu0
      %v2605 = vadd.f32 0.0, %v2604
      %v2606 = vpop.f32.mrb[0].mxu0
      %2607 = vmatprep.mubr.bf16.mxu0 0
      %2608 = vmatmul.mubr.bf16.gmra.mrb[0].mxu0 %v2469
      %v2609 = vpop.f32.mrb[0].mxu0
      %v2610 = vadd.f32 0.0, %v2609
      %v2611 = vpop.f32.mrb[0].mxu0
      %v2612 = vpop.f32.mrb[0].mxu0
      %v2613 = vadd.f32 0.0, %v2612
      %v2614 = vpop.f32.mrb[0].mxu0
      %2615 = vmatprep.mubr.bf16.mxu0 0
      %2616 = vmatmul.mubr.bf16.gmra.mrb[0].mxu0 %v2472
      %v2617 = vpop.f32.mrb[0].mxu0
      %v2618 = vadd.f32 0.0, %v2617
      %v2619 = vpop.f32.mrb[0].mxu0
      %v2620 = vpop.f32.mrb[0].mxu0
      %v2621 = vadd.f32 0.0, %v2620
      %v2622 = vpop.f32.mrb[0].mxu0
      %2623 = vmatprep.mubr.bf16.mxu0 0
      %2624 = vmatmul.mubr.bf16.gmra.mrb[0].mxu0 %v2475
      %v2625 = vpop.f32.mrb[0].mxu0
      %v2626 = vadd.f32 0.0, %v2625
      %v2627 = vpop.f32.mrb[0].mxu0
      %v2628 = vpop.f32.mrb[0].mxu0
      %v2629 = vadd.f32 0.0, %v2628
      %v2630 = vpop.f32.mrb[0].mxu0
      %2631 = vmatprep.mubr.bf16.mxu0 0
      %2632 = vmatmul.mubr.bf16.gmra.mrb[0].mxu0 %v2478
      %v2633 = vpop.f32.mrb[0].mxu0
      %v2634 = vadd.f32 0.0, %v2633
      %v2635 = vpop.f32.mrb[0].mxu0
      %v2636 = vpop.f32.mrb[0].mxu0
      %v2637 = vadd.f32 0.0, %v2636
      %v2638 = vpop.f32.mrb[0].mxu0
      %2639 = vmatprep.mubr.bf16.mxu0 0
      %2640 = vmatmul.mubr.bf16.gmra.mrb[0].mxu0 %v2481
      %v2641 = vpop.f32.mrb[0].mxu0
      %v2642 = vadd.f32 0.0, %v2641
      %v2643 = vpop.f32.mrb[0].mxu0
      %v2644 = vpop.f32.mrb[0].mxu0
      %v2645 = vadd.f32 0.0, %v2644
      %v2646 = vpop.f32.mrb[0].mxu0
      %2647 = vmatprep.mubr.bf16.mxu0 0
      %2648 = vmatmul.mubr.bf16.gmra.mrb[0].mxu0 %v2484
      %v2649 = vpop.f32.mrb[0].mxu0
      %v2650 = vadd.f32 0.0, %v2649
      %v2651 = vpop.f32.mrb[0].mxu0
      %v2652 = vpop.f32.mrb[0].mxu0
      %v2653 = vadd.f32 0.0, %v2652
      %v2654 = vpop.f32.mrb[0].mxu0
      %2655 = vmatprep.mubr.bf16.mxu0 0
      %2656 = vmatmul.mubr.bf16.gmra.mrb[0].mxu0 %v2487
      %v2657 = vpop.f32.mrb[0].mxu0
      %v2658 = vadd.f32 0.0, %v2657
      %v2659 = vpop.f32.mrb[0].mxu0
      %v2660 = vpop.f32.mrb[0].mxu0
      %v2661 = vadd.f32 0.0, %v2660
      %v2662 = vpop.f32.mrb[0].mxu0
      %2663 = vmatprep.mubr.bf16.mxu0 0
      %2664 = vmatmul.mubr.bf16.gmra.mrb[0].mxu0 %v2490
      %v2665 = vpop.f32.mrb[0].mxu0
      %v2666 = vadd.f32 0.0, %v2665
      %v2667 = vpop.f32.mrb[0].mxu0
      %v2668 = vpop.f32.mrb[0].mxu0
      %v2669 = vadd.f32 0.0, %v2668
      %v2670 = vpop.f32.mrb[0].mxu0
      %2671 = vdwg.mxu0
      %v2672 = vadd.f32 %v2346, %v2530
      %v2673 = vadd.f32 %v2347, %v2533
      %v2674 = vadd.f32 %v2348, %v2538
      %v2675 = vadd.f32 %v2349, %v2541
      %v2676 = vadd.f32 %v2350, %v2546
      %v2677 = vadd.f32 %v2351, %v2549
      %v2678 = vadd.f32 %v2352, %v2554
      %v2679 = vadd.f32 %v2353, %v2557
      %v2680 = vadd.f32 %v2354, %v2562
      %v2681 = vadd.f32 %v2355, %v2565
      %v2682 = vadd.f32 %v2356, %v2570
      %v2683 = vadd.f32 %v2357, %v2573
      %v2684 = vadd.f32 %v2358, %v2578
      %v2685 = vadd.f32 %v2359, %v2581
      %v2686 = vadd.f32 %v2360, %v2586
      %v2687 = vadd.f32 %v2361, %v2589
      %v2688 = vadd.f32 %v2362, %v2594
      %v2689 = vadd.f32 %v2363, %v2597
      %v2690 = vadd.f32 %v2364, %v2602
      %v2691 = vadd.f32 %v2365, %v2605
      %v2692 = vadd.f32 %v2366, %v2610
      %v2693 = vadd.f32 %v2367, %v2613
      %v2694 = vadd.f32 %v2368, %v2618
      %v2695 = vadd.f32 %v2369, %v2621
      %v2696 = vadd.f32 %v2370, %v2626
      %v2697 = vadd.f32 %v2371, %v2629
      %v2698 = vadd.f32 %v2372, %v2634
      %v2699 = vadd.f32 %v2373, %v2637
      %v2700 = vadd.f32 %v2374, %v2642
      %v2701 = vadd.f32 %v2375, %v2645
      %v2702 = vadd.f32 %v2376, %v2650
      %v2703 = vadd.f32 %v2377, %v2653
      %v2704 = vadd.f32 %v2378, %v2658
      %v2705 = vadd.f32 %v2379, %v2661
      %v2706 = vadd.f32 %v2380, %v2666
      %v2707 = vadd.f32 %v2381, %v2669
      %v2708 = vld [vmem:[#allocation2 + $0x25] sm:$0xff]
      %v2709 = vld [vmem:[#allocation2 + $0x2d] sm:$0xff]
      %v2710 = vld [vmem:[#allocation2 + $0x35] sm:$0xff]
      %v2711 = vld [vmem:[#allocation2 + $0x3d] sm:$0xff]
      %v2712 = vld [vmem:[#allocation2 + $0x45] sm:$0xff]
      %v2713 = vld [vmem:[#allocation2 + $0x4d] sm:$0xff]
      %v2714 = vld [vmem:[#allocation2 + $0x55] sm:$0xff]
      %v2715 = vld [vmem:[#allocation2 + $0x5d] sm:$0xff]
      %v2716 = vld [vmem:[#allocation2 + $0x65] sm:$0xff]
      %v2717 = vld [vmem:[#allocation2 + $0x6d] sm:$0xff]
      %v2718 = vld [vmem:[#allocation2 + $0x75] sm:$0xff]
      %v2719 = vld [vmem:[#allocation2 + $0x7d] sm:$0xff]
      %v2720 = vld [vmem:[#allocation2 + $0x85] sm:$0xff]
      %v2721 = vld [vmem:[#allocation2 + $0x8d] sm:$0xff]
      %v2722 = vld [vmem:[#allocation2 + $0x95] sm:$0xff]
      %v2723 = vld [vmem:[#allocation2 + $0x9d] sm:$0xff]
      %v2724 = vld [vmem:[#allocation2 + $0xa5] sm:$0xff]
      %v2725 = vld [vmem:[#allocation2 + $0xad] sm:$0xff]
      %v2726 = vld [vmem:[#allocation2 + $0xb5] sm:$0xff]
      %v2727 = vld [vmem:[#allocation2 + $0xbd] sm:$0xff]
      %v2728 = vld [vmem:[#allocation2 + $0xc5] sm:$0xff]
      %v2729 = vld [vmem:[#allocation2 + $0xcd] sm:$0xff]
      %v2730 = vld [vmem:[#allocation2 + $0xd5] sm:$0xff]
      %v2731 = vld [vmem:[#allocation2 + $0xdd] sm:$0xff]
      %v2732 = vld [vmem:[#allocation2 + $0xe5] sm:$0xff]
      %v2733 = vld [vmem:[#allocation2 + $0xed] sm:$0xff]
      %v2734 = vld [vmem:[#allocation2 + $0xf5] sm:$0xff]
      %v2735 = vld [vmem:[#allocation2 + $0xfd] sm:$0xff]
      %v2736 = vld [vmem:[#allocation2 + $0x105] sm:$0xff]
      %v2737 = vld [vmem:[#allocation2 + $0x10d] sm:$0xff]
      %v2738 = vld [vmem:[#allocation2 + $0x115] sm:$0xff]
      %v2739 = vld [vmem:[#allocation2 + $0x11d] sm:$0xff]
      %v2740 = vld [vmem:[#allocation2 + $0x125] sm:$0xff]
      %v2741 = vld [vmem:[#allocation2 + $0x12d] sm:$0xff]
      %v2742 = vld [vmem:[#allocation2 + $0x135] sm:$0xff]
      %v2743 = vld [vmem:[#allocation2 + $0x13d] sm:$0xff]
      %v2744 = vpack.c.bf16 %v2709, %v2708
      %v2745 = vpack.c.bf16 %v2711, %v2710
      %v2746 = vpack.c.bf16 %v2713, %v2712
      %v2747 = vpack.c.bf16 %v2715, %v2714
      %v2748 = vpack.c.bf16 %v2717, %v2716
      %v2749 = vpack.c.bf16 %v2719, %v2718
      %v2750 = vpack.c.bf16 %v2721, %v2720
      %v2751 = vpack.c.bf16 %v2723, %v2722
      %v2752 = vpack.c.bf16 %v2725, %v2724
      %v2753 = vpack.c.bf16 %v2727, %v2726
      %v2754 = vpack.c.bf16 %v2729, %v2728
      %v2755 = vpack.c.bf16 %v2731, %v2730
      %v2756 = vpack.c.bf16 %v2733, %v2732
      %v2757 = vpack.c.bf16 %v2735, %v2734
      %v2758 = vpack.c.bf16 %v2737, %v2736
      %v2759 = vpack.c.bf16 %v2739, %v2738
      %v2760 = vpack.c.bf16 %v2741, %v2740
      %v2761 = vpack.c.bf16 %v2743, %v2742
      %s2762 = scalar_lea.vmem %s2, 14
      %v2763 = vld [vmem:[%s2762] sm:$0x3]
      %v2765 = vsel %vm353, %v2744, 0
      %v2768 = vsel %vm353, %v2745, 0
      %v2771 = vsel %vm353, %v2746, 0
      %v2774 = vsel %vm353, %v2747, 0
      %v2777 = vsel %vm353, %v2748, 0
      %v2780 = vsel %vm353, %v2749, 0
      %v2783 = vsel %vm353, %v2750, 0
      %v2786 = vsel %vm353, %v2751, 0
      %v2789 = vsel %vm353, %v2752, 0
      %v2792 = vsel %vm353, %v2753, 0
      %v2795 = vsel %vm353, %v2754, 0
      %v2798 = vsel %vm353, %v2755, 0
      %v2801 = vsel %vm353, %v2756, 0
      %v2804 = vsel %vm353, %v2757, 0
      %v2807 = vsel %vm353, %v2758, 0
      %v2810 = vsel %vm353, %v2759, 0
      %v2813 = vsel %vm353, %v2760, 0
      %v2816 = vsel %vm353, %v2761, 0
      %v2819 = vsel %vm663, %v2763, 0
      %2821 = vmatprep.subr.bf16.mxu0 0
      %2822 = vmatpush1.bf16.msra.mxu0 %v2819
      %2823 = vmatprep.subr.bf16.mxu0 0
      %2824 = vmatpush1.bf16.msra.mxu0 0
      %2825 = vmatprep.subr.bf16.mxu0 0
      %2826 = vmatpush1.bf16.msra.mxu0 0
      %2827 = vmatprep.subr.bf16.mxu0 0
      %2828 = vmatpush1.bf16.msra.mxu0 0
      %2829 = vmatprep.subr.bf16.mxu0 0
      %2830 = vmatpush1.bf16.msra.mxu0 0
      %2831 = vmatprep.subr.bf16.mxu0 0
      %2832 = vmatpush1.bf16.msra.mxu0 0
      %2833 = vmatprep.subr.bf16.mxu0 0
      %2834 = vmatpush1.bf16.msra.mxu0 0
      %2835 = vmatprep.subr.bf16.mxu0 0
      %2836 = vmatpush1.bf16.msra.mxu0 0
      %2837 = vmatprep.subr.bf16.mxu0 0
      %2838 = vmatpush1.bf16.msra.mxu0 0
      %2839 = vmatprep.subr.bf16.mxu0 0
      %2840 = vmatpush1.bf16.msra.mxu0 0
      %2841 = vmatprep.subr.bf16.mxu0 0
      %2842 = vmatpush1.bf16.msra.mxu0 0
      %2843 = vmatprep.subr.bf16.mxu0 0
      %2844 = vmatpush1.bf16.msra.mxu0 0
      %2845 = vmatprep.subr.bf16.mxu0 0
      %2846 = vmatpush1.bf16.msra.mxu0 0
      %2847 = vmatprep.subr.bf16.mxu0 0
      %2848 = vmatpush1.bf16.msra.mxu0 0
      %2849 = vmatprep.subr.bf16.mxu0 0
      %2850 = vmatpush1.bf16.msra.mxu0 0
      %2851 = vmatprep.subr.bf16.mxu0 0
      %2852 = vmatpush1.bf16.msra.mxu0 0
      %2853 = vmatprep.mubr.bf16.mxu0 0
      %2854 = vmatmul.mubr.bf16.gmra.mrb[0].mxu0 %v2765
      %v2855 = vpop.f32.mrb[0].mxu0
      %v2856 = vadd.f32 0.0, %v2855
      %v2857 = vpop.f32.mrb[0].mxu0
      %v2858 = vpop.f32.mrb[0].mxu0
      %v2859 = vadd.f32 0.0, %v2858
      %v2860 = vpop.f32.mrb[0].mxu0
      %2861 = vmatprep.mubr.bf16.mxu0 0
      %2862 = vmatmul.mubr.bf16.gmra.mrb[0].mxu0 %v2768
      %v2863 = vpop.f32.mrb[0].mxu0
      %v2864 = vadd.f32 0.0, %v2863
      %v2865 = vpop.f32.mrb[0].mxu0
      %v2866 = vpop.f32.mrb[0].mxu0
      %v2867 = vadd.f32 0.0, %v2866
      %v2868 = vpop.f32.mrb[0].mxu0
      %2869 = vmatprep.mubr.bf16.mxu0 0
      %2870 = vmatmul.mubr.bf16.gmra.mrb[0].mxu0 %v2771
      %v2871 = vpop.f32.mrb[0].mxu0
      %v2872 = vadd.f32 0.0, %v2871
      %v2873 = vpop.f32.mrb[0].mxu0
      %v2874 = vpop.f32.mrb[0].mxu0
      %v2875 = vadd.f32 0.0, %v2874
      %v2876 = vpop.f32.mrb[0].mxu0
      %2877 = vmatprep.mubr.bf16.mxu0 0
      %2878 = vmatmul.mubr.bf16.gmra.mrb[0].mxu0 %v2774
      %v2879 = vpop.f32.mrb[0].mxu0
      %v2880 = vadd.f32 0.0, %v2879
      %v2881 = vpop.f32.mrb[0].mxu0
      %v2882 = vpop.f32.mrb[0].mxu0
      %v2883 = vadd.f32 0.0, %v2882
      %v2884 = vpop.f32.mrb[0].mxu0
      %2885 = vmatprep.mubr.bf16.mxu0 0
      %2886 = vmatmul.mubr.bf16.gmra.mrb[0].mxu0 %v2777
      %v2887 = vpop.f32.mrb[0].mxu0
      %v2888 = vadd.f32 0.0, %v2887
      %v2889 = vpop.f32.mrb[0].mxu0
      %v2890 = vpop.f32.mrb[0].mxu0
      %v2891 = vadd.f32 0.0, %v2890
      %v2892 = vpop.f32.mrb[0].mxu0
      %2893 = vmatprep.mubr.bf16.mxu0 0
      %2894 = vmatmul.mubr.bf16.gmra.mrb[0].mxu0 %v2780
      %v2895 = vpop.f32.mrb[0].mxu0
      %v2896 = vadd.f32 0.0, %v2895
      %v2897 = vpop.f32.mrb[0].mxu0
      %v2898 = vpop.f32.mrb[0].mxu0
      %v2899 = vadd.f32 0.0, %v2898
      %v2900 = vpop.f32.mrb[0].mxu0
      %2901 = vmatprep.mubr.bf16.mxu0 0
      %2902 = vmatmul.mubr.bf16.gmra.mrb[0].mxu0 %v2783
      %v2903 = vpop.f32.mrb[0].mxu0
      %v2904 = vadd.f32 0.0, %v2903
      %v2905 = vpop.f32.mrb[0].mxu0
      %v2906 = vpop.f32.mrb[0].mxu0
      %v2907 = vadd.f32 0.0, %v2906
      %v2908 = vpop.f32.mrb[0].mxu0
      %2909 = vmatprep.mubr.bf16.mxu0 0
      %2910 = vmatmul.mubr.bf16.gmra.mrb[0].mxu0 %v2786
      %v2911 = vpop.f32.mrb[0].mxu0
      %v2912 = vadd.f32 0.0, %v2911
      %v2913 = vpop.f32.mrb[0].mxu0
      %v2914 = vpop.f32.mrb[0].mxu0
      %v2915 = vadd.f32 0.0, %v2914
      %v2916 = vpop.f32.mrb[0].mxu0
      %2917 = vmatprep.mubr.bf16.mxu0 0
      %2918 = vmatmul.mubr.bf16.gmra.mrb[0].mxu0 %v2789
      %v2919 = vpop.f32.mrb[0].mxu0
      %v2920 = vadd.f32 0.0, %v2919
      %v2921 = vpop.f32.mrb[0].mxu0
      %v2922 = vpop.f32.mrb[0].mxu0
      %v2923 = vadd.f32 0.0, %v2922
      %v2924 = vpop.f32.mrb[0].mxu0
      %2925 = vmatprep.mubr.bf16.mxu0 0
      %2926 = vmatmul.mubr.bf16.gmra.mrb[0].mxu0 %v2792
      %v2927 = vpop.f32.mrb[0].mxu0
      %v2928 = vadd.f32 0.0, %v2927
      %v2929 = vpop.f32.mrb[0].mxu0
      %v2930 = vpop.f32.mrb[0].mxu0
      %v2931 = vadd.f32 0.0, %v2930
      %v2932 = vpop.f32.mrb[0].mxu0
      %2933 = vmatprep.mubr.bf16.mxu0 0
      %2934 = vmatmul.mubr.bf16.gmra.mrb[0].mxu0 %v2795
      %v2935 = vpop.f32.mrb[0].mxu0
      %v2936 = vadd.f32 0.0, %v2935
      %v2937 = vpop.f32.mrb[0].mxu0
      %v2938 = vpop.f32.mrb[0].mxu0
      %v2939 = vadd.f32 0.0, %v2938
      %v2940 = vpop.f32.mrb[0].mxu0
      %2941 = vmatprep.mubr.bf16.mxu0 0
      %2942 = vmatmul.mubr.bf16.gmra.mrb[0].mxu0 %v2798
      %v2943 = vpop.f32.mrb[0].mxu0
      %v2944 = vadd.f32 0.0, %v2943
      %v2945 = vpop.f32.mrb[0].mxu0
      %v2946 = vpop.f32.mrb[0].mxu0
      %v2947 = vadd.f32 0.0, %v2946
      %v2948 = vpop.f32.mrb[0].mxu0
      %2949 = vmatprep.mubr.bf16.mxu0 0
      %2950 = vmatmul.mubr.bf16.gmra.mrb[0].mxu0 %v2801
      %v2951 = vpop.f32.mrb[0].mxu0
      %v2952 = vadd.f32 0.0, %v2951
      %v2953 = vpop.f32.mrb[0].mxu0
      %v2954 = vpop.f32.mrb[0].mxu0
      %v2955 = vadd.f32 0.0, %v2954
      %v2956 = vpop.f32.mrb[0].mxu0
      %2957 = vmatprep.mubr.bf16.mxu0 0
      %2958 = vmatmul.mubr.bf16.gmra.mrb[0].mxu0 %v2804
      %v2959 = vpop.f32.mrb[0].mxu0
      %v2960 = vadd.f32 0.0, %v2959
      %v2961 = vpop.f32.mrb[0].mxu0
      %v2962 = vpop.f32.mrb[0].mxu0
      %v2963 = vadd.f32 0.0, %v2962
      %v2964 = vpop.f32.mrb[0].mxu0
      %2965 = vmatprep.mubr.bf16.mxu0 0
      %2966 = vmatmul.mubr.bf16.gmra.mrb[0].mxu0 %v2807
      %v2967 = vpop.f32.mrb[0].mxu0
      %v2968 = vadd.f32 0.0, %v2967
      %v2969 = vpop.f32.mrb[0].mxu0
      %v2970 = vpop.f32.mrb[0].mxu0
      %v2971 = vadd.f32 0.0, %v2970
      %v2972 = vpop.f32.mrb[0].mxu0
      %2973 = vmatprep.mubr.bf16.mxu0 0
      %2974 = vmatmul.mubr.bf16.gmra.mrb[0].mxu0 %v2810
      %v2975 = vpop.f32.mrb[0].mxu0
      %v2976 = vadd.f32 0.0, %v2975
      %v2977 = vpop.f32.mrb[0].mxu0
      %v2978 = vpop.f32.mrb[0].mxu0
      %v2979 = vadd.f32 0.0, %v2978
      %v2980 = vpop.f32.mrb[0].mxu0
      %2981 = vmatprep.mubr.bf16.mxu0 0
      %2982 = vmatmul.mubr.bf16.gmra.mrb[0].mxu0 %v2813
      %v2983 = vpop.f32.mrb[0].mxu0
      %v2984 = vadd.f32 0.0, %v2983
      %v2985 = vpop.f32.mrb[0].mxu0
      %v2986 = vpop.f32.mrb[0].mxu0
      %v2987 = vadd.f32 0.0, %v2986
      %v2988 = vpop.f32.mrb[0].mxu0
      %2989 = vmatprep.mubr.bf16.mxu0 0
      %2990 = vmatmul.mubr.bf16.gmra.mrb[0].mxu0 %v2816
      %v2991 = vpop.f32.mrb[0].mxu0
      %v2992 = vadd.f32 0.0, %v2991
      %v2993 = vpop.f32.mrb[0].mxu0
      %v2994 = vpop.f32.mrb[0].mxu0
      %v2995 = vadd.f32 0.0, %v2994
      %v2996 = vpop.f32.mrb[0].mxu0
      %2997 = vdwg.mxu0
      %v2998 = vadd.f32 %v2672, %v2856
      %v2999 = vadd.f32 %v2673, %v2859
      %v3000 = vadd.f32 %v2674, %v2864
      %v3001 = vadd.f32 %v2675, %v2867
      %v3002 = vadd.f32 %v2676, %v2872
      %v3003 = vadd.f32 %v2677, %v2875
      %v3004 = vadd.f32 %v2678, %v2880
      %v3005 = vadd.f32 %v2679, %v2883
      %v3006 = vadd.f32 %v2680, %v2888
      %v3007 = vadd.f32 %v2681, %v2891
      %v3008 = vadd.f32 %v2682, %v2896
      %v3009 = vadd.f32 %v2683, %v2899
      %v3010 = vadd.f32 %v2684, %v2904
      %v3011 = vadd.f32 %v2685, %v2907
      %v3012 = vadd.f32 %v2686, %v2912
      %v3013 = vadd.f32 %v2687, %v2915
      %v3014 = vadd.f32 %v2688, %v2920
      %v3015 = vadd.f32 %v2689, %v2923
      %v3016 = vadd.f32 %v2690, %v2928
      %v3017 = vadd.f32 %v2691, %v2931
      %v3018 = vadd.f32 %v2692, %v2936
      %v3019 = vadd.f32 %v2693, %v2939
      %v3020 = vadd.f32 %v2694, %v2944
      %v3021 = vadd.f32 %v2695, %v2947
      %v3022 = vadd.f32 %v2696, %v2952
      %v3023 = vadd.f32 %v2697, %v2955
      %v3024 = vadd.f32 %v2698, %v2960
      %v3025 = vadd.f32 %v2699, %v2963
      %v3026 = vadd.f32 %v2700, %v2968
      %v3027 = vadd.f32 %v2701, %v2971
      %v3028 = vadd.f32 %v2702, %v2976
      %v3029 = vadd.f32 %v2703, %v2979
      %v3030 = vadd.f32 %v2704, %v2984
      %v3031 = vadd.f32 %v2705, %v2987
      %v3032 = vadd.f32 %v2706, %v2992
      %v3033 = vadd.f32 %v2707, %v2995
      %v3034 = vld [vmem:[#allocation2 + $0x26] sm:$0xff]
      %v3035 = vld [vmem:[#allocation2 + $0x2e] sm:$0xff]
      %v3036 = vld [vmem:[#allocation2 + $0x36] sm:$0xff]
      %v3037 = vld [vmem:[#allocation2 + $0x3e] sm:$0xff]
      %v3038 = vld [vmem:[#allocation2 + $0x46] sm:$0xff]
      %v3039 = vld [vmem:[#allocation2 + $0x4e] sm:$0xff]
      %v3040 = vld [vmem:[#allocation2 + $0x56] sm:$0xff]
      %v3041 = vld [vmem:[#allocation2 + $0x5e] sm:$0xff]
      %v3042 = vld [vmem:[#allocation2 + $0x66] sm:$0xff]
      %v3043 = vld [vmem:[#allocation2 + $0x6e] sm:$0xff]
      %v3044 = vld [vmem:[#allocation2 + $0x76] sm:$0xff]
      %v3045 = vld [vmem:[#allocation2 + $0x7e] sm:$0xff]
      %v3046 = vld [vmem:[#allocation2 + $0x86] sm:$0xff]
      %v3047 = vld [vmem:[#allocation2 + $0x8e] sm:$0xff]
      %v3048 = vld [vmem:[#allocation2 + $0x96] sm:$0xff]
      %v3049 = vld [vmem:[#allocation2 + $0x9e] sm:$0xff]
      %v3050 = vld [vmem:[#allocation2 + $0xa6] sm:$0xff]
      %v3051 = vld [vmem:[#allocation2 + $0xae] sm:$0xff]
      %v3052 = vld [vmem:[#allocation2 + $0xb6] sm:$0xff]
      %v3053 = vld [vmem:[#allocation2 + $0xbe] sm:$0xff]
      %v3054 = vld [vmem:[#allocation2 + $0xc6] sm:$0xff]
      %v3055 = vld [vmem:[#allocation2 + $0xce] sm:$0xff]
      %v3056 = vld [vmem:[#allocation2 + $0xd6] sm:$0xff]
      %v3057 = vld [vmem:[#allocation2 + $0xde] sm:$0xff]
      %v3058 = vld [vmem:[#allocation2 + $0xe6] sm:$0xff]
      %v3059 = vld [vmem:[#allocation2 + $0xee] sm:$0xff]
      %v3060 = vld [vmem:[#allocation2 + $0xf6] sm:$0xff]
      %v3061 = vld [vmem:[#allocation2 + $0xfe] sm:$0xff]
      %v3062 = vld [vmem:[#allocation2 + $0x106] sm:$0xff]
      %v3063 = vld [vmem:[#allocation2 + $0x10e] sm:$0xff]
      %v3064 = vld [vmem:[#allocation2 + $0x116] sm:$0xff]
      %v3065 = vld [vmem:[#allocation2 + $0x11e] sm:$0xff]
      %v3066 = vld [vmem:[#allocation2 + $0x126] sm:$0xff]
      %v3067 = vld [vmem:[#allocation2 + $0x12e] sm:$0xff]
      %v3068 = vld [vmem:[#allocation2 + $0x136] sm:$0xff]
      %v3069 = vld [vmem:[#allocation2 + $0x13e] sm:$0xff]
      %v3070 = vpack.c.bf16 %v3035, %v3034
      %v3071 = vpack.c.bf16 %v3037, %v3036
      %v3072 = vpack.c.bf16 %v3039, %v3038
      %v3073 = vpack.c.bf16 %v3041, %v3040
      %v3074 = vpack.c.bf16 %v3043, %v3042
      %v3075 = vpack.c.bf16 %v3045, %v3044
      %v3076 = vpack.c.bf16 %v3047, %v3046
      %v3077 = vpack.c.bf16 %v3049, %v3048
      %v3078 = vpack.c.bf16 %v3051, %v3050
      %v3079 = vpack.c.bf16 %v3053, %v3052
      %v3080 = vpack.c.bf16 %v3055, %v3054
      %v3081 = vpack.c.bf16 %v3057, %v3056
      %v3082 = vpack.c.bf16 %v3059, %v3058
      %v3083 = vpack.c.bf16 %v3061, %v3060
      %v3084 = vpack.c.bf16 %v3063, %v3062
      %v3085 = vpack.c.bf16 %v3065, %v3064
      %v3086 = vpack.c.bf16 %v3067, %v3066
      %v3087 = vpack.c.bf16 %v3069, %v3068
      %s3088 = scalar_lea.vmem %s2, 16
      %v3089 = vld [vmem:[%s3088] sm:$0x3]
      %v3091 = vsel %vm353, %v3070, 0
      %v3094 = vsel %vm353, %v3071, 0
      %v3097 = vsel %vm353, %v3072, 0
      %v3100 = vsel %vm353, %v3073, 0
      %v3103 = vsel %vm353, %v3074, 0
      %v3106 = vsel %vm353, %v3075, 0
      %v3109 = vsel %vm353, %v3076, 0
      %v3112 = vsel %vm353, %v3077, 0
      %v3115 = vsel %vm353, %v3078, 0
      %v3118 = vsel %vm353, %v3079, 0
      %v3121 = vsel %vm353, %v3080, 0
      %v3124 = vsel %vm353, %v3081, 0
      %v3127 = vsel %vm353, %v3082, 0
      %v3130 = vsel %vm353, %v3083, 0
      %v3133 = vsel %vm353, %v3084, 0
      %v3136 = vsel %vm353, %v3085, 0
      %v3139 = vsel %vm353, %v3086, 0
      %v3142 = vsel %vm353, %v3087, 0
      %v3145 = vsel %vm663, %v3089, 0
      %3147 = vmatprep.subr.bf16.mxu0 0
      %3148 = vmatpush1.bf16.msra.mxu0 %v3145
      %3149 = vmatprep.subr.bf16.mxu0 0
      %3150 = vmatpush1.bf16.msra.mxu0 0
      %3151 = vmatprep.subr.bf16.mxu0 0
      %3152 = vmatpush1.bf16.msra.mxu0 0
      %3153 = vmatprep.subr.bf16.mxu0 0
      %3154 = vmatpush1.bf16.msra.mxu0 0
      %3155 = vmatprep.subr.bf16.mxu0 0
      %3156 = vmatpush1.bf16.msra.mxu0 0
      %3157 = vmatprep.subr.bf16.mxu0 0
      %3158 = vmatpush1.bf16.msra.mxu0 0
      %3159 = vmatprep.subr.bf16.mxu0 0
      %3160 = vmatpush1.bf16.msra.mxu0 0
      %3161 = vmatprep.subr.bf16.mxu0 0
      %3162 = vmatpush1.bf16.msra.mxu0 0
      %3163 = vmatprep.subr.bf16.mxu0 0
      %3164 = vmatpush1.bf16.msra.mxu0 0
      %3165 = vmatprep.subr.bf16.mxu0 0
      %3166 = vmatpush1.bf16.msra.mxu0 0
      %3167 = vmatprep.subr.bf16.mxu0 0
      %3168 = vmatpush1.bf16.msra.mxu0 0
      %3169 = vmatprep.subr.bf16.mxu0 0
      %3170 = vmatpush1.bf16.msra.mxu0 0
      %3171 = vmatprep.subr.bf16.mxu0 0
      %3172 = vmatpush1.bf16.msra.mxu0 0
      %3173 = vmatprep.subr.bf16.mxu0 0
      %3174 = vmatpush1.bf16.msra.mxu0 0
      %3175 = vmatprep.subr.bf16.mxu0 0
      %3176 = vmatpush1.bf16.msra.mxu0 0
      %3177 = vmatprep.subr.bf16.mxu0 0
      %3178 = vmatpush1.bf16.msra.mxu0 0
      %3179 = vmatprep.mubr.bf16.mxu0 0
      %3180 = vmatmul.mubr.bf16.gmra.mrb[0].mxu0 %v3091
      %v3181 = vpop.f32.mrb[0].mxu0
      %v3182 = vadd.f32 0.0, %v3181
      %v3183 = vpop.f32.mrb[0].mxu0
      %v3184 = vpop.f32.mrb[0].mxu0
      %v3185 = vadd.f32 0.0, %v3184
      %v3186 = vpop.f32.mrb[0].mxu0
      %3187 = vmatprep.mubr.bf16.mxu0 0
      %3188 = vmatmul.mubr.bf16.gmra.mrb[0].mxu0 %v3094
      %v3189 = vpop.f32.mrb[0].mxu0
      %v3190 = vadd.f32 0.0, %v3189
      %v3191 = vpop.f32.mrb[0].mxu0
      %v3192 = vpop.f32.mrb[0].mxu0
      %v3193 = vadd.f32 0.0, %v3192
      %v3194 = vpop.f32.mrb[0].mxu0
      %3195 = vmatprep.mubr.bf16.mxu0 0
      %3196 = vmatmul.mubr.bf16.gmra.mrb[0].mxu0 %v3097
      %v3197 = vpop.f32.mrb[0].mxu0
      %v3198 = vadd.f32 0.0, %v3197
      %v3199 = vpop.f32.mrb[0].mxu0
      %v3200 = vpop.f32.mrb[0].mxu0
      %v3201 = vadd.f32 0.0, %v3200
      %v3202 = vpop.f32.mrb[0].mxu0
      %3203 = vmatprep.mubr.bf16.mxu0 0
      %3204 = vmatmul.mubr.bf16.gmra.mrb[0].mxu0 %v3100
      %v3205 = vpop.f32.mrb[0].mxu0
      %v3206 = vadd.f32 0.0, %v3205
      %v3207 = vpop.f32.mrb[0].mxu0
      %v3208 = vpop.f32.mrb[0].mxu0
      %v3209 = vadd.f32 0.0, %v3208
      %v3210 = vpop.f32.mrb[0].mxu0
      %3211 = vmatprep.mubr.bf16.mxu0 0
      %3212 = vmatmul.mubr.bf16.gmra.mrb[0].mxu0 %v3103
      %v3213 = vpop.f32.mrb[0].mxu0
      %v3214 = vadd.f32 0.0, %v3213
      %v3215 = vpop.f32.mrb[0].mxu0
      %v3216 = vpop.f32.mrb[0].mxu0
      %v3217 = vadd.f32 0.0, %v3216
      %v3218 = vpop.f32.mrb[0].mxu0
      %3219 = vmatprep.mubr.bf16.mxu0 0
      %3220 = vmatmul.mubr.bf16.gmra.mrb[0].mxu0 %v3106
      %v3221 = vpop.f32.mrb[0].mxu0
      %v3222 = vadd.f32 0.0, %v3221
      %v3223 = vpop.f32.mrb[0].mxu0
      %v3224 = vpop.f32.mrb[0].mxu0
      %v3225 = vadd.f32 0.0, %v3224
      %v3226 = vpop.f32.mrb[0].mxu0
      %3227 = vmatprep.mubr.bf16.mxu0 0
      %3228 = vmatmul.mubr.bf16.gmra.mrb[0].mxu0 %v3109
      %v3229 = vpop.f32.mrb[0].mxu0
      %v3230 = vadd.f32 0.0, %v3229
      %v3231 = vpop.f32.mrb[0].mxu0
      %v3232 = vpop.f32.mrb[0].mxu0
      %v3233 = vadd.f32 0.0, %v3232
      %v3234 = vpop.f32.mrb[0].mxu0
      %3235 = vmatprep.mubr.bf16.mxu0 0
      %3236 = vmatmul.mubr.bf16.gmra.mrb[0].mxu0 %v3112
      %v3237 = vpop.f32.mrb[0].mxu0
      %v3238 = vadd.f32 0.0, %v3237
      %v3239 = vpop.f32.mrb[0].mxu0
      %v3240 = vpop.f32.mrb[0].mxu0
      %v3241 = vadd.f32 0.0, %v3240
      %v3242 = vpop.f32.mrb[0].mxu0
      %3243 = vmatprep.mubr.bf16.mxu0 0
      %3244 = vmatmul.mubr.bf16.gmra.mrb[0].mxu0 %v3115
      %v3245 = vpop.f32.mrb[0].mxu0
      %v3246 = vadd.f32 0.0, %v3245
      %v3247 = vpop.f32.mrb[0].mxu0
      %v3248 = vpop.f32.mrb[0].mxu0
      %v3249 = vadd.f32 0.0, %v3248
      %v3250 = vpop.f32.mrb[0].mxu0
      %3251 = vmatprep.mubr.bf16.mxu0 0
      %3252 = vmatmul.mubr.bf16.gmra.mrb[0].mxu0 %v3118
      %v3253 = vpop.f32.mrb[0].mxu0
      %v3254 = vadd.f32 0.0, %v3253
      %v3255 = vpop.f32.mrb[0].mxu0
      %v3256 = vpop.f32.mrb[0].mxu0
      %v3257 = vadd.f32 0.0, %v3256
      %v3258 = vpop.f32.mrb[0].mxu0
      %3259 = vmatprep.mubr.bf16.mxu0 0
      %3260 = vmatmul.mubr.bf16.gmra.mrb[0].mxu0 %v3121
      %v3261 = vpop.f32.mrb[0].mxu0
      %v3262 = vadd.f32 0.0, %v3261
      %v3263 = vpop.f32.mrb[0].mxu0
      %v3264 = vpop.f32.mrb[0].mxu0
      %v3265 = vadd.f32 0.0, %v3264
      %v3266 = vpop.f32.mrb[0].mxu0
      %3267 = vmatprep.mubr.bf16.mxu0 0
      %3268 = vmatmul.mubr.bf16.gmra.mrb[0].mxu0 %v3124
      %v3269 = vpop.f32.mrb[0].mxu0
      %v3270 = vadd.f32 0.0, %v3269
      %v3271 = vpop.f32.mrb[0].mxu0
      %v3272 = vpop.f32.mrb[0].mxu0
      %v3273 = vadd.f32 0.0, %v3272
      %v3274 = vpop.f32.mrb[0].mxu0
      %3275 = vmatprep.mubr.bf16.mxu0 0
      %3276 = vmatmul.mubr.bf16.gmra.mrb[0].mxu0 %v3127
      %v3277 = vpop.f32.mrb[0].mxu0
      %v3278 = vadd.f32 0.0, %v3277
      %v3279 = vpop.f32.mrb[0].mxu0
      %v3280 = vpop.f32.mrb[0].mxu0
      %v3281 = vadd.f32 0.0, %v3280
      %v3282 = vpop.f32.mrb[0].mxu0
      %3283 = vmatprep.mubr.bf16.mxu0 0
      %3284 = vmatmul.mubr.bf16.gmra.mrb[0].mxu0 %v3130
      %v3285 = vpop.f32.mrb[0].mxu0
      %v3286 = vadd.f32 0.0, %v3285
      %v3287 = vpop.f32.mrb[0].mxu0
      %v3288 = vpop.f32.mrb[0].mxu0
      %v3289 = vadd.f32 0.0, %v3288
      %v3290 = vpop.f32.mrb[0].mxu0
      %3291 = vmatprep.mubr.bf16.mxu0 0
      %3292 = vmatmul.mubr.bf16.gmra.mrb[0].mxu0 %v3133
      %v3293 = vpop.f32.mrb[0].mxu0
      %v3294 = vadd.f32 0.0, %v3293
      %v3295 = vpop.f32.mrb[0].mxu0
      %v3296 = vpop.f32.mrb[0].mxu0
      %v3297 = vadd.f32 0.0, %v3296
      %v3298 = vpop.f32.mrb[0].mxu0
      %3299 = vmatprep.mubr.bf16.mxu0 0
      %3300 = vmatmul.mubr.bf16.gmra.mrb[0].mxu0 %v3136
      %v3301 = vpop.f32.mrb[0].mxu0
      %v3302 = vadd.f32 0.0, %v3301
      %v3303 = vpop.f32.mrb[0].mxu0
      %v3304 = vpop.f32.mrb[0].mxu0
      %v3305 = vadd.f32 0.0, %v3304
      %v3306 = vpop.f32.mrb[0].mxu0
      %3307 = vmatprep.mubr.bf16.mxu0 0
      %3308 = vmatmul.mubr.bf16.gmra.mrb[0].mxu0 %v3139
      %v3309 = vpop.f32.mrb[0].mxu0
      %v3310 = vadd.f32 0.0, %v3309
      %v3311 = vpop.f32.mrb[0].mxu0
      %v3312 = vpop.f32.mrb[0].mxu0
      %v3313 = vadd.f32 0.0, %v3312
      %v3314 = vpop.f32.mrb[0].mxu0
      %3315 = vmatprep.mubr.bf16.mxu0 0
      %3316 = vmatmul.mubr.bf16.gmra.mrb[0].mxu0 %v3142
      %v3317 = vpop.f32.mrb[0].mxu0
      %v3318 = vadd.f32 0.0, %v3317
      %v3319 = vpop.f32.mrb[0].mxu0
      %v3320 = vpop.f32.mrb[0].mxu0
      %v3321 = vadd.f32 0.0, %v3320
      %v3322 = vpop.f32.mrb[0].mxu0
      %3323 = vdwg.mxu0
      %v3324 = vadd.f32 %v2998, %v3182
      %v3325 = vadd.f32 %v2999, %v3185
      %v3326 = vadd.f32 %v3000, %v3190
      %v3327 = vadd.f32 %v3001, %v3193
      %v3328 = vadd.f32 %v3002, %v3198
      %v3329 = vadd.f32 %v3003, %v3201
      %v3330 = vadd.f32 %v3004, %v3206
      %v3331 = vadd.f32 %v3005, %v3209
      %v3332 = vadd.f32 %v3006, %v3214
      %v3333 = vadd.f32 %v3007, %v3217
      %v3334 = vadd.f32 %v3008, %v3222
      %v3335 = vadd.f32 %v3009, %v3225
      %v3336 = vadd.f32 %v3010, %v3230
      %v3337 = vadd.f32 %v3011, %v3233
      %v3338 = vadd.f32 %v3012, %v3238
      %v3339 = vadd.f32 %v3013, %v3241
      %v3340 = vadd.f32 %v3014, %v3246
      %v3341 = vadd.f32 %v3015, %v3249
      %v3342 = vadd.f32 %v3016, %v3254
      %v3343 = vadd.f32 %v3017, %v3257
      %v3344 = vadd.f32 %v3018, %v3262
      %v3345 = vadd.f32 %v3019, %v3265
      %v3346 = vadd.f32 %v3020, %v3270
      %v3347 = vadd.f32 %v3021, %v3273
      %v3348 = vadd.f32 %v3022, %v3278
      %v3349 = vadd.f32 %v3023, %v3281
      %v3350 = vadd.f32 %v3024, %v3286
      %v3351 = vadd.f32 %v3025, %v3289
      %v3352 = vadd.f32 %v3026, %v3294
      %v3353 = vadd.f32 %v3027, %v3297
      %v3354 = vadd.f32 %v3028, %v3302
      %v3355 = vadd.f32 %v3029, %v3305
      %v3356 = vadd.f32 %v3030, %v3310
      %v3357 = vadd.f32 %v3031, %v3313
      %v3358 = vadd.f32 %v3032, %v3318
      %v3359 = vadd.f32 %v3033, %v3321
      %v3360 = vld [vmem:[%s3] sm:$0x1]
      %v3362 = vlaneseq
      %v3363 = vshrl.u32 %v3362, 7
      %v3364 = vsub.s32 0, %v3363
      %v3365 = vrot.slane %v3360, %v3364
      %v3367 = vadd.f32 %v3324, %v3365
      %v3368 = vadd.f32 %v3325, %v3365
      %v3369 = vadd.f32 %v3326, %v3365
      %v3370 = vadd.f32 %v3327, %v3365
      %v3371 = vadd.f32 %v3328, %v3365
      %v3372 = vadd.f32 %v3329, %v3365
      %v3373 = vadd.f32 %v3330, %v3365
      %v3374 = vadd.f32 %v3331, %v3365
      %v3375 = vadd.f32 %v3332, %v3365
      %v3376 = vadd.f32 %v3333, %v3365
      %v3377 = vadd.f32 %v3334, %v3365
      %v3378 = vadd.f32 %v3335, %v3365
      %v3379 = vadd.f32 %v3336, %v3365
      %v3380 = vadd.f32 %v3337, %v3365
      %v3381 = vadd.f32 %v3338, %v3365
      %v3382 = vadd.f32 %v3339, %v3365
      %v3383 = vadd.f32 %v3340, %v3365
      %v3384 = vadd.f32 %v3341, %v3365
      %v3385 = vadd.f32 %v3342, %v3365
      %v3386 = vadd.f32 %v3343, %v3365
      %v3387 = vadd.f32 %v3344, %v3365
      %v3388 = vadd.f32 %v3345, %v3365
      %v3389 = vadd.f32 %v3346, %v3365
      %v3390 = vadd.f32 %v3347, %v3365
      %v3391 = vadd.f32 %v3348, %v3365
      %v3392 = vadd.f32 %v3349, %v3365
      %v3393 = vadd.f32 %v3350, %v3365
      %v3394 = vadd.f32 %v3351, %v3365
      %v3395 = vadd.f32 %v3352, %v3365
      %v3396 = vadd.f32 %v3353, %v3365
      %v3397 = vadd.f32 %v3354, %v3365
      %v3398 = vadd.f32 %v3355, %v3365
      %v3399 = vadd.f32 %v3356, %v3365
      %v3400 = vadd.f32 %v3357, %v3365
      %v3401 = vadd.f32 %v3358, %v3365
      %v3402 = vadd.f32 %v3359, %v3365
      %vm3403 = vcmp.gt.f32.partialorder %v3367, 0.0
      %vm3404 = vcmp.gt.f32.partialorder %v3368, 0.0
      %vm3405 = vcmp.gt.f32.partialorder %v3369, 0.0
      %vm3406 = vcmp.gt.f32.partialorder %v3370, 0.0
      %vm3407 = vcmp.gt.f32.partialorder %v3371, 0.0
      %vm3408 = vcmp.gt.f32.partialorder %v3372, 0.0
      %vm3409 = vcmp.gt.f32.partialorder %v3373, 0.0
      %vm3410 = vcmp.gt.f32.partialorder %v3374, 0.0
      %vm3411 = vcmp.gt.f32.partialorder %v3375, 0.0
      %vm3412 = vcmp.gt.f32.partialorder %v3376, 0.0
      %vm3413 = vcmp.gt.f32.partialorder %v3377, 0.0
      %vm3414 = vcmp.gt.f32.partialorder %v3378, 0.0
      %vm3415 = vcmp.gt.f32.partialorder %v3379, 0.0
      %vm3416 = vcmp.gt.f32.partialorder %v3380, 0.0
      %vm3417 = vcmp.gt.f32.partialorder %v3381, 0.0
      %vm3418 = vcmp.gt.f32.partialorder %v3382, 0.0
      %vm3419 = vcmp.gt.f32.partialorder %v3383, 0.0
      %vm3420 = vcmp.gt.f32.partialorder %v3384, 0.0
      %vm3421 = vcmp.gt.f32.partialorder %v3385, 0.0
      %vm3422 = vcmp.gt.f32.partialorder %v3386, 0.0
      %vm3423 = vcmp.gt.f32.partialorder %v3387, 0.0
      %vm3424 = vcmp.gt.f32.partialorder %v3388, 0.0
      %vm3425 = vcmp.gt.f32.partialorder %v3389, 0.0
      %vm3426 = vcmp.gt.f32.partialorder %v3390, 0.0
      %vm3427 = vcmp.gt.f32.partialorder %v3391, 0.0
      %vm3428 = vcmp.gt.f32.partialorder %v3392, 0.0
      %vm3429 = vcmp.gt.f32.partialorder %v3393, 0.0
      %vm3430 = vcmp.gt.f32.partialorder %v3394, 0.0
      %vm3431 = vcmp.gt.f32.partialorder %v3395, 0.0
      %vm3432 = vcmp.gt.f32.partialorder %v3396, 0.0
      %vm3433 = vcmp.gt.f32.partialorder %v3397, 0.0
      %vm3434 = vcmp.gt.f32.partialorder %v3398, 0.0
      %vm3435 = vcmp.gt.f32.partialorder %v3399, 0.0
      %vm3436 = vcmp.gt.f32.partialorder %v3400, 0.0
      %vm3437 = vcmp.gt.f32.partialorder %v3401, 0.0
      %vm3438 = vcmp.gt.f32.partialorder %v3402, 0.0
      %v3439 = vmul.f32 %v3367, 0.1
      %v3440 = vmul.f32 %v3368, 0.1
      %v3441 = vmul.f32 %v3369, 0.1
      %v3442 = vmul.f32 %v3370, 0.1
      %v3443 = vmul.f32 %v3371, 0.1
      %v3444 = vmul.f32 %v3372, 0.1
      %v3445 = vmul.f32 %v3373, 0.1
      %v3446 = vmul.f32 %v3374, 0.1
      %v3447 = vmul.f32 %v3375, 0.1
      %v3448 = vmul.f32 %v3376, 0.1
      %v3449 = vmul.f32 %v3377, 0.1
      %v3450 = vmul.f32 %v3378, 0.1
      %v3451 = vmul.f32 %v3379, 0.1
      %v3452 = vmul.f32 %v3380, 0.1
      %v3453 = vmul.f32 %v3381, 0.1
      %v3454 = vmul.f32 %v3382, 0.1
      %v3455 = vmul.f32 %v3383, 0.1
      %v3456 = vmul.f32 %v3384, 0.1
      %v3457 = vmul.f32 %v3385, 0.1
      %v3458 = vmul.f32 %v3386, 0.1
      %v3459 = vmul.f32 %v3387, 0.1
      %v3460 = vmul.f32 %v3388, 0.1
      %v3461 = vmul.f32 %v3389, 0.1
      %v3462 = vmul.f32 %v3390, 0.1
      %v3463 = vmul.f32 %v3391, 0.1
      %v3464 = vmul.f32 %v3392, 0.1
      %v3465 = vmul.f32 %v3393, 0.1
      %v3466 = vmul.f32 %v3394, 0.1
      %v3467 = vmul.f32 %v3395, 0.1
      %v3468 = vmul.f32 %v3396, 0.1
      %v3469 = vmul.f32 %v3397, 0.1
      %v3470 = vmul.f32 %v3398, 0.1
      %v3471 = vmul.f32 %v3399, 0.1
      %v3472 = vmul.f32 %v3400, 0.1
      %v3473 = vmul.f32 %v3401, 0.1
      %v3474 = vmul.f32 %v3402, 0.1
      %v3475 = vsel %vm3403, %v3367, %v3439
      %v3476 = vsel %vm3404, %v3368, %v3440
      %v3477 = vsel %vm3405, %v3369, %v3441
      %v3478 = vsel %vm3406, %v3370, %v3442
      %v3479 = vsel %vm3407, %v3371, %v3443
      %v3480 = vsel %vm3408, %v3372, %v3444
      %v3481 = vsel %vm3409, %v3373, %v3445
      %v3482 = vsel %vm3410, %v3374, %v3446
      %v3483 = vsel %vm3411, %v3375, %v3447
      %v3484 = vsel %vm3412, %v3376, %v3448
      %v3485 = vsel %vm3413, %v3377, %v3449
      %v3486 = vsel %vm3414, %v3378, %v3450
      %v3487 = vsel %vm3415, %v3379, %v3451
      %v3488 = vsel %vm3416, %v3380, %v3452
      %v3489 = vsel %vm3417, %v3381, %v3453
      %v3490 = vsel %vm3418, %v3382, %v3454
      %v3491 = vsel %vm3419, %v3383, %v3455
      %v3492 = vsel %vm3420, %v3384, %v3456
      %v3493 = vsel %vm3421, %v3385, %v3457
      %v3494 = vsel %vm3422, %v3386, %v3458
      %v3495 = vsel %vm3423, %v3387, %v3459
      %v3496 = vsel %vm3424, %v3388, %v3460
      %v3497 = vsel %vm3425, %v3389, %v3461
      %v3498 = vsel %vm3426, %v3390, %v3462
      %v3499 = vsel %vm3427, %v3391, %v3463
      %v3500 = vsel %vm3428, %v3392, %v3464
      %v3501 = vsel %vm3429, %v3393, %v3465
      %v3502 = vsel %vm3430, %v3394, %v3466
      %v3503 = vsel %vm3431, %v3395, %v3467
      %v3504 = vsel %vm3432, %v3396, %v3468
      %v3505 = vsel %vm3433, %v3397, %v3469
      %v3506 = vsel %vm3434, %v3398, %v3470
      %v3507 = vsel %vm3435, %v3399, %v3471
      %v3508 = vsel %vm3436, %v3400, %v3472
      %v3509 = vsel %vm3437, %v3401, %v3473
      %v3510 = vsel %vm3438, %v3402, %v3474
      %3511 = vst [vmem:[%s278] sm:$0xff] %v3475
      %3512 = vst [vmem:[%s278 + $0x8] sm:$0xff] %v3476
      %3513 = vst [vmem:[%s278 + $0x10] sm:$0xff] %v3477
      %3514 = vst [vmem:[%s278 + $0x18] sm:$0xff] %v3478
      %3515 = vst [vmem:[%s278 + $0x20] sm:$0xff] %v3479
      %3516 = vst [vmem:[%s278 + $0x28] sm:$0xff] %v3480
      %3517 = vst [vmem:[%s278 + $0x30] sm:$0xff] %v3481
      %3518 = vst [vmem:[%s278 + $0x38] sm:$0xff] %v3482
      %3519 = vst [vmem:[%s278 + $0x40] sm:$0xff] %v3483
      %3520 = vst [vmem:[%s278 + $0x48] sm:$0xff] %v3484
      %3521 = vst [vmem:[%s278 + $0x50] sm:$0xff] %v3485
      %3522 = vst [vmem:[%s278 + $0x58] sm:$0xff] %v3486
      %3523 = vst [vmem:[%s278 + $0x60] sm:$0xff] %v3487
      %3524 = vst [vmem:[%s278 + $0x68] sm:$0xff] %v3488
      %3525 = vst [vmem:[%s278 + $0x70] sm:$0xff] %v3489
      %3526 = vst [vmem:[%s278 + $0x78] sm:$0xff] %v3490
      %3527 = vst [vmem:[%s278 + $0x80] sm:$0xff] %v3491
      %3528 = vst [vmem:[%s278 + $0x88] sm:$0xff] %v3492
      %3529 = vst [vmem:[%s278 + $0x90] sm:$0xff] %v3493
      %3530 = vst [vmem:[%s278 + $0x98] sm:$0xff] %v3494
      %3531 = vst [vmem:[%s278 + $0xa0] sm:$0xff] %v3495
      %3532 = vst [vmem:[%s278 + $0xa8] sm:$0xff] %v3496
      %3533 = vst [vmem:[%s278 + $0xb0] sm:$0xff] %v3497
      %3534 = vst [vmem:[%s278 + $0xb8] sm:$0xff] %v3498
      %3535 = vst [vmem:[%s278 + $0xc0] sm:$0xff] %v3499
      %3536 = vst [vmem:[%s278 + $0xc8] sm:$0xff] %v3500
      %3537 = vst [vmem:[%s278 + $0xd0] sm:$0xff] %v3501
      %3538 = vst [vmem:[%s278 + $0xd8] sm:$0xff] %v3502
      %3539 = vst [vmem:[%s278 + $0xe0] sm:$0xff] %v3503
      %3540 = vst [vmem:[%s278 + $0xe8] sm:$0xff] %v3504
      %3541 = vst [vmem:[%s278 + $0xf0] sm:$0xff] %v3505
      %3542 = vst [vmem:[%s278 + $0xf8] sm:$0xff] %v3506
      %3543 = vst [vmem:[%s278 + $0x100] sm:$0xff] %v3507
      %3544 = vst [vmem:[%s278 + $0x108] sm:$0xff] %v3508
      %3545 = vst [vmem:[%s278 + $0x110] sm:$0xff] %v3509
      %3546 = vst [vmem:[%s278 + $0x118] sm:$0xff] %v3510
      %s3547 = smul.u32 36, %s20
      %p3548 = scmp.lt.s32.totalorder %s19, 1
      %s3549 = scalar_select %p3548, %s19, 1
      %p3550 = scmp.lt.s32.totalorder %s3547, 35
      %s3551 = scalar_select %p3550, %s3547, 35
      %s3552 = smul.addr %s3549, 36
      %s3553 = sadd.s32 %s3551, %s3552
      %s3554 = smul.addr %s3553, 8
      %s3555 = scalar_lea.vmem %s4, %s3554
      // Predicated region
      $region37: #{conv_bn_leaky.1} parent=35 // pred_check
        %p3556 = pneg %p147
      $region38: #{conv_bn_leaky.1} parent=35 // pred_check_branch
        %3558 = sbr.rel (%p3556) target = $region40
      $region39: #{conv_bn_leaky.1} parent=35 // pred_region
        %s3559 = smul.u32 36, %s20
      $region40: #{conv_bn_leaky.1} parent=35 // pred_fallthru
        _
    $region36: #{conv_bn_leaky.1} parent=5 // pred_fallthru
      _
    %p3560 = scmp.le.s32.totalorder 2, %s10
    // Predicated region
    $region41: #{conv_bn_leaky.1} parent=5 // pred_check
      %p3561 = pneg %p3560
    $region42: #{conv_bn_leaky.1} parent=5 // pred_check_branch
      %3563 = sbr.rel (%p3561) target = $region44
    $region43: #{conv_bn_leaky.1} parent=5 // pred_region
      %s3564 = ssub.s32 %s10, 2
      // Predicated region
      $region45: #{conv_bn_leaky.1} parent=43 // pred_check
        %p3565 = pneg %p153
      $region46: #{conv_bn_leaky.1} parent=43 // pred_check_branch
        %3567 = sbr.rel (%p3565) target = $region48
      $region47: #{conv_bn_leaky.1} parent=43 // pred_region
        %s3568 = smul.u32 36, %s22
        %p3569 = scmp.lt.s32.totalorder %s21, 1
        %s3570 = scalar_select %p3569, %s21, 1
        %p3571 = scmp.lt.s32.totalorder %s3568, 35
        %s3572 = scalar_select %p3571, %s3568, 35
        %s3573 = smul.addr %s3570, 36
        %s3574 = sadd.s32 %s3572, %s3573
        %s3575 = smul.addr %s3574, 8
        %s3576 = scalar_lea.vmem %s4, %s3575
      $region48: #{conv_bn_leaky.1} parent=43 // pred_fallthru
        _
    $region44: #{conv_bn_leaky.1} parent=5 // pred_fallthru
      _
  $region6: #{conv_bn_leaky.1} parent=0 // loop_footer
    %s14 = sadd.s32 1, %s10
  $region7: #{conv_bn_leaky.1} parent=0 // loop_footer_branch
    %9 = sbr.rel target = $region3
  $region8: #{conv_bn_leaky.1} parent=0 // loop_exit
    _

</llo_original>
